<compile_context>
chip_gen: v7x
topology: tpu7x:2x2x1
jax: 0.10.0
libtpu: 0.0.40
codegen_flags: <defaults>
</compile_context>

<pallas_src>
import functools

import jax
import jax.numpy as jnp
from jax.experimental import pallas as pl
from jax.experimental.pallas import tpu as pltpu

POOL_SIZES = (5, 9, 13)
PAD = max(POOL_SIZES) // 2          # 6: halo wide enough for the largest window
N_GROUPS = len(POOL_SIZES) + 1      # 3 pools + identity branch
W_OFF = 8                           # sublane-aligned column offset of the interior


def _round_up(v, m):
    return -(-v // m) * m


def _padded_width(W):
    # left halo W_OFF (>= PAD, multiple of 8), right halo >= PAD, rounded to 8.
    return _round_up(W_OFF + W + PAD, 8)


def _sep_pool5(b):
    """Separable 5x5 stride-1 max pool; shrinks by 2 on every spatial edge.

    b: ref or value of shape (h, w, c) -> value (h-4, w-4, c).  Axis 0 (H) is
    the major axis (vreg selects), axis 1 (W) is the sublane axis, C stays on
    lanes.  Shrinking inside the -inf halo keeps the chained pools exact.
    """
    h, w = b.shape[0], b.shape[1]
    # Row pass: max over 5 consecutive rows.
    r = b[2:h - 2]
    for d in (1, 2):
        r = jnp.maximum(r, b[2 - d:h - 2 - d])
        r = jnp.maximum(r, b[2 + d:h - 2 + d])
    # Column pass: max over 5 consecutive columns.
    c = r[:, 2:w - 2]
    for d in (1, 2):
        c = jnp.maximum(c, r[:, 2 - d:w - 2 - d])
        c = jnp.maximum(c, r[:, 2 + d:w - 2 + d])
    return c


def _spp_kernel(x_ref, o_ref, pad_ref, b1_ref, b2_ref, *, H, W, Wp, pad_val):
    """x_ref: (cb, H*W) NCHW block.     o_ref: (N_GROUPS, cb, H*W).
    pad_ref: (H+2*PAD, Wp, cb) channels-last scratch with a -inf halo.
    b1_ref:  (H+8, Wp-4, cb)  pool5 stage.   b2_ref: (H+4, Wp-8, cb) pool9 stage."""
    cb = x_ref.shape[0]
    HW = H * W
    dt = pad_ref.dtype

    # ---- halo init: only the -inf strips; the interior is overwritten below.
    # Re-done every step so it is correct no matter how the parallel grid is
    # sharded across TensorCores (scratch is per-core and uninitialized). ----
    pad_ref[:PAD, :, :] = jnp.full((PAD, Wp, cb), pad_val, dt)
    pad_ref[PAD + H:, :, :] = jnp.full((PAD, Wp, cb), pad_val, dt)
    pad_ref[PAD:PAD + H, :W_OFF, :] = jnp.full((H, W_OFF, cb), pad_val, dt)
    pad_ref[PAD:PAD + H, W_OFF + W:, :] = jnp.full(
        (H, Wp - W_OFF - W, cb), pad_val, dt)

    # ---- fused NCHW -> channels-last: one 2-D XLU transpose per step ----
    xt = jnp.transpose(x_ref[...], (1, 0))                 # (H*W, cb), C on lanes
    if W % 8 == 0:
        # layout-preserving reshape (each image row starts a new sublane tile)
        pad_ref[PAD:PAD + H, W_OFF:W_OFF + W, :] = xt.reshape(H, W, cb)
    else:
        for h in range(H):                                  # robust fallback
            pad_ref[PAD + h, W_OFF:W_OFF + W, :] = xt[pl.ds(h * W, W), :]

    # ---- SPPF chaining through explicit scratch: 5 -> 9 -> 13 ----
    b1_ref[...] = _sep_pool5(pad_ref)      # (H+8, Wp-4, cb): pool5, halo 4
    b2_ref[...] = _sep_pool5(b1_ref)       # (H+4, Wp-8, cb): pool9, halo 2
    b3 = _sep_pool5(b2_ref)                # (H,   Wp-12, cb): pool13

    # ---- fused channels-last -> NCHW per group tile; one lane-dense store
    # per group into the (N_GROUPS, C, H*W) output block ----
    def to_chw(t):                          # (H, W, cb) -> (cb, H*W)
        if W % 8 == 0:
            flat = t.reshape(HW, cb)
        else:
            flat = jnp.concatenate([t[h] for h in range(H)], axis=0)
        return jnp.transpose(flat, (1, 0))

    o_ref[0, :, :] = to_chw(b1_ref[PAD - 2:PAD - 2 + H, W_OFF - 2:W_OFF - 2 + W, :])
    o_ref[1, :, :] = to_chw(b2_ref[PAD - 4:PAD - 4 + H, W_OFF - 4:W_OFF - 4 + W, :])
    o_ref[2, :, :] = to_chw(b3[:, W_OFF - PAD:W_OFF - PAD + W, :])
    o_ref[3, :, :] = x_ref[...]             # identity branch: already NCHW


def _vmem_per_cblock(cb, H, W, itemsize):
    """Conservative per-grid-step VMEM estimate: double-buffered in/out blocks,
    explicit scratch (pad / b1 / b2), plus compiler-materialized temporaries
    (in/out transposes and the separable row-pass intermediates)."""
    HWr = _round_up(H * W, 128)
    Wp = _padded_width(W)
    cb_sub = _round_up(cb, 8)        # cb on sublanes (NCHW-side buffers)
    cb_lane = _round_up(cb, 128)     # cb on lanes (channels-last buffers)
    in_blocks = 2 * cb_sub * HWr
    out_blocks = 2 * N_GROUPS * cb_sub * HWr
    pad_area = (H + 2 * PAD) * Wp
    scratch = (pad_area + (H + 8) * (Wp - 4) + (H + 4) * (Wp - 8)) * cb_lane
    temporaries = 6 * pad_area * cb_lane + 2 * cb_sub * HWr
    return itemsize * (in_blocks + out_blocks + scratch + temporaries)


def _pick_c_block(N, C, H, W, itemsize, budget_bytes):
    """Channel block: a multiple of 128 that divides C, or exactly C (never a
    lane-misaligned divisor).  Prefer the largest block that fits the VMEM
    budget while keeping >= 4 grid steps for DMA/compute overlap."""
    if C % 128 == 0:
        cands = [d for d in range(128, C + 1, 128) if C % d == 0]
    else:
        cands = [C]                  # small / non-128-divisible C: full dim
    fitting = [d for d in cands
               if _vmem_per_cblock(d, H, W, itemsize) <= budget_bytes]
    if not fitting:
        fitting = cands[:1]
    pipelined = [d for d in fitting if N * (C // d) >= 4]
    # TODO(synk): when N*(C//cb) stays < 4 (e.g. N=1, C=128), split H across the
    # grid with a 2*PAD-row overlapping index_map instead of shrinking cb.
    return (pipelined or fitting)[-1]


def _vmem_budget():
    """(block-picking budget, scoped vmem limit), adapted to the chip:
    ~96 MiB limit on v5e/v6e (128 MiB physical), ~48 MiB on v7x (64 MiB)."""
    try:
        cap = int(pltpu.get_tpu_info().vmem_capacity_bytes)
    except Exception:
        cap = 64 << 20               # conservative (v7x-sized) fallback
    limit = max(32 << 20, min((cap * 3) // 4, 100 << 20))
    return limit // 2, limit


def spatial_pyramid_pooling(x):
    """x: (N, C, H, W) -> (N, 4*C, H, W), matching the PyTorch module."""
    N, C, H, W = x.shape
    dtype = x.dtype
    HW = H * W
    Wp = _padded_width(W)
    if jnp.issubdtype(dtype, jnp.floating):
        pad_val = -jnp.inf
    else:
        pad_val = int(jnp.iinfo(dtype).min)   # integer dtypes: pad with dtype min

    budget, vmem_limit = _vmem_budget()
    cb = _pick_c_block(N, C, H, W, dtype.itemsize, budget)
    grid = (N, C // cb)

    kernel = functools.partial(_spp_kernel, H=H, W=W, Wp=Wp, pad_val=pad_val)

    cost = pl.CostEstimate(
        flops=3 * 8 * N * C * H * W,                      # 24 maxes / element
        transcendentals=0,
        bytes_accessed=(1 + N_GROUPS) * N * C * H * W * dtype.itemsize)

    out = pl.pallas_call(
        kernel,
        out_shape=jax.ShapeDtypeStruct((N, N_GROUPS, C, HW), dtype),
        grid_spec=pltpu.PrefetchScalarGridSpec(
            num_scalar_prefetch=0,
            grid=grid,
            in_specs=[
                # NCHW input, spatial flattened on lanes; no wrapper transpose.
                pl.BlockSpec((None, cb, HW), lambda n, c: (n, c, 0)),
            ],
            out_specs=pl.BlockSpec((None, N_GROUPS, cb, HW),
                                   lambda n, c: (n, 0, c, 0)),
            scratch_shapes=[
                pltpu.VMEM((H + 2 * PAD, Wp, cb), dtype),   # padded input (b0)
                pltpu.VMEM((H + 8, Wp - 4, cb), dtype),     # pool5 stage (b1)
                pltpu.VMEM((H + 4, Wp - 8, cb), dtype),     # pool9 stage (b2)
            ]),
        compiler_params=pltpu.CompilerParams(
            dimension_semantics=("parallel", "parallel"),
            vmem_limit_bytes=vmem_limit),
        cost_estimate=cost,
    )(x.reshape(N, C, HW))

    # (N, 4, C, H*W) is contiguous w.r.t. (N, 4C, H, W): this reshape is free and
    # channel index g*C + c reproduces torch.cat([p5, p9, p13, x], dim=1).
    return out.reshape(N, N_GROUPS * C, H, W)


def _reference(x):
    """Pure-JAX reference (stride-1 max pool with implicit padding), NCHW."""
    N, C, H, W = x.shape
    if jnp.issubdtype(x.dtype, jnp.floating):
        pad_val = -jnp.inf
    else:
        pad_val = int(jnp.iinfo(x.dtype).min)
    xp = jnp.pad(x, ((0, 0), (0, 0), (PAD, PAD), (PAD, PAD)),
                 constant_values=pad_val)
    feats = []
    for k in POOL_SIZES:
        p = k // 2
        acc = None
        for di in range(k):
            for dj in range(k):
                r0 = PAD - p + di
                c0 = PAD - p + dj
                s = xp[:, :, r0:r0 + H, c0:c0 + W]
                acc = s if acc is None else jnp.maximum(acc, s)
        feats.append(acc)
    feats.append(x)
    return jnp.concatenate(feats, axis=1)


if __name__ == "__main__":
    key = jax.random.PRNGKey(0)

    # Small shape consistent with the module's NCHW forward.
    N, C, H, W = 2, 4, 16, 16
    x = jax.random.normal(key, (N, C, H, W), dtype=jnp.float32)
    out = jax.block_until_ready(spatial_pyramid_pooling(x))
    assert out.shape == (N, 4 * C, H, W), out.shape
    assert jnp.allclose(out, _reference(x)), "mismatch vs reference (small case)"

    # A lane-aligned channel count to exercise the 128-multiple block path.
    x2 = jax.random.normal(jax.random.PRNGKey(0), (1, 256, 8, 8),
                           dtype=jnp.float32)
    out2 = jax.block_until_ready(spatial_pyramid_pooling(x2))
    assert out2.shape == (1, 4 * 256, 8, 8), out2.shape
    assert jnp.allclose(out2, _reference(x2)), "mismatch vs reference (aligned case)"

    print("KERNEL_OK")
</pallas_src>

<mosaic_0001>
module attributes {stable_mosaic.version = 11 : i64} {
  func.func @_spp_kernel(%arg0: i32, %arg1: i32, %arg2: memref<1x4x256xf32, #tpu.memory_space<vmem>>, %arg3: memref<1x4x4x256xf32, #tpu.memory_space<vmem>>, %arg4: memref<28x32x4xf32, #tpu.memory_space<vmem>>, %arg5: memref<24x28x4xf32, #tpu.memory_space<vmem>>, %arg6: memref<20x24x4xf32, #tpu.memory_space<vmem>>) attributes {dimension_semantics = [#tpu.dimension_semantics<parallel>, #tpu.dimension_semantics<parallel>], iteration_bounds = array<i64: 2, 1>, scalar_prefetch = 0 : i64, scratch_operands = 3 : i64, tpu.core_type = #tpu.core_type<tc>, window_params = [{transform_indices = @transform_0, window_bounds = array<i64: 1, 4, 256>}, {transform_indices = @transform_1, window_bounds = array<i64: 1, 4, 4, 256>}]} {
    %cst = arith.constant 0xFF800000 : f32
    %0 = vector.broadcast %cst : f32 to vector<6x32x4xf32>
    %c0 = arith.constant 0 : index
    %c0_0 = arith.constant 0 : index
    %c0_1 = arith.constant 0 : index
    %1 = vector.load %arg4[%c0, %c0_0, %c0_1] : memref<28x32x4xf32, #tpu.memory_space<vmem>>, vector<6x32x4xf32>
    tpu.vector_store %arg4[%c0, %c0_0, %c0_1], %0 {strides = array<i32>} : memref<28x32x4xf32, #tpu.memory_space<vmem>>, vector<6x32x4xf32>,
    %cst_2 = arith.constant 0xFF800000 : f32
    %2 = vector.broadcast %cst_2 : f32 to vector<6x32x4xf32>
    %c22 = arith.constant 22 : index
    %c0_3 = arith.constant 0 : index
    %c0_4 = arith.constant 0 : index
    %3 = vector.load %arg4[%c22, %c0_3, %c0_4] : memref<28x32x4xf32, #tpu.memory_space<vmem>>, vector<6x32x4xf32>
    tpu.vector_store %arg4[%c22, %c0_3, %c0_4], %2 {strides = array<i32>} : memref<28x32x4xf32, #tpu.memory_space<vmem>>, vector<6x32x4xf32>,
    %cst_5 = arith.constant 0xFF800000 : f32
    %4 = vector.broadcast %cst_5 : f32 to vector<16x8x4xf32>
    %c6 = arith.constant 6 : index
    %c0_6 = arith.constant 0 : index
    %c0_7 = arith.constant 0 : index
    %5 = vector.load %arg4[%c6, %c0_6, %c0_7] : memref<28x32x4xf32, #tpu.memory_space<vmem>>, vector<16x8x4xf32>
    tpu.vector_store %arg4[%c6, %c0_6, %c0_7], %4 {strides = array<i32>} : memref<28x32x4xf32, #tpu.memory_space<vmem>>, vector<16x8x4xf32>,
    %cst_8 = arith.constant 0xFF800000 : f32
    %6 = vector.broadcast %cst_8 : f32 to vector<16x8x4xf32>
    %c6_9 = arith.constant 6 : index
    %c24 = arith.constant 24 : index
    %c0_10 = arith.constant 0 : index
    %7 = vector.load %arg4[%c6_9, %c24, %c0_10] : memref<28x32x4xf32, #tpu.memory_space<vmem>>, vector<16x8x4xf32>
    tpu.vector_store %arg4[%c6_9, %c24, %c0_10], %6 {strides = array<i32>} : memref<28x32x4xf32, #tpu.memory_space<vmem>>, vector<16x8x4xf32>,
    %c0_11 = arith.constant 0 : index
    %c0_12 = arith.constant 0 : index
    %c0_13 = arith.constant 0 : index
    %8 = vector.load %arg2[%c0_11, %c0_12, %c0_13] : memref<1x4x256xf32, #tpu.memory_space<vmem>>, vector<1x4x256xf32>
    %9 = vector.shape_cast %8 : vector<1x4x256xf32> to vector<4x256xf32>
    %10 = tpu.transpose %9, [1, 0] : vector<4x256xf32> -> vector<256x4xf32>
    %11 = vector.shape_cast %10 : vector<256x4xf32> to vector<16x16x4xf32>
    %c6_14 = arith.constant 6 : index
    %c8 = arith.constant 8 : index
    %c0_15 = arith.constant 0 : index
    %12 = vector.load %arg4[%c6_14, %c8, %c0_15] : memref<28x32x4xf32, #tpu.memory_space<vmem>>, vector<16x16x4xf32>
    tpu.vector_store %arg4[%c6_14, %c8, %c0_15], %11 {strides = array<i32>} : memref<28x32x4xf32, #tpu.memory_space<vmem>>, vector<16x16x4xf32>,
    %c2 = arith.constant 2 : index
    %c0_16 = arith.constant 0 : index
    %c0_17 = arith.constant 0 : index
    %13 = vector.load %arg4[%c2, %c0_16, %c0_17] : memref<28x32x4xf32, #tpu.memory_space<vmem>>, vector<24x32x4xf32>
    %c1 = arith.constant 1 : index
    %c0_18 = arith.constant 0 : index
    %c0_19 = arith.constant 0 : index
    %14 = vector.load %arg4[%c1, %c0_18, %c0_19] : memref<28x32x4xf32, #tpu.memory_space<vmem>>, vector<24x32x4xf32>
    %15 = arith.maximumf %13, %14 : vector<24x32x4xf32>
    %c3 = arith.constant 3 : index
    %c0_20 = arith.constant 0 : index
    %c0_21 = arith.constant 0 : index
    %16 = vector.load %arg4[%c3, %c0_20, %c0_21] : memref<28x32x4xf32, #tpu.memory_space<vmem>>, vector<24x32x4xf32>
    %17 = arith.maximumf %15, %16 : vector<24x32x4xf32>
    %c0_22 = arith.constant 0 : index
    %c0_23 = arith.constant 0 : index
    %c0_24 = arith.constant 0 : index
    %18 = vector.load %arg4[%c0_22, %c0_23, %c0_24] : memref<28x32x4xf32, #tpu.memory_space<vmem>>, vector<24x32x4xf32>
    %19 = arith.maximumf %17, %18 : vector<24x32x4xf32>
    %c4 = arith.constant 4 : index
    %c0_25 = arith.constant 0 : index
    %c0_26 = arith.constant 0 : index
    %20 = vector.load %arg4[%c4, %c0_25, %c0_26] : memref<28x32x4xf32, #tpu.memory_space<vmem>>, vector<24x32x4xf32>
    %21 = arith.maximumf %19, %20 : vector<24x32x4xf32>
    %22 = vector.extract_strided_slice %21 {offsets = [0, 2, 0], sizes = [24, 28, 4], strides = [1, 1, 1]} : vector<24x32x4xf32> to vector<24x28x4xf32>
    %23 = vector.extract_strided_slice %21 {offsets = [0, 1, 0], sizes = [24, 28, 4], strides = [1, 1, 1]} : vector<24x32x4xf32> to vector<24x28x4xf32>
    %24 = arith.maximumf %22, %23 : vector<24x28x4xf32>
    %25 = vector.extract_strided_slice %21 {offsets = [0, 3, 0], sizes = [24, 28, 4], strides = [1, 1, 1]} : vector<24x32x4xf32> to vector<24x28x4xf32>
    %26 = arith.maximumf %24, %25 : vector<24x28x4xf32>
    %27 = vector.extract_strided_slice %21 {offsets = [0, 0, 0], sizes = [24, 28, 4], strides = [1, 1, 1]} : vector<24x32x4xf32> to vector<24x28x4xf32>
    %28 = arith.maximumf %26, %27 : vector<24x28x4xf32>
    %29 = vector.extract_strided_slice %21 {offsets = [0, 4, 0], sizes = [24, 28, 4], strides = [1, 1, 1]} : vector<24x32x4xf32> to vector<24x28x4xf32>
    %30 = arith.maximumf %28, %29 : vector<24x28x4xf32>
    %c0_27 = arith.constant 0 : index
    %c0_28 = arith.constant 0 : index
    %c0_29 = arith.constant 0 : index
    %31 = vector.load %arg5[%c0_27, %c0_28, %c0_29] : memref<24x28x4xf32, #tpu.memory_space<vmem>>, vector<24x28x4xf32>
    tpu.vector_store %arg5[%c0_27, %c0_28, %c0_29], %30 {strides = array<i32>} : memref<24x28x4xf32, #tpu.memory_space<vmem>>, vector<24x28x4xf32>,
    %c2_30 = arith.constant 2 : index
    %c0_31 = arith.constant 0 : index
    %c0_32 = arith.constant 0 : index
    %32 = vector.load %arg5[%c2_30, %c0_31, %c0_32] : memref<24x28x4xf32, #tpu.memory_space<vmem>>, vector<20x28x4xf32>
    %c1_33 = arith.constant 1 : index
    %c0_34 = arith.constant 0 : index
    %c0_35 = arith.constant 0 : index
    %33 = vector.load %arg5[%c1_33, %c0_34, %c0_35] : memref<24x28x4xf32, #tpu.memory_space<vmem>>, vector<20x28x4xf32>
    %34 = arith.maximumf %32, %33 : vector<20x28x4xf32>
    %c3_36 = arith.constant 3 : index
    %c0_37 = arith.constant 0 : index
    %c0_38 = arith.constant 0 : index
    %35 = vector.load %arg5[%c3_36, %c0_37, %c0_38] : memref<24x28x4xf32, #tpu.memory_space<vmem>>, vector<20x28x4xf32>
    %36 = arith.maximumf %34, %35 : vector<20x28x4xf32>
    %c0_39 = arith.constant 0 : index
    %c0_40 = arith.constant 0 : index
    %c0_41 = arith.constant 0 : index
    %37 = vector.load %arg5[%c0_39, %c0_40, %c0_41] : memref<24x28x4xf32, #tpu.memory_space<vmem>>, vector<20x28x4xf32>
    %38 = arith.maximumf %36, %37 : vector<20x28x4xf32>
    %c4_42 = arith.constant 4 : index
    %c0_43 = arith.constant 0 : index
    %c0_44 = arith.constant 0 : index
    %39 = vector.load %arg5[%c4_42, %c0_43, %c0_44] : memref<24x28x4xf32, #tpu.memory_space<vmem>>, vector<20x28x4xf32>
    %40 = arith.maximumf %38, %39 : vector<20x28x4xf32>
    %41 = vector.extract_strided_slice %40 {offsets = [0, 2, 0], sizes = [20, 24, 4], strides = [1, 1, 1]} : vector<20x28x4xf32> to vector<20x24x4xf32>
    %42 = vector.extract_strided_slice %40 {offsets = [0, 1, 0], sizes = [20, 24, 4], strides = [1, 1, 1]} : vector<20x28x4xf32> to vector<20x24x4xf32>
    %43 = arith.maximumf %41, %42 : vector<20x24x4xf32>
    %44 = vector.extract_strided_slice %40 {offsets = [0, 3, 0], sizes = [20, 24, 4], strides = [1, 1, 1]} : vector<20x28x4xf32> to vector<20x24x4xf32>
    %45 = arith.maximumf %43, %44 : vector<20x24x4xf32>
    %46 = vector.extract_strided_slice %40 {offsets = [0, 0, 0], sizes = [20, 24, 4], strides = [1, 1, 1]} : vector<20x28x4xf32> to vector<20x24x4xf32>
    %47 = arith.maximumf %45, %46 : vector<20x24x4xf32>
    %48 = vector.extract_strided_slice %40 {offsets = [0, 4, 0], sizes = [20, 24, 4], strides = [1, 1, 1]} : vector<20x28x4xf32> to vector<20x24x4xf32>
    %49 = arith.maximumf %47, %48 : vector<20x24x4xf32>
    %c0_45 = arith.constant 0 : index
    %c0_46 = arith.constant 0 : index
    %c0_47 = arith.constant 0 : index
    %50 = vector.load %arg6[%c0_45, %c0_46, %c0_47] : memref<20x24x4xf32, #tpu.memory_space<vmem>>, vector<20x24x4xf32>
    tpu.vector_store %arg6[%c0_45, %c0_46, %c0_47], %49 {strides = array<i32>} : memref<20x24x4xf32, #tpu.memory_space<vmem>>, vector<20x24x4xf32>,
    %c2_48 = arith.constant 2 : index
    %c0_49 = arith.constant 0 : index
    %c0_50 = arith.constant 0 : index
    %51 = vector.load %arg6[%c2_48, %c0_49, %c0_50] : memref<20x24x4xf32, #tpu.memory_space<vmem>>, vector<16x24x4xf32>
    %c1_51 = arith.constant 1 : index
    %c0_52 = arith.constant 0 : index
    %c0_53 = arith.constant 0 : index
    %52 = vector.load %arg6[%c1_51, %c0_52, %c0_53] : memref<20x24x4xf32, #tpu.memory_space<vmem>>, vector<16x24x4xf32>
    %53 = arith.maximumf %51, %52 : vector<16x24x4xf32>
    %c3_54 = arith.constant 3 : index
    %c0_55 = arith.constant 0 : index
    %c0_56 = arith.constant 0 : index
    %54 = vector.load %arg6[%c3_54, %c0_55, %c0_56] : memref<20x24x4xf32, #tpu.memory_space<vmem>>, vector<16x24x4xf32>
    %55 = arith.maximumf %53, %54 : vector<16x24x4xf32>
    %c0_57 = arith.constant 0 : index
    %c0_58 = arith.constant 0 : index
    %c0_59 = arith.constant 0 : index
    %56 = vector.load %arg6[%c0_57, %c0_58, %c0_59] : memref<20x24x4xf32, #tpu.memory_space<vmem>>, vector<16x24x4xf32>
    %57 = arith.maximumf %55, %56 : vector<16x24x4xf32>
    %c4_60 = arith.constant 4 : index
    %c0_61 = arith.constant 0 : index
    %c0_62 = arith.constant 0 : index
    %58 = vector.load %arg6[%c4_60, %c0_61, %c0_62] : memref<20x24x4xf32, #tpu.memory_space<vmem>>, vector<16x24x4xf32>
    %59 = arith.maximumf %57, %58 : vector<16x24x4xf32>
    %60 = vector.extract_strided_slice %59 {offsets = [0, 2, 0], sizes = [16, 20, 4], strides = [1, 1, 1]} : vector<16x24x4xf32> to vector<16x20x4xf32>
    %61 = vector.extract_strided_slice %59 {offsets = [0, 1, 0], sizes = [16, 20, 4], strides = [1, 1, 1]} : vector<16x24x4xf32> to vector<16x20x4xf32>
    %62 = arith.maximumf %60, %61 : vector<16x20x4xf32>
    %63 = vector.extract_strided_slice %59 {offsets = [0, 3, 0], sizes = [16, 20, 4], strides = [1, 1, 1]} : vector<16x24x4xf32> to vector<16x20x4xf32>
    %64 = arith.maximumf %62, %63 : vector<16x20x4xf32>
    %65 = vector.extract_strided_slice %59 {offsets = [0, 0, 0], sizes = [16, 20, 4], strides = [1, 1, 1]} : vector<16x24x4xf32> to vector<16x20x4xf32>
    %66 = arith.maximumf %64, %65 : vector<16x20x4xf32>
    %67 = vector.extract_strided_slice %59 {offsets = [0, 4, 0], sizes = [16, 20, 4], strides = [1, 1, 1]} : vector<16x24x4xf32> to vector<16x20x4xf32>
    %68 = arith.maximumf %66, %67 : vector<16x20x4xf32>
    %c4_63 = arith.constant 4 : index
    %c6_64 = arith.constant 6 : index
    %c0_65 = arith.constant 0 : index
    %69 = vector.load %arg5[%c4_63, %c6_64, %c0_65] : memref<24x28x4xf32, #tpu.memory_space<vmem>>, vector<16x16x4xf32>
    %70 = vector.shape_cast %69 : vector<16x16x4xf32> to vector<256x4xf32>
    %71 = tpu.transpose %70, [1, 0] : vector<256x4xf32> -> vector<4x256xf32>
    %c0_66 = arith.constant 0 : index
    %c0_67 = arith.constant 0 : index
    %c0_68 = arith.constant 0 : index
    %c0_69 = arith.constant 0 : index
    %72 = vector.load %arg3[%c0_66, %c0_67, %c0_68, %c0_69] : memref<1x4x4x256xf32, #tpu.memory_space<vmem>>, vector<1x1x4x256xf32>
    %73 = vector.shape_cast %72 : vector<1x1x4x256xf32> to vector<4x256xf32>
    %74 = vector.shape_cast %71 : vector<4x256xf32> to vector<1x1x4x256xf32>
    tpu.vector_store %arg3[%c0_66, %c0_67, %c0_68, %c0_69], %74 {strides = array<i32>} : memref<1x4x4x256xf32, #tpu.memory_space<vmem>>, vector<1x1x4x256xf32>,
    %c2_70 = arith.constant 2 : index
    %c4_71 = arith.constant 4 : index
    %c0_72 = arith.constant 0 : index
    %75 = vector.load %arg6[%c2_70, %c4_71, %c0_72] : memref<20x24x4xf32, #tpu.memory_space<vmem>>, vector<16x16x4xf32>
    %76 = vector.shape_cast %75 : vector<16x16x4xf32> to vector<256x4xf32>
    %77 = tpu.transpose %76, [1, 0] : vector<256x4xf32> -> vector<4x256xf32>
    %c0_73 = arith.constant 0 : index
    %c1_74 = arith.constant 1 : index
    %c0_75 = arith.constant 0 : index
    %c0_76 = arith.constant 0 : index
    %78 = vector.load %arg3[%c0_73, %c1_74, %c0_75, %c0_76] : memref<1x4x4x256xf32, #tpu.memory_space<vmem>>, vector<1x1x4x256xf32>
    %79 = vector.shape_cast %78 : vector<1x1x4x256xf32> to vector<4x256xf32>
    %80 = vector.shape_cast %77 : vector<4x256xf32> to vector<1x1x4x256xf32>
    tpu.vector_store %arg3[%c0_73, %c1_74, %c0_75, %c0_76], %80 {strides = array<i32>} : memref<1x4x4x256xf32, #tpu.memory_space<vmem>>, vector<1x1x4x256xf32>,
    %81 = vector.extract_strided_slice %68 {offsets = [0, 2, 0], sizes = [16, 16, 4], strides = [1, 1, 1]} : vector<16x20x4xf32> to vector<16x16x4xf32>
    %82 = vector.shape_cast %81 : vector<16x16x4xf32> to vector<256x4xf32>
    %83 = tpu.transpose %82, [1, 0] : vector<256x4xf32> -> vector<4x256xf32>
    %c0_77 = arith.constant 0 : index
    %c2_78 = arith.constant 2 : index
    %c0_79 = arith.constant 0 : index
    %c0_80 = arith.constant 0 : index
    %84 = vector.load %arg3[%c0_77, %c2_78, %c0_79, %c0_80] : memref<1x4x4x256xf32, #tpu.memory_space<vmem>>, vector<1x1x4x256xf32>
    %85 = vector.shape_cast %84 : vector<1x1x4x256xf32> to vector<4x256xf32>
    %86 = vector.shape_cast %83 : vector<4x256xf32> to vector<1x1x4x256xf32>
    tpu.vector_store %arg3[%c0_77, %c2_78, %c0_79, %c0_80], %86 {strides = array<i32>} : memref<1x4x4x256xf32, #tpu.memory_space<vmem>>, vector<1x1x4x256xf32>,
    %c0_81 = arith.constant 0 : index
    %c0_82 = arith.constant 0 : index
    %c0_83 = arith.constant 0 : index
    %87 = vector.load %arg2[%c0_81, %c0_82, %c0_83] : memref<1x4x256xf32, #tpu.memory_space<vmem>>, vector<1x4x256xf32>
    %88 = vector.shape_cast %87 : vector<1x4x256xf32> to vector<4x256xf32>
    %c0_84 = arith.constant 0 : index
    %c3_85 = arith.constant 3 : index
    %c0_86 = arith.constant 0 : index
    %c0_87 = arith.constant 0 : index
    %89 = vector.load %arg3[%c0_84, %c3_85, %c0_86, %c0_87] : memref<1x4x4x256xf32, #tpu.memory_space<vmem>>, vector<1x1x4x256xf32>
    %90 = vector.shape_cast %89 : vector<1x1x4x256xf32> to vector<4x256xf32>
    %91 = vector.shape_cast %88 : vector<4x256xf32> to vector<1x1x4x256xf32>
    tpu.vector_store %arg3[%c0_84, %c3_85, %c0_86, %c0_87], %91 {strides = array<i32>} : memref<1x4x4x256xf32, #tpu.memory_space<vmem>>, vector<1x1x4x256xf32>,
    return
  }
  func.func @transform_0(%arg0: i32, %arg1: i32) -> (i32, i32, i32) {
    %c0_i32 = arith.constant 0 : i32
    %c0_i32_0 = arith.constant 0 : i32
    return %arg0, %arg1, %c0_i32 : i32, i32, i32
  }
  func.func @transform_1(%arg0: i32, %arg1: i32) -> (i32, i32, i32, i32) {
    %c0_i32 = arith.constant 0 : i32
    %c0_i32_0 = arith.constant 0 : i32
    %c0_i32_1 = arith.constant 0 : i32
    return %arg0, %c0_i32, %arg1, %c0_i32_0 : i32, i32, i32, i32
  }
}

</mosaic_0001>

<llo_original>
// kernel: tpu_custom_call.1
$region0: #{tpu_custom_call.1}
  #allocation0 [shape = 'u32[]', space=smem, size = 0x4, offset = 0x4, fixed_abs, tag = 'smem constant byte address 0x4 - core index']
  #allocation1 [shape = 'u32[144,128]{1,0:T(1,128)}', space=vmem, size = 0x12000, scoped, tag = 'internal scratch']
  #allocation2 [shape = 'f32[28,32,4]{2,1,0:T(8,128)}', space=vmem, size = 0x70000, scoped, tag = 'scratch operand']
  #allocation3 [shape = 'f32[24,28,4]{2,1,0:T(8,128)}', space=vmem, size = 0x60000, scoped, tag = 'scratch operand']
  #allocation4 [shape = 'f32[20,24,4]{2,1,0:T(8,128)}', space=vmem, size = 0x3c000, scoped, tag = 'scratch operand']
  %s0 = inlined_call_operand.hbm [shape: f32[2,4,256], index: 0, kind: input, shape index: {}]
  %s1 = inlined_call_operand.hbm [shape: f32[2,4,4,256], index: 1, kind: output, shape index: {}]
  %s2 = sld [smem:[#allocation0]]
  $region41: #{tpu_custom_call.1} parent=0
    _
  %s4 = ssub.s32 1, %s2
  %s5 = scalar_select 0, %s4, %s2
  $region1: #{tpu_custom_call.1} parent=0
    #allocation5 [shape = 'u8[8192]{0}', space=vmem, size = 0x2000, scoped, tag = 'input window, operand 0']
    #allocation6 [shape = 's32[2]{0}', space=sflag, size = 0x8, scoped, tag = 'scoped memory for tpu_custom_call.1']
    #allocation7 [shape = 's32[2]{0}', space=sflag, size = 0x8, scoped, tag = 'scoped memory for tpu_custom_call.1']
    #allocation8 [shape = 'u8[32768]{0}', space=vmem, size = 0x8000, scoped, tag = 'output window, operand 0']
    %6 = vsyncpa [#allocation6], 0
    %s7 = scalar_lea.sflag [#allocation6], 1
    %8 = vsyncpa %s7, 0
    %9 = vsyncpa [#allocation7], 0
    %s10 = scalar_lea.sflag [#allocation7], 1
    %11 = vsyncpa %s10, 0
    loop: start=0, step=1, limit=4
    $region2: #{tpu_custom_call.1} parent=1 // loop_pre_header
      _
    $region3: #{tpu_custom_call.1} parent=1 // loop_header
      %s13 = sphi 0, %s17
      %p14 = scmp.ge.s32.totalorder %s13, 4
      %s20 = sphi 0, %s32
      %s21 = sphi 0, %s28
      %s22 = sphi 0, %s20
      %s23 = sphi 0, %s21
      %s24 = sphi 0, %s22
      %s25 = sphi 0, %s23
      %s37 = sphi 0, %s39
      %s40 = sphi 0, %s37
      %s41 = sphi 0, %s40
      %s57 = sphi 0, %s41
      %s65 = sphi 0, %s67
      %s68 = sphi 0, %s65
      %s69 = sphi 0, %s68
      %s85 = sphi 0, %s69
    $region4: #{tpu_custom_call.1} parent=1 // loop_header_branch
      %16 = sbr.rel (%p14) target = $region8
    $region5: #{tpu_custom_call.1} parent=1 // loop_body
      %s18 = ssub.s32 %s13, 1
      %s19 = ssub.s32 %s13, 2
      %s26 = sadd.s32 1, %s21
      %p27 = scmp.ge.s32.totalorder %s26, 1
      %s28 = scalar_select %p27, 0, %s26
      %s29 = sadd.s32 1, %s20
      %s30 = scalar_select %p27, %s29, %s20
      %p31 = scmp.ge.s32.totalorder %s30, 2
      %s32 = scalar_select %p31, 0, %s30
      %s33 = ssub.s32 %s20, %s32
      %s34 = ssub.s32 %s21, %s28
      %s35 = sor.u32 %s33, %s34
      %p36 = scmp.eq.s32.totalorder %s35, 0
      %s38 = sadd.s32 %s37, 1
      %s39 = scalar_select %p36, %s37, %s38
      %p42 = pneg %p36
      %p43 = scmp.eq.s32.totalorder %s13, 1
      %p44 = por %p42, %p43
      %p45 = scmp.ne.s32.totalorder %s37, %s40
      %p46 = scmp.eq.s32.totalorder %s13, 0
      %p47 = por %p45, %p46
      %p48 = scmp.ne.s32.totalorder %s37, %s40
      %p49 = scmp.eq.s32.totalorder %s18, 1
      %p50 = por %p48, %p49
      %p51 = scmp.ne.s32.totalorder %s40, %s41
      %p52 = scmp.eq.s32.totalorder %s18, 0
      %p53 = por %p51, %p52
      %p54 = scmp.ne.s32.totalorder %s40, %s41
      %p55 = scmp.eq.s32.totalorder %s19, 1
      %p56 = por %p54, %p55
      %p58 = scmp.ne.s32.totalorder %s41, %s57
      %p59 = scmp.eq.s32.totalorder %s19, 0
      %p60 = por %p58, %p59
      %s61 = ssub.s32 %s20, %s32
      %s62 = ssub.s32 %s21, %s28
      %s63 = sor.u32 %s61, %s62
      %p64 = scmp.eq.s32.totalorder %s63, 0
      %s66 = sadd.s32 %s65, 1
      %s67 = scalar_select %p64, %s65, %s66
      %p70 = pneg %p64
      %p71 = scmp.eq.s32.totalorder %s13, 1
      %p72 = por %p70, %p71
      %p73 = scmp.ne.s32.totalorder %s65, %s68
      %p74 = scmp.eq.s32.totalorder %s13, 0
      %p75 = por %p73, %p74
      %p76 = scmp.ne.s32.totalorder %s65, %s68
      %p77 = scmp.eq.s32.totalorder %s18, 1
      %p78 = por %p76, %p77
      %p79 = scmp.ne.s32.totalorder %s68, %s69
      %p80 = scmp.eq.s32.totalorder %s18, 0
      %p81 = por %p79, %p80
      %p82 = scmp.ne.s32.totalorder %s68, %s69
      %p83 = scmp.eq.s32.totalorder %s19, 1
      %p84 = por %p82, %p83
      %p86 = scmp.ne.s32.totalorder %s69, %s85
      %p87 = scmp.eq.s32.totalorder %s19, 0
      %p88 = por %p86, %p87
      %p89 = scmp.le.s32.totalorder 1, %s13
      %p90 = scmp.lt.s32.totalorder %s13, 3
      %p91 = pnand %p89, %p90
      %p92 = pneg %p91
      // Predicated region
      $region9: #{tpu_custom_call.1} parent=5 // pred_check
        _
      $region10: #{tpu_custom_call.1} parent=5 // pred_check_branch
        %94 = sbr.rel (%p91) target = $region12
      $region11: #{tpu_custom_call.1} parent=5 // pred_region
        %s95 = ssub.s32 %s13, 1
      $region12: #{tpu_custom_call.1} parent=5 // pred_fallthru
        _
      %p96 = scmp.lt.s32.totalorder %s13, 2
      // Predicated region
      $region13: #{tpu_custom_call.1} parent=5 // pred_check
        %p97 = pneg %p96
      $region14: #{tpu_custom_call.1} parent=5 // pred_check_branch
        %99 = sbr.rel (%p97) target = $region16
      $region15: #{tpu_custom_call.1} parent=5 // pred_region
        // Predicated region
        $region17: #{tpu_custom_call.1} parent=15 // pred_check
          %p100 = pneg %p47
        $region18: #{tpu_custom_call.1} parent=15 // pred_check_branch
          %102 = sbr.rel (%p100) target = $region20
        $region19: #{tpu_custom_call.1} parent=15 // pred_region
          %s103 = sand.u32 %s37, 1
          %s104 = scalar_lea.sflag [#allocation6], %s103
          %s105 = sand.u32 %s37, 1
          %s106 = smul.addr %s105, 8
          %s107 = scalar_lea.vmem [#allocation5], %s106
          %s109 = ssub.s32 128, 128
          %110 = vsyncadd %s104, %s109
          %s111 = smul.addr %s21, 2
          %s112 = smul.addr %s20, 2
          %s113 = sadd.s32 %s111, %s112
          %s114 = smul.addr %s113, 64
          %s115 = scalar_lea.hbm %s0, %s114
          %s117 = sshll.u32 %s107, 4
          %s118 = int_to_ptr.vmem [resolvable:$true] %s117
          %120 = dma.hbm_to_vmem [thread:$0]  %s115, 128, %s118, %s104
        $region20: #{tpu_custom_call.1} parent=15 // pred_fallthru
          _
      $region16: #{tpu_custom_call.1} parent=5 // pred_fallthru
        _
      %p121 = scmp.le.s32.totalorder 1, %s13
      %p122 = scmp.lt.s32.totalorder %s13, 3
      %p123 = pnand %p121, %p122
      %p124 = pneg %p123
      // Predicated region
      $region21: #{tpu_custom_call.1} parent=5 // pred_check
        _
      $region22: #{tpu_custom_call.1} parent=5 // pred_check_branch
        %126 = sbr.rel (%p123) target = $region24
      $region23: #{tpu_custom_call.1} parent=5 // pred_region
        %s127 = ssub.s32 %s13, 1
        %s128 = sand.u32 %s40, 1
        %s129 = scalar_lea.sflag [#allocation6], %s128
        %s130 = sand.u32 %s40, 1
        %s131 = smul.addr %s130, 8
        %s132 = scalar_lea.vmem [#allocation5], %s131
        // Predicated region
        $region25: #{tpu_custom_call.1} parent=23 // pred_check
          %p133 = pneg %p53
        $region26: #{tpu_custom_call.1} parent=23 // pred_check_branch
          %135 = sbr.rel (%p133) target = $region28
        $region27: #{tpu_custom_call.1} parent=23 // pred_region
          %136 = dma.done %s129, 128
        $region28: #{tpu_custom_call.1} parent=23 // pred_fallthru
          _
        %s137 = sand.u32 %s40, 1
        %s138 = scalar_lea.sflag [#allocation6], %s137
        %s139 = sand.u32 %s40, 1
        %s140 = smul.addr %s139, 8
        %s141 = scalar_lea.vmem [#allocation5], %s140
        %p142 = pneg %p53
        %p143 = pneg %p50
        %p144 = pneg %p81
        %p145 = pneg %p78
        %s146 = sand.u32 %s68, 1
        %s147 = scalar_lea.sflag [#allocation7], %s146
        %s148 = sand.u32 %s68, 1
        %s149 = smul.addr %s148, 32
        %s150 = scalar_lea.vmem [#allocation8], %s149
        %vm151 = vcmask 31744
        %152 = vst.msk [vmem:[#allocation2] sm:$0xff] %vm151, -inf
        %153 = vst.msk [vmem:[#allocation2 + $0x8] sm:$0xff] %vm151, -inf
        %154 = vst.msk [vmem:[#allocation2 + $0x10] sm:$0xff] %vm151, -inf
        %155 = vst.msk [vmem:[#allocation2 + $0x18] sm:$0xff] %vm151, -inf
        %156 = vst.msk [vmem:[#allocation2 + $0x20] sm:$0xff] %vm151, -inf
        %157 = vst.msk [vmem:[#allocation2 + $0x28] sm:$0xff] %vm151, -inf
        %158 = vst.msk [vmem:[#allocation2 + $0x30] sm:$0xff] %vm151, -inf
        %159 = vst.msk [vmem:[#allocation2 + $0x38] sm:$0xff] %vm151, -inf
        %160 = vst.msk [vmem:[#allocation2 + $0x40] sm:$0xff] %vm151, -inf
        %161 = vst.msk [vmem:[#allocation2 + $0x48] sm:$0xff] %vm151, -inf
        %162 = vst.msk [vmem:[#allocation2 + $0x50] sm:$0xff] %vm151, -inf
        %163 = vst.msk [vmem:[#allocation2 + $0x58] sm:$0xff] %vm151, -inf
        %164 = vst.msk [vmem:[#allocation2 + $0x60] sm:$0xff] %vm151, -inf
        %165 = vst.msk [vmem:[#allocation2 + $0x68] sm:$0xff] %vm151, -inf
        %166 = vst.msk [vmem:[#allocation2 + $0x70] sm:$0xff] %vm151, -inf
        %167 = vst.msk [vmem:[#allocation2 + $0x78] sm:$0xff] %vm151, -inf
        %168 = vst.msk [vmem:[#allocation2 + $0x80] sm:$0xff] %vm151, -inf
        %169 = vst.msk [vmem:[#allocation2 + $0x88] sm:$0xff] %vm151, -inf
        %170 = vst.msk [vmem:[#allocation2 + $0x90] sm:$0xff] %vm151, -inf
        %171 = vst.msk [vmem:[#allocation2 + $0x98] sm:$0xff] %vm151, -inf
        %172 = vst.msk [vmem:[#allocation2 + $0xa0] sm:$0xff] %vm151, -inf
        %173 = vst.msk [vmem:[#allocation2 + $0xa8] sm:$0xff] %vm151, -inf
        %174 = vst.msk [vmem:[#allocation2 + $0xb0] sm:$0xff] %vm151, -inf
        %175 = vst.msk [vmem:[#allocation2 + $0xb8] sm:$0xff] %vm151, -inf
        %s176 = scalar_lea.vmem [#allocation2], 704
        %177 = vst.msk [vmem:[%s176] sm:$0xff] %vm151, -inf
        %178 = vst.msk [vmem:[%s176 + $0x8] sm:$0xff] %vm151, -inf
        %179 = vst.msk [vmem:[%s176 + $0x10] sm:$0xff] %vm151, -inf
        %180 = vst.msk [vmem:[%s176 + $0x18] sm:$0xff] %vm151, -inf
        %181 = vst.msk [vmem:[%s176 + $0x20] sm:$0xff] %vm151, -inf
        %182 = vst.msk [vmem:[%s176 + $0x28] sm:$0xff] %vm151, -inf
        %183 = vst.msk [vmem:[%s176 + $0x30] sm:$0xff] %vm151, -inf
        %184 = vst.msk [vmem:[%s176 + $0x38] sm:$0xff] %vm151, -inf
        %185 = vst.msk [vmem:[%s176 + $0x40] sm:$0xff] %vm151, -inf
        %186 = vst.msk [vmem:[%s176 + $0x48] sm:$0xff] %vm151, -inf
        %187 = vst.msk [vmem:[%s176 + $0x50] sm:$0xff] %vm151, -inf
        %188 = vst.msk [vmem:[%s176 + $0x58] sm:$0xff] %vm151, -inf
        %189 = vst.msk [vmem:[%s176 + $0x60] sm:$0xff] %vm151, -inf
        %190 = vst.msk [vmem:[%s176 + $0x68] sm:$0xff] %vm151, -inf
        %191 = vst.msk [vmem:[%s176 + $0x70] sm:$0xff] %vm151, -inf
        %192 = vst.msk [vmem:[%s176 + $0x78] sm:$0xff] %vm151, -inf
        %193 = vst.msk [vmem:[%s176 + $0x80] sm:$0xff] %vm151, -inf
        %194 = vst.msk [vmem:[%s176 + $0x88] sm:$0xff] %vm151, -inf
        %195 = vst.msk [vmem:[%s176 + $0x90] sm:$0xff] %vm151, -inf
        %196 = vst.msk [vmem:[%s176 + $0x98] sm:$0xff] %vm151, -inf
        %197 = vst.msk [vmem:[%s176 + $0xa0] sm:$0xff] %vm151, -inf
        %198 = vst.msk [vmem:[%s176 + $0xa8] sm:$0xff] %vm151, -inf
        %199 = vst.msk [vmem:[%s176 + $0xb0] sm:$0xff] %vm151, -inf
        %200 = vst.msk [vmem:[%s176 + $0xb8] sm:$0xff] %vm151, -inf
        %s201 = scalar_lea.vmem [#allocation2], 192
        %202 = vst.msk [vmem:[%s201] sm:$0xff] %vm151, -inf
        %203 = vst.msk [vmem:[%s201 + $0x20] sm:$0xff] %vm151, -inf
        %204 = vst.msk [vmem:[%s201 + $0x40] sm:$0xff] %vm151, -inf
        %205 = vst.msk [vmem:[%s201 + $0x60] sm:$0xff] %vm151, -inf
        %206 = vst.msk [vmem:[%s201 + $0x80] sm:$0xff] %vm151, -inf
        %207 = vst.msk [vmem:[%s201 + $0xa0] sm:$0xff] %vm151, -inf
        %208 = vst.msk [vmem:[%s201 + $0xc0] sm:$0xff] %vm151, -inf
        %209 = vst.msk [vmem:[%s201 + $0xe0] sm:$0xff] %vm151, -inf
        %210 = vst.msk [vmem:[%s201 + $0x100] sm:$0xff] %vm151, -inf
        %211 = vst.msk [vmem:[%s201 + $0x120] sm:$0xff] %vm151, -inf
        %212 = vst.msk [vmem:[%s201 + $0x140] sm:$0xff] %vm151, -inf
        %213 = vst.msk [vmem:[%s201 + $0x160] sm:$0xff] %vm151, -inf
        %214 = vst.msk [vmem:[%s201 + $0x180] sm:$0xff] %vm151, -inf
        %215 = vst.msk [vmem:[%s201 + $0x1a0] sm:$0xff] %vm151, -inf
        %216 = vst.msk [vmem:[%s201 + $0x1c0] sm:$0xff] %vm151, -inf
        %217 = vst.msk [vmem:[%s201 + $0x1e0] sm:$0xff] %vm151, -inf
        %218 = vst.msk [vmem:[%s201 + $0x18] sm:$0xff] %vm151, -inf
        %219 = vst.msk [vmem:[%s201 + $0x38] sm:$0xff] %vm151, -inf
        %220 = vst.msk [vmem:[%s201 + $0x58] sm:$0xff] %vm151, -inf
        %221 = vst.msk [vmem:[%s201 + $0x78] sm:$0xff] %vm151, -inf
        %222 = vst.msk [vmem:[%s201 + $0x98] sm:$0xff] %vm151, -inf
        %223 = vst.msk [vmem:[%s201 + $0xb8] sm:$0xff] %vm151, -inf
        %224 = vst.msk [vmem:[%s201 + $0xd8] sm:$0xff] %vm151, -inf
        %225 = vst.msk [vmem:[%s201 + $0xf8] sm:$0xff] %vm151, -inf
        %226 = vst.msk [vmem:[%s201 + $0x118] sm:$0xff] %vm151, -inf
        %227 = vst.msk [vmem:[%s201 + $0x138] sm:$0xff] %vm151, -inf
        %228 = vst.msk [vmem:[%s201 + $0x158] sm:$0xff] %vm151, -inf
        %229 = vst.msk [vmem:[%s201 + $0x178] sm:$0xff] %vm151, -inf
        %230 = vst.msk [vmem:[%s201 + $0x198] sm:$0xff] %vm151, -inf
        %231 = vst.msk [vmem:[%s201 + $0x1b8] sm:$0xff] %vm151, -inf
        %232 = vst.msk [vmem:[%s201 + $0x1d8] sm:$0xff] %vm151, -inf
        %233 = vst.msk [vmem:[%s201 + $0x1f8] sm:$0xff] %vm151, -inf
        %v234 = vld [vmem:[%s132] sm:$0xff]
        %v236 = vcombine.high %v234, %v234
        %238 = vxpose.xlu0.b32.start [1/16] %v234, 128
        %239 = vxpose.xlu0.b32.cont [2/16] 0.0, 128
        %240 = vxpose.xlu0.b32.cont [3/16] 0.0, 128
        %241 = vxpose.xlu0.b32.cont [4/16] 0.0, 128
        %242 = vxpose.xlu0.b32.cont [5/16] 0.0, 128
        %243 = vxpose.xlu0.b32.cont [6/16] 0.0, 128
        %244 = vxpose.xlu0.b32.cont [7/16] 0.0, 128
        %245 = vxpose.xlu0.b32.cont [8/16] 0.0, 128
        %246 = vxpose.xlu0.b32.cont [9/16] 0.0, 128
        %247 = vxpose.xlu0.b32.cont [10/16] 0.0, 128
        %248 = vxpose.xlu0.b32.cont [11/16] 0.0, 128
        %249 = vxpose.xlu0.b32.cont [12/16] 0.0, 128
        %250 = vxpose.xlu0.b32.cont [13/16] 0.0, 128
        %251 = vxpose.xlu0.b32.cont [14/16] 0.0, 128
        %252 = vxpose.xlu0.b32.cont [15/16] 0.0, 128
        %253 = vxpose.xlu0.b32.end [16/16] 0.0, 128
        %v254 = vpop.trf.xlu0
        %v255 = vpop.trf.xlu0
        %v256 = vpop.trf.xlu0
        %v257 = vpop.trf.xlu0
        %v258 = vpop.trf.xlu0
        %v259 = vpop.trf.xlu0
        %v260 = vpop.trf.xlu0
        %v261 = vpop.trf.xlu0
        %v262 = vpop.trf.xlu0
        %v263 = vpop.trf.xlu0
        %v264 = vpop.trf.xlu0
        %v265 = vpop.trf.xlu0
        %v266 = vpop.trf.xlu0
        %v267 = vpop.trf.xlu0
        %v268 = vpop.trf.xlu0
        %v269 = vpop.trf.xlu0
        %270 = vxpose.xlu0.b32.start [1/16] %v236, 128
        %271 = vxpose.xlu0.b32.cont [2/16] 0.0, 128
        %272 = vxpose.xlu0.b32.cont [3/16] 0.0, 128
        %273 = vxpose.xlu0.b32.cont [4/16] 0.0, 128
        %274 = vxpose.xlu0.b32.cont [5/16] 0.0, 128
        %275 = vxpose.xlu0.b32.cont [6/16] 0.0, 128
        %276 = vxpose.xlu0.b32.cont [7/16] 0.0, 128
        %277 = vxpose.xlu0.b32.cont [8/16] 0.0, 128
        %278 = vxpose.xlu0.b32.cont [9/16] 0.0, 128
        %279 = vxpose.xlu0.b32.cont [10/16] 0.0, 128
        %280 = vxpose.xlu0.b32.cont [11/16] 0.0, 128
        %281 = vxpose.xlu0.b32.cont [12/16] 0.0, 128
        %282 = vxpose.xlu0.b32.cont [13/16] 0.0, 128
        %283 = vxpose.xlu0.b32.cont [14/16] 0.0, 128
        %284 = vxpose.xlu0.b32.cont [15/16] 0.0, 128
        %285 = vxpose.xlu0.b32.end [16/16] 0.0, 128
        %v286 = vpop.trf.xlu0
        %v287 = vpop.trf.xlu0
        %v288 = vpop.trf.xlu0
        %v289 = vpop.trf.xlu0
        %v290 = vpop.trf.xlu0
        %v291 = vpop.trf.xlu0
        %v292 = vpop.trf.xlu0
        %v293 = vpop.trf.xlu0
        %v294 = vpop.trf.xlu0
        %v295 = vpop.trf.xlu0
        %v296 = vpop.trf.xlu0
        %v297 = vpop.trf.xlu0
        %v298 = vpop.trf.xlu0
        %v299 = vpop.trf.xlu0
        %v300 = vpop.trf.xlu0
        %v301 = vpop.trf.xlu0
        %302 = vst.msk [vmem:[%s201 + $0x8] sm:$0xff] %vm151, %v254
        %303 = vst.msk [vmem:[%s201 + $0x10] sm:$0xff] %vm151, %v255
        %304 = vst.msk [vmem:[%s201 + $0x28] sm:$0xff] %vm151, %v256
        %305 = vst.msk [vmem:[%s201 + $0x30] sm:$0xff] %vm151, %v257
        %306 = vst.msk [vmem:[%s201 + $0x48] sm:$0xff] %vm151, %v258
        %307 = vst.msk [vmem:[%s201 + $0x50] sm:$0xff] %vm151, %v259
        %308 = vst.msk [vmem:[%s201 + $0x68] sm:$0xff] %vm151, %v260
        %309 = vst.msk [vmem:[%s201 + $0x70] sm:$0xff] %vm151, %v261
        %310 = vst.msk [vmem:[%s201 + $0x88] sm:$0xff] %vm151, %v262
        %311 = vst.msk [vmem:[%s201 + $0x90] sm:$0xff] %vm151, %v263
        %312 = vst.msk [vmem:[%s201 + $0xa8] sm:$0xff] %vm151, %v264
        %313 = vst.msk [vmem:[%s201 + $0xb0] sm:$0xff] %vm151, %v265
        %314 = vst.msk [vmem:[%s201 + $0xc8] sm:$0xff] %vm151, %v266
        %315 = vst.msk [vmem:[%s201 + $0xd0] sm:$0xff] %vm151, %v267
        %316 = vst.msk [vmem:[%s201 + $0xe8] sm:$0xff] %vm151, %v268
        %317 = vst.msk [vmem:[%s201 + $0xf0] sm:$0xff] %vm151, %v269
        %318 = vst.msk [vmem:[%s201 + $0x108] sm:$0xff] %vm151, %v286
        %319 = vst.msk [vmem:[%s201 + $0x110] sm:$0xff] %vm151, %v287
        %320 = vst.msk [vmem:[%s201 + $0x128] sm:$0xff] %vm151, %v288
        %321 = vst.msk [vmem:[%s201 + $0x130] sm:$0xff] %vm151, %v289
        %322 = vst.msk [vmem:[%s201 + $0x148] sm:$0xff] %vm151, %v290
        %323 = vst.msk [vmem:[%s201 + $0x150] sm:$0xff] %vm151, %v291
        %324 = vst.msk [vmem:[%s201 + $0x168] sm:$0xff] %vm151, %v292
        %325 = vst.msk [vmem:[%s201 + $0x170] sm:$0xff] %vm151, %v293
        %326 = vst.msk [vmem:[%s201 + $0x188] sm:$0xff] %vm151, %v294
        %327 = vst.msk [vmem:[%s201 + $0x190] sm:$0xff] %vm151, %v295
        %328 = vst.msk [vmem:[%s201 + $0x1a8] sm:$0xff] %vm151, %v296
        %329 = vst.msk [vmem:[%s201 + $0x1b0] sm:$0xff] %vm151, %v297
        %330 = vst.msk [vmem:[%s201 + $0x1c8] sm:$0xff] %vm151, %v298
        %331 = vst.msk [vmem:[%s201 + $0x1d0] sm:$0xff] %vm151, %v299
        %332 = vst.msk [vmem:[%s201 + $0x1e8] sm:$0xff] %vm151, %v300
        %333 = vst.msk [vmem:[%s201 + $0x1f0] sm:$0xff] %vm151, %v301
        %s334 = scalar_lea.vmem [#allocation2], 64
        %v335 = vld [vmem:[%s334] sm:$0xff]
        %v336 = vld [vmem:[%s334 + $0x8] sm:$0xff]
        %v337 = vld [vmem:[%s334 + $0x10] sm:$0xff]
        %v338 = vld [vmem:[%s334 + $0x18] sm:$0xff]
        %v339 = vld [vmem:[%s334 + $0x20] sm:$0xff]
        %v340 = vld [vmem:[%s334 + $0x28] sm:$0xff]
        %v341 = vld [vmem:[%s334 + $0x30] sm:$0xff]
        %v342 = vld [vmem:[%s334 + $0x38] sm:$0xff]
        %v343 = vld [vmem:[%s334 + $0x40] sm:$0xff]
        %v344 = vld [vmem:[%s334 + $0x48] sm:$0xff]
        %v345 = vld [vmem:[%s334 + $0x50] sm:$0xff]
        %v346 = vld [vmem:[%s334 + $0x58] sm:$0xff]
        %v347 = vld [vmem:[%s334 + $0x60] sm:$0xff]
        %v348 = vld [vmem:[%s334 + $0x68] sm:$0xff]
        %v349 = vld [vmem:[%s334 + $0x70] sm:$0xff]
        %v350 = vld [vmem:[%s334 + $0x78] sm:$0xff]
        %v351 = vld [vmem:[%s334 + $0x80] sm:$0xff]
        %v352 = vld [vmem:[%s334 + $0x88] sm:$0xff]
        %v353 = vld [vmem:[%s334 + $0x90] sm:$0xff]
        %v354 = vld [vmem:[%s334 + $0x98] sm:$0xff]
        %v355 = vld [vmem:[%s334 + $0xa0] sm:$0xff]
        %v356 = vld [vmem:[%s334 + $0xa8] sm:$0xff]
        %v357 = vld [vmem:[%s334 + $0xb0] sm:$0xff]
        %v358 = vld [vmem:[%s334 + $0xb8] sm:$0xff]
        %v359 = vld [vmem:[%s334 + $0xc0] sm:$0xff]
        %v360 = vld [vmem:[%s334 + $0xc8] sm:$0xff]
        %v361 = vld [vmem:[%s334 + $0xd0] sm:$0xff]
        %v362 = vld [vmem:[%s334 + $0xd8] sm:$0xff]
        %v363 = vld [vmem:[%s334 + $0xe0] sm:$0xff]
        %v364 = vld [vmem:[%s334 + $0xe8] sm:$0xff]
        %v365 = vld [vmem:[%s334 + $0xf0] sm:$0xff]
        %v366 = vld [vmem:[%s334 + $0xf8] sm:$0xff]
        %v367 = vld [vmem:[%s334 + $0x100] sm:$0xff]
        %v368 = vld [vmem:[%s334 + $0x108] sm:$0xff]
        %v369 = vld [vmem:[%s334 + $0x110] sm:$0xff]
        %v370 = vld [vmem:[%s334 + $0x118] sm:$0xff]
        %v371 = vld [vmem:[%s334 + $0x120] sm:$0xff]
        %v372 = vld [vmem:[%s334 + $0x128] sm:$0xff]
        %v373 = vld [vmem:[%s334 + $0x130] sm:$0xff]
        %v374 = vld [vmem:[%s334 + $0x138] sm:$0xff]
        %v375 = vld [vmem:[%s334 + $0x140] sm:$0xff]
        %v376 = vld [vmem:[%s334 + $0x148] sm:$0xff]
        %v377 = vld [vmem:[%s334 + $0x150] sm:$0xff]
        %v378 = vld [vmem:[%s334 + $0x158] sm:$0xff]
        %v379 = vld [vmem:[%s334 + $0x160] sm:$0xff]
        %v380 = vld [vmem:[%s334 + $0x168] sm:$0xff]
        %v381 = vld [vmem:[%s334 + $0x170] sm:$0xff]
        %v382 = vld [vmem:[%s334 + $0x178] sm:$0xff]
        %v383 = vld [vmem:[%s334 + $0x180] sm:$0xff]
        %v384 = vld [vmem:[%s334 + $0x188] sm:$0xff]
        %v385 = vld [vmem:[%s334 + $0x190] sm:$0xff]
        %v386 = vld [vmem:[%s334 + $0x198] sm:$0xff]
        %v387 = vld [vmem:[%s334 + $0x1a0] sm:$0xff]
        %v388 = vld [vmem:[%s334 + $0x1a8] sm:$0xff]
        %v389 = vld [vmem:[%s334 + $0x1b0] sm:$0xff]
        %v390 = vld [vmem:[%s334 + $0x1b8] sm:$0xff]
        %v391 = vld [vmem:[%s334 + $0x1c0] sm:$0xff]
        %v392 = vld [vmem:[%s334 + $0x1c8] sm:$0xff]
        %v393 = vld [vmem:[%s334 + $0x1d0] sm:$0xff]
        %v394 = vld [vmem:[%s334 + $0x1d8] sm:$0xff]
        %v395 = vld [vmem:[%s334 + $0x1e0] sm:$0xff]
        %v396 = vld [vmem:[%s334 + $0x1e8] sm:$0xff]
        %v397 = vld [vmem:[%s334 + $0x1f0] sm:$0xff]
        %v398 = vld [vmem:[%s334 + $0x1f8] sm:$0xff]
        %v399 = vld [vmem:[%s334 + $0x200] sm:$0xff]
        %v400 = vld [vmem:[%s334 + $0x208] sm:$0xff]
        %v401 = vld [vmem:[%s334 + $0x210] sm:$0xff]
        %v402 = vld [vmem:[%s334 + $0x218] sm:$0xff]
        %v403 = vld [vmem:[%s334 + $0x220] sm:$0xff]
        %v404 = vld [vmem:[%s334 + $0x228] sm:$0xff]
        %v405 = vld [vmem:[%s334 + $0x230] sm:$0xff]
        %v406 = vld [vmem:[%s334 + $0x238] sm:$0xff]
        %v407 = vld [vmem:[%s334 + $0x240] sm:$0xff]
        %v408 = vld [vmem:[%s334 + $0x248] sm:$0xff]
        %v409 = vld [vmem:[%s334 + $0x250] sm:$0xff]
        %v410 = vld [vmem:[%s334 + $0x258] sm:$0xff]
        %v411 = vld [vmem:[%s334 + $0x260] sm:$0xff]
        %v412 = vld [vmem:[%s334 + $0x268] sm:$0xff]
        %v413 = vld [vmem:[%s334 + $0x270] sm:$0xff]
        %v414 = vld [vmem:[%s334 + $0x278] sm:$0xff]
        %v415 = vld [vmem:[%s334 + $0x280] sm:$0xff]
        %v416 = vld [vmem:[%s334 + $0x288] sm:$0xff]
        %v417 = vld [vmem:[%s334 + $0x290] sm:$0xff]
        %v418 = vld [vmem:[%s334 + $0x298] sm:$0xff]
        %v419 = vld [vmem:[%s334 + $0x2a0] sm:$0xff]
        %v420 = vld [vmem:[%s334 + $0x2a8] sm:$0xff]
        %v421 = vld [vmem:[%s334 + $0x2b0] sm:$0xff]
        %v422 = vld [vmem:[%s334 + $0x2b8] sm:$0xff]
        %v423 = vld [vmem:[%s334 + $0x2c0] sm:$0xff]
        %v424 = vld [vmem:[%s334 + $0x2c8] sm:$0xff]
        %v425 = vld [vmem:[%s334 + $0x2d0] sm:$0xff]
        %v426 = vld [vmem:[%s334 + $0x2d8] sm:$0xff]
        %v427 = vld [vmem:[%s334 + $0x2e0] sm:$0xff]
        %v428 = vld [vmem:[%s334 + $0x2e8] sm:$0xff]
        %v429 = vld [vmem:[%s334 + $0x2f0] sm:$0xff]
        %v430 = vld [vmem:[%s334 + $0x2f8] sm:$0xff]
        %s431 = scalar_lea.vmem [#allocation2], 32
        %v432 = vld [vmem:[%s431] sm:$0xff]
        %v433 = vld [vmem:[%s431 + $0x8] sm:$0xff]
        %v434 = vld [vmem:[%s431 + $0x10] sm:$0xff]
        %v435 = vld [vmem:[%s431 + $0x18] sm:$0xff]
        %v436 = vld [vmem:[%s431 + $0x20] sm:$0xff]
        %v437 = vld [vmem:[%s431 + $0x28] sm:$0xff]
        %v438 = vld [vmem:[%s431 + $0x30] sm:$0xff]
        %v439 = vld [vmem:[%s431 + $0x38] sm:$0xff]
        %v440 = vld [vmem:[%s431 + $0x40] sm:$0xff]
        %v441 = vld [vmem:[%s431 + $0x48] sm:$0xff]
        %v442 = vld [vmem:[%s431 + $0x50] sm:$0xff]
        %v443 = vld [vmem:[%s431 + $0x58] sm:$0xff]
        %v444 = vld [vmem:[%s431 + $0x60] sm:$0xff]
        %v445 = vld [vmem:[%s431 + $0x68] sm:$0xff]
        %v446 = vld [vmem:[%s431 + $0x70] sm:$0xff]
        %v447 = vld [vmem:[%s431 + $0x78] sm:$0xff]
        %v448 = vld [vmem:[%s431 + $0x80] sm:$0xff]
        %v449 = vld [vmem:[%s431 + $0x88] sm:$0xff]
        %v450 = vld [vmem:[%s431 + $0x90] sm:$0xff]
        %v451 = vld [vmem:[%s431 + $0x98] sm:$0xff]
        %v452 = vld [vmem:[%s431 + $0xa0] sm:$0xff]
        %v453 = vld [vmem:[%s431 + $0xa8] sm:$0xff]
        %v454 = vld [vmem:[%s431 + $0xb0] sm:$0xff]
        %v455 = vld [vmem:[%s431 + $0xb8] sm:$0xff]
        %v456 = vld [vmem:[%s431 + $0xc0] sm:$0xff]
        %v457 = vld [vmem:[%s431 + $0xc8] sm:$0xff]
        %v458 = vld [vmem:[%s431 + $0xd0] sm:$0xff]
        %v459 = vld [vmem:[%s431 + $0xd8] sm:$0xff]
        %v460 = vld [vmem:[%s431 + $0xe0] sm:$0xff]
        %v461 = vld [vmem:[%s431 + $0xe8] sm:$0xff]
        %v462 = vld [vmem:[%s431 + $0xf0] sm:$0xff]
        %v463 = vld [vmem:[%s431 + $0xf8] sm:$0xff]
        %v464 = vld [vmem:[%s431 + $0x100] sm:$0xff]
        %v465 = vld [vmem:[%s431 + $0x108] sm:$0xff]
        %v466 = vld [vmem:[%s431 + $0x110] sm:$0xff]
        %v467 = vld [vmem:[%s431 + $0x118] sm:$0xff]
        %v468 = vld [vmem:[%s431 + $0x120] sm:$0xff]
        %v469 = vld [vmem:[%s431 + $0x128] sm:$0xff]
        %v470 = vld [vmem:[%s431 + $0x130] sm:$0xff]
        %v471 = vld [vmem:[%s431 + $0x138] sm:$0xff]
        %v472 = vld [vmem:[%s431 + $0x140] sm:$0xff]
        %v473 = vld [vmem:[%s431 + $0x148] sm:$0xff]
        %v474 = vld [vmem:[%s431 + $0x150] sm:$0xff]
        %v475 = vld [vmem:[%s431 + $0x158] sm:$0xff]
        %v476 = vld [vmem:[%s431 + $0x160] sm:$0xff]
        %v477 = vld [vmem:[%s431 + $0x168] sm:$0xff]
        %v478 = vld [vmem:[%s431 + $0x170] sm:$0xff]
        %v479 = vld [vmem:[%s431 + $0x178] sm:$0xff]
        %v480 = vld [vmem:[%s431 + $0x180] sm:$0xff]
        %v481 = vld [vmem:[%s431 + $0x188] sm:$0xff]
        %v482 = vld [vmem:[%s431 + $0x190] sm:$0xff]
        %v483 = vld [vmem:[%s431 + $0x198] sm:$0xff]
        %v484 = vld [vmem:[%s431 + $0x1a0] sm:$0xff]
        %v485 = vld [vmem:[%s431 + $0x1a8] sm:$0xff]
        %v486 = vld [vmem:[%s431 + $0x1b0] sm:$0xff]
        %v487 = vld [vmem:[%s431 + $0x1b8] sm:$0xff]
        %v488 = vld [vmem:[%s431 + $0x1c0] sm:$0xff]
        %v489 = vld [vmem:[%s431 + $0x1c8] sm:$0xff]
        %v490 = vld [vmem:[%s431 + $0x1d0] sm:$0xff]
        %v491 = vld [vmem:[%s431 + $0x1d8] sm:$0xff]
        %v492 = vld [vmem:[%s431 + $0x1e0] sm:$0xff]
        %v493 = vld [vmem:[%s431 + $0x1e8] sm:$0xff]
        %v494 = vld [vmem:[%s431 + $0x1f0] sm:$0xff]
        %v495 = vld [vmem:[%s431 + $0x1f8] sm:$0xff]
        %v496 = vld [vmem:[%s431 + $0x200] sm:$0xff]
        %v497 = vld [vmem:[%s431 + $0x208] sm:$0xff]
        %v498 = vld [vmem:[%s431 + $0x210] sm:$0xff]
        %v499 = vld [vmem:[%s431 + $0x218] sm:$0xff]
        %v500 = vld [vmem:[%s431 + $0x220] sm:$0xff]
        %v501 = vld [vmem:[%s431 + $0x228] sm:$0xff]
        %v502 = vld [vmem:[%s431 + $0x230] sm:$0xff]
        %v503 = vld [vmem:[%s431 + $0x238] sm:$0xff]
        %v504 = vld [vmem:[%s431 + $0x240] sm:$0xff]
        %v505 = vld [vmem:[%s431 + $0x248] sm:$0xff]
        %v506 = vld [vmem:[%s431 + $0x250] sm:$0xff]
        %v507 = vld [vmem:[%s431 + $0x258] sm:$0xff]
        %v508 = vld [vmem:[%s431 + $0x260] sm:$0xff]
        %v509 = vld [vmem:[%s431 + $0x268] sm:$0xff]
        %v510 = vld [vmem:[%s431 + $0x270] sm:$0xff]
        %v511 = vld [vmem:[%s431 + $0x278] sm:$0xff]
        %v512 = vld [vmem:[%s431 + $0x280] sm:$0xff]
        %v513 = vld [vmem:[%s431 + $0x288] sm:$0xff]
        %v514 = vld [vmem:[%s431 + $0x290] sm:$0xff]
        %v515 = vld [vmem:[%s431 + $0x298] sm:$0xff]
        %v516 = vld [vmem:[%s431 + $0x2a0] sm:$0xff]
        %v517 = vld [vmem:[%s431 + $0x2a8] sm:$0xff]
        %v518 = vld [vmem:[%s431 + $0x2b0] sm:$0xff]
        %v519 = vld [vmem:[%s431 + $0x2b8] sm:$0xff]
        %v520 = vld [vmem:[%s431 + $0x2c0] sm:$0xff]
        %v521 = vld [vmem:[%s431 + $0x2c8] sm:$0xff]
        %v522 = vld [vmem:[%s431 + $0x2d0] sm:$0xff]
        %v523 = vld [vmem:[%s431 + $0x2d8] sm:$0xff]
        %v524 = vld [vmem:[%s431 + $0x2e0] sm:$0xff]
        %v525 = vld [vmem:[%s431 + $0x2e8] sm:$0xff]
        %v526 = vld [vmem:[%s431 + $0x2f0] sm:$0xff]
        %v527 = vld [vmem:[%s431 + $0x2f8] sm:$0xff]
        %v528 = vmax.f32 %v335, %v432
        %v529 = vmax.f32 %v336, %v433
        %v530 = vmax.f32 %v337, %v434
        %v531 = vmax.f32 %v338, %v435
        %v532 = vmax.f32 %v339, %v436
        %v533 = vmax.f32 %v340, %v437
        %v534 = vmax.f32 %v341, %v438
        %v535 = vmax.f32 %v342, %v439
        %v536 = vmax.f32 %v343, %v440
        %v537 = vmax.f32 %v344, %v441
        %v538 = vmax.f32 %v345, %v442
        %v539 = vmax.f32 %v346, %v443
        %v540 = vmax.f32 %v347, %v444
        %v541 = vmax.f32 %v348, %v445
        %v542 = vmax.f32 %v349, %v446
        %v543 = vmax.f32 %v350, %v447
        %v544 = vmax.f32 %v351, %v448
        %v545 = vmax.f32 %v352, %v449
        %v546 = vmax.f32 %v353, %v450
        %v547 = vmax.f32 %v354, %v451
        %v548 = vmax.f32 %v355, %v452
        %v549 = vmax.f32 %v356, %v453
        %v550 = vmax.f32 %v357, %v454
        %v551 = vmax.f32 %v358, %v455
        %v552 = vmax.f32 %v359, %v456
        %v553 = vmax.f32 %v360, %v457
        %v554 = vmax.f32 %v361, %v458
        %v555 = vmax.f32 %v362, %v459
        %v556 = vmax.f32 %v363, %v460
        %v557 = vmax.f32 %v364, %v461
        %v558 = vmax.f32 %v365, %v462
        %v559 = vmax.f32 %v366, %v463
        %v560 = vmax.f32 %v367, %v464
        %v561 = vmax.f32 %v368, %v465
        %v562 = vmax.f32 %v369, %v466
        %v563 = vmax.f32 %v370, %v467
        %v564 = vmax.f32 %v371, %v468
        %v565 = vmax.f32 %v372, %v469
        %v566 = vmax.f32 %v373, %v470
        %v567 = vmax.f32 %v374, %v471
        %v568 = vmax.f32 %v375, %v472
        %v569 = vmax.f32 %v376, %v473
        %v570 = vmax.f32 %v377, %v474
        %v571 = vmax.f32 %v378, %v475
        %v572 = vmax.f32 %v379, %v476
        %v573 = vmax.f32 %v380, %v477
        %v574 = vmax.f32 %v381, %v478
        %v575 = vmax.f32 %v382, %v479
        %v576 = vmax.f32 %v383, %v480
        %v577 = vmax.f32 %v384, %v481
        %v578 = vmax.f32 %v385, %v482
        %v579 = vmax.f32 %v386, %v483
        %v580 = vmax.f32 %v387, %v484
        %v581 = vmax.f32 %v388, %v485
        %v582 = vmax.f32 %v389, %v486
        %v583 = vmax.f32 %v390, %v487
        %v584 = vmax.f32 %v391, %v488
        %v585 = vmax.f32 %v392, %v489
        %v586 = vmax.f32 %v393, %v490
        %v587 = vmax.f32 %v394, %v491
        %v588 = vmax.f32 %v395, %v492
        %v589 = vmax.f32 %v396, %v493
        %v590 = vmax.f32 %v397, %v494
        %v591 = vmax.f32 %v398, %v495
        %v592 = vmax.f32 %v399, %v496
        %v593 = vmax.f32 %v400, %v497
        %v594 = vmax.f32 %v401, %v498
        %v595 = vmax.f32 %v402, %v499
        %v596 = vmax.f32 %v403, %v500
        %v597 = vmax.f32 %v404, %v501
        %v598 = vmax.f32 %v405, %v502
        %v599 = vmax.f32 %v406, %v503
        %v600 = vmax.f32 %v407, %v504
        %v601 = vmax.f32 %v408, %v505
        %v602 = vmax.f32 %v409, %v506
        %v603 = vmax.f32 %v410, %v507
        %v604 = vmax.f32 %v411, %v508
        %v605 = vmax.f32 %v412, %v509
        %v606 = vmax.f32 %v413, %v510
        %v607 = vmax.f32 %v414, %v511
        %v608 = vmax.f32 %v415, %v512
        %v609 = vmax.f32 %v416, %v513
        %v610 = vmax.f32 %v417, %v514
        %v611 = vmax.f32 %v418, %v515
        %v612 = vmax.f32 %v419, %v516
        %v613 = vmax.f32 %v420, %v517
        %v614 = vmax.f32 %v421, %v518
        %v615 = vmax.f32 %v422, %v519
        %v616 = vmax.f32 %v423, %v520
        %v617 = vmax.f32 %v424, %v521
        %v618 = vmax.f32 %v425, %v522
        %v619 = vmax.f32 %v426, %v523
        %v620 = vmax.f32 %v427, %v524
        %v621 = vmax.f32 %v428, %v525
        %v622 = vmax.f32 %v429, %v526
        %v623 = vmax.f32 %v430, %v527
        %s624 = scalar_lea.vmem [#allocation2], 96
        %v625 = vld [vmem:[%s624] sm:$0xff]
        %v626 = vld [vmem:[%s624 + $0x8] sm:$0xff]
        %v627 = vld [vmem:[%s624 + $0x10] sm:$0xff]
        %v628 = vld [vmem:[%s624 + $0x18] sm:$0xff]
        %v629 = vld [vmem:[%s624 + $0x20] sm:$0xff]
        %v630 = vld [vmem:[%s624 + $0x28] sm:$0xff]
        %v631 = vld [vmem:[%s624 + $0x30] sm:$0xff]
        %v632 = vld [vmem:[%s624 + $0x38] sm:$0xff]
        %v633 = vld [vmem:[%s624 + $0x40] sm:$0xff]
        %v634 = vld [vmem:[%s624 + $0x48] sm:$0xff]
        %v635 = vld [vmem:[%s624 + $0x50] sm:$0xff]
        %v636 = vld [vmem:[%s624 + $0x58] sm:$0xff]
        %v637 = vld [vmem:[%s624 + $0x60] sm:$0xff]
        %v638 = vld [vmem:[%s624 + $0x68] sm:$0xff]
        %v639 = vld [vmem:[%s624 + $0x70] sm:$0xff]
        %v640 = vld [vmem:[%s624 + $0x78] sm:$0xff]
        %v641 = vld [vmem:[%s624 + $0x80] sm:$0xff]
        %v642 = vld [vmem:[%s624 + $0x88] sm:$0xff]
        %v643 = vld [vmem:[%s624 + $0x90] sm:$0xff]
        %v644 = vld [vmem:[%s624 + $0x98] sm:$0xff]
        %v645 = vld [vmem:[%s624 + $0xa0] sm:$0xff]
        %v646 = vld [vmem:[%s624 + $0xa8] sm:$0xff]
        %v647 = vld [vmem:[%s624 + $0xb0] sm:$0xff]
        %v648 = vld [vmem:[%s624 + $0xb8] sm:$0xff]
        %v649 = vld [vmem:[%s624 + $0xc0] sm:$0xff]
        %v650 = vld [vmem:[%s624 + $0xc8] sm:$0xff]
        %v651 = vld [vmem:[%s624 + $0xd0] sm:$0xff]
        %v652 = vld [vmem:[%s624 + $0xd8] sm:$0xff]
        %v653 = vld [vmem:[%s624 + $0xe0] sm:$0xff]
        %v654 = vld [vmem:[%s624 + $0xe8] sm:$0xff]
        %v655 = vld [vmem:[%s624 + $0xf0] sm:$0xff]
        %v656 = vld [vmem:[%s624 + $0xf8] sm:$0xff]
        %v657 = vld [vmem:[%s624 + $0x100] sm:$0xff]
        %v658 = vld [vmem:[%s624 + $0x108] sm:$0xff]
        %v659 = vld [vmem:[%s624 + $0x110] sm:$0xff]
        %v660 = vld [vmem:[%s624 + $0x118] sm:$0xff]
        %v661 = vld [vmem:[%s624 + $0x120] sm:$0xff]
        %v662 = vld [vmem:[%s624 + $0x128] sm:$0xff]
        %v663 = vld [vmem:[%s624 + $0x130] sm:$0xff]
        %v664 = vld [vmem:[%s624 + $0x138] sm:$0xff]
        %v665 = vld [vmem:[%s624 + $0x140] sm:$0xff]
        %v666 = vld [vmem:[%s624 + $0x148] sm:$0xff]
        %v667 = vld [vmem:[%s624 + $0x150] sm:$0xff]
        %v668 = vld [vmem:[%s624 + $0x158] sm:$0xff]
        %v669 = vld [vmem:[%s624 + $0x160] sm:$0xff]
        %v670 = vld [vmem:[%s624 + $0x168] sm:$0xff]
        %v671 = vld [vmem:[%s624 + $0x170] sm:$0xff]
        %v672 = vld [vmem:[%s624 + $0x178] sm:$0xff]
        %v673 = vld [vmem:[%s624 + $0x180] sm:$0xff]
        %v674 = vld [vmem:[%s624 + $0x188] sm:$0xff]
        %v675 = vld [vmem:[%s624 + $0x190] sm:$0xff]
        %v676 = vld [vmem:[%s624 + $0x198] sm:$0xff]
        %v677 = vld [vmem:[%s624 + $0x1a0] sm:$0xff]
        %v678 = vld [vmem:[%s624 + $0x1a8] sm:$0xff]
        %v679 = vld [vmem:[%s624 + $0x1b0] sm:$0xff]
        %v680 = vld [vmem:[%s624 + $0x1b8] sm:$0xff]
        %v681 = vld [vmem:[%s624 + $0x1c0] sm:$0xff]
        %v682 = vld [vmem:[%s624 + $0x1c8] sm:$0xff]
        %v683 = vld [vmem:[%s624 + $0x1d0] sm:$0xff]
        %v684 = vld [vmem:[%s624 + $0x1d8] sm:$0xff]
        %v685 = vld [vmem:[%s624 + $0x1e0] sm:$0xff]
        %v686 = vld [vmem:[%s624 + $0x1e8] sm:$0xff]
        %v687 = vld [vmem:[%s624 + $0x1f0] sm:$0xff]
        %v688 = vld [vmem:[%s624 + $0x1f8] sm:$0xff]
        %v689 = vld [vmem:[%s624 + $0x200] sm:$0xff]
        %v690 = vld [vmem:[%s624 + $0x208] sm:$0xff]
        %v691 = vld [vmem:[%s624 + $0x210] sm:$0xff]
        %v692 = vld [vmem:[%s624 + $0x218] sm:$0xff]
        %v693 = vld [vmem:[%s624 + $0x220] sm:$0xff]
        %v694 = vld [vmem:[%s624 + $0x228] sm:$0xff]
        %v695 = vld [vmem:[%s624 + $0x230] sm:$0xff]
        %v696 = vld [vmem:[%s624 + $0x238] sm:$0xff]
        %v697 = vld [vmem:[%s624 + $0x240] sm:$0xff]
        %v698 = vld [vmem:[%s624 + $0x248] sm:$0xff]
        %v699 = vld [vmem:[%s624 + $0x250] sm:$0xff]
        %v700 = vld [vmem:[%s624 + $0x258] sm:$0xff]
        %v701 = vld [vmem:[%s624 + $0x260] sm:$0xff]
        %v702 = vld [vmem:[%s624 + $0x268] sm:$0xff]
        %v703 = vld [vmem:[%s624 + $0x270] sm:$0xff]
        %v704 = vld [vmem:[%s624 + $0x278] sm:$0xff]
        %v705 = vld [vmem:[%s624 + $0x280] sm:$0xff]
        %v706 = vld [vmem:[%s624 + $0x288] sm:$0xff]
        %v707 = vld [vmem:[%s624 + $0x290] sm:$0xff]
        %v708 = vld [vmem:[%s624 + $0x298] sm:$0xff]
        %v709 = vld [vmem:[%s624 + $0x2a0] sm:$0xff]
        %v710 = vld [vmem:[%s624 + $0x2a8] sm:$0xff]
        %v711 = vld [vmem:[%s624 + $0x2b0] sm:$0xff]
        %v712 = vld [vmem:[%s624 + $0x2b8] sm:$0xff]
        %v713 = vld [vmem:[%s624 + $0x2c0] sm:$0xff]
        %v714 = vld [vmem:[%s624 + $0x2c8] sm:$0xff]
        %v715 = vld [vmem:[%s624 + $0x2d0] sm:$0xff]
        %v716 = vld [vmem:[%s624 + $0x2d8] sm:$0xff]
        %v717 = vld [vmem:[%s624 + $0x2e0] sm:$0xff]
        %v718 = vld [vmem:[%s624 + $0x2e8] sm:$0xff]
        %v719 = vld [vmem:[%s624 + $0x2f0] sm:$0xff]
        %v720 = vld [vmem:[%s624 + $0x2f8] sm:$0xff]
        %v721 = vmax.f32 %v528, %v625
        %v722 = vmax.f32 %v529, %v626
        %v723 = vmax.f32 %v530, %v627
        %v724 = vmax.f32 %v531, %v628
        %v725 = vmax.f32 %v532, %v629
        %v726 = vmax.f32 %v533, %v630
        %v727 = vmax.f32 %v534, %v631
        %v728 = vmax.f32 %v535, %v632
        %v729 = vmax.f32 %v536, %v633
        %v730 = vmax.f32 %v537, %v634
        %v731 = vmax.f32 %v538, %v635
        %v732 = vmax.f32 %v539, %v636
        %v733 = vmax.f32 %v540, %v637
        %v734 = vmax.f32 %v541, %v638
        %v735 = vmax.f32 %v542, %v639
        %v736 = vmax.f32 %v543, %v640
        %v737 = vmax.f32 %v544, %v641
        %v738 = vmax.f32 %v545, %v642
        %v739 = vmax.f32 %v546, %v643
        %v740 = vmax.f32 %v547, %v644
        %v741 = vmax.f32 %v548, %v645
        %v742 = vmax.f32 %v549, %v646
        %v743 = vmax.f32 %v550, %v647
        %v744 = vmax.f32 %v551, %v648
        %v745 = vmax.f32 %v552, %v649
        %v746 = vmax.f32 %v553, %v650
        %v747 = vmax.f32 %v554, %v651
        %v748 = vmax.f32 %v555, %v652
        %v749 = vmax.f32 %v556, %v653
        %v750 = vmax.f32 %v557, %v654
        %v751 = vmax.f32 %v558, %v655
        %v752 = vmax.f32 %v559, %v656
        %v753 = vmax.f32 %v560, %v657
        %v754 = vmax.f32 %v561, %v658
        %v755 = vmax.f32 %v562, %v659
        %v756 = vmax.f32 %v563, %v660
        %v757 = vmax.f32 %v564, %v661
        %v758 = vmax.f32 %v565, %v662
        %v759 = vmax.f32 %v566, %v663
        %v760 = vmax.f32 %v567, %v664
        %v761 = vmax.f32 %v568, %v665
        %v762 = vmax.f32 %v569, %v666
        %v763 = vmax.f32 %v570, %v667
        %v764 = vmax.f32 %v571, %v668
        %v765 = vmax.f32 %v572, %v669
        %v766 = vmax.f32 %v573, %v670
        %v767 = vmax.f32 %v574, %v671
        %v768 = vmax.f32 %v575, %v672
        %v769 = vmax.f32 %v576, %v673
        %v770 = vmax.f32 %v577, %v674
        %v771 = vmax.f32 %v578, %v675
        %v772 = vmax.f32 %v579, %v676
        %v773 = vmax.f32 %v580, %v677
        %v774 = vmax.f32 %v581, %v678
        %v775 = vmax.f32 %v582, %v679
        %v776 = vmax.f32 %v583, %v680
        %v777 = vmax.f32 %v584, %v681
        %v778 = vmax.f32 %v585, %v682
        %v779 = vmax.f32 %v586, %v683
        %v780 = vmax.f32 %v587, %v684
        %v781 = vmax.f32 %v588, %v685
        %v782 = vmax.f32 %v589, %v686
        %v783 = vmax.f32 %v590, %v687
        %v784 = vmax.f32 %v591, %v688
        %v785 = vmax.f32 %v592, %v689
        %v786 = vmax.f32 %v593, %v690
        %v787 = vmax.f32 %v594, %v691
        %v788 = vmax.f32 %v595, %v692
        %v789 = vmax.f32 %v596, %v693
        %v790 = vmax.f32 %v597, %v694
        %v791 = vmax.f32 %v598, %v695
        %v792 = vmax.f32 %v599, %v696
        %v793 = vmax.f32 %v600, %v697
        %v794 = vmax.f32 %v601, %v698
        %v795 = vmax.f32 %v602, %v699
        %v796 = vmax.f32 %v603, %v700
        %v797 = vmax.f32 %v604, %v701
        %v798 = vmax.f32 %v605, %v702
        %v799 = vmax.f32 %v606, %v703
        %v800 = vmax.f32 %v607, %v704
        %v801 = vmax.f32 %v608, %v705
        %v802 = vmax.f32 %v609, %v706
        %v803 = vmax.f32 %v610, %v707
        %v804 = vmax.f32 %v611, %v708
        %v805 = vmax.f32 %v612, %v709
        %v806 = vmax.f32 %v613, %v710
        %v807 = vmax.f32 %v614, %v711
        %v808 = vmax.f32 %v615, %v712
        %v809 = vmax.f32 %v616, %v713
        %v810 = vmax.f32 %v617, %v714
        %v811 = vmax.f32 %v618, %v715
        %v812 = vmax.f32 %v619, %v716
        %v813 = vmax.f32 %v620, %v717
        %v814 = vmax.f32 %v621, %v718
        %v815 = vmax.f32 %v622, %v719
        %v816 = vmax.f32 %v623, %v720
        %v817 = vld [vmem:[#allocation2] sm:$0xff]
        %v818 = vld [vmem:[#allocation2 + $0x8] sm:$0xff]
        %v819 = vld [vmem:[#allocation2 + $0x10] sm:$0xff]
        %v820 = vld [vmem:[#allocation2 + $0x18] sm:$0xff]
        %v821 = vld [vmem:[#allocation2 + $0x20] sm:$0xff]
        %v822 = vld [vmem:[#allocation2 + $0x28] sm:$0xff]
        %v823 = vld [vmem:[#allocation2 + $0x30] sm:$0xff]
        %v824 = vld [vmem:[#allocation2 + $0x38] sm:$0xff]
        %v825 = vld [vmem:[#allocation2 + $0x40] sm:$0xff]
        %v826 = vld [vmem:[#allocation2 + $0x48] sm:$0xff]
        %v827 = vld [vmem:[#allocation2 + $0x50] sm:$0xff]
        %v828 = vld [vmem:[#allocation2 + $0x58] sm:$0xff]
        %v829 = vld [vmem:[#allocation2 + $0x60] sm:$0xff]
        %v830 = vld [vmem:[#allocation2 + $0x68] sm:$0xff]
        %v831 = vld [vmem:[#allocation2 + $0x70] sm:$0xff]
        %v832 = vld [vmem:[#allocation2 + $0x78] sm:$0xff]
        %v833 = vld [vmem:[#allocation2 + $0x80] sm:$0xff]
        %v834 = vld [vmem:[#allocation2 + $0x88] sm:$0xff]
        %v835 = vld [vmem:[#allocation2 + $0x90] sm:$0xff]
        %v836 = vld [vmem:[#allocation2 + $0x98] sm:$0xff]
        %v837 = vld [vmem:[#allocation2 + $0xa0] sm:$0xff]
        %v838 = vld [vmem:[#allocation2 + $0xa8] sm:$0xff]
        %v839 = vld [vmem:[#allocation2 + $0xb0] sm:$0xff]
        %v840 = vld [vmem:[#allocation2 + $0xb8] sm:$0xff]
        %v841 = vld [vmem:[#allocation2 + $0xc0] sm:$0xff]
        %v842 = vld [vmem:[#allocation2 + $0xc8] sm:$0xff]
        %v843 = vld [vmem:[#allocation2 + $0xd0] sm:$0xff]
        %v844 = vld [vmem:[#allocation2 + $0xd8] sm:$0xff]
        %v845 = vld [vmem:[#allocation2 + $0xe0] sm:$0xff]
        %v846 = vld [vmem:[#allocation2 + $0xe8] sm:$0xff]
        %v847 = vld [vmem:[#allocation2 + $0xf0] sm:$0xff]
        %v848 = vld [vmem:[#allocation2 + $0xf8] sm:$0xff]
        %v849 = vld [vmem:[#allocation2 + $0x100] sm:$0xff]
        %v850 = vld [vmem:[#allocation2 + $0x108] sm:$0xff]
        %v851 = vld [vmem:[#allocation2 + $0x110] sm:$0xff]
        %v852 = vld [vmem:[#allocation2 + $0x118] sm:$0xff]
        %v853 = vld [vmem:[#allocation2 + $0x120] sm:$0xff]
        %v854 = vld [vmem:[#allocation2 + $0x128] sm:$0xff]
        %v855 = vld [vmem:[#allocation2 + $0x130] sm:$0xff]
        %v856 = vld [vmem:[#allocation2 + $0x138] sm:$0xff]
        %v857 = vld [vmem:[#allocation2 + $0x140] sm:$0xff]
        %v858 = vld [vmem:[#allocation2 + $0x148] sm:$0xff]
        %v859 = vld [vmem:[#allocation2 + $0x150] sm:$0xff]
        %v860 = vld [vmem:[#allocation2 + $0x158] sm:$0xff]
        %v861 = vld [vmem:[#allocation2 + $0x160] sm:$0xff]
        %v862 = vld [vmem:[#allocation2 + $0x168] sm:$0xff]
        %v863 = vld [vmem:[#allocation2 + $0x170] sm:$0xff]
        %v864 = vld [vmem:[#allocation2 + $0x178] sm:$0xff]
        %v865 = vld [vmem:[#allocation2 + $0x180] sm:$0xff]
        %v866 = vld [vmem:[#allocation2 + $0x188] sm:$0xff]
        %v867 = vld [vmem:[#allocation2 + $0x190] sm:$0xff]
        %v868 = vld [vmem:[#allocation2 + $0x198] sm:$0xff]
        %v869 = vld [vmem:[#allocation2 + $0x1a0] sm:$0xff]
        %v870 = vld [vmem:[#allocation2 + $0x1a8] sm:$0xff]
        %v871 = vld [vmem:[#allocation2 + $0x1b0] sm:$0xff]
        %v872 = vld [vmem:[#allocation2 + $0x1b8] sm:$0xff]
        %v873 = vld [vmem:[#allocation2 + $0x1c0] sm:$0xff]
        %v874 = vld [vmem:[#allocation2 + $0x1c8] sm:$0xff]
        %v875 = vld [vmem:[#allocation2 + $0x1d0] sm:$0xff]
        %v876 = vld [vmem:[#allocation2 + $0x1d8] sm:$0xff]
        %v877 = vld [vmem:[#allocation2 + $0x1e0] sm:$0xff]
        %v878 = vld [vmem:[#allocation2 + $0x1e8] sm:$0xff]
        %v879 = vld [vmem:[#allocation2 + $0x1f0] sm:$0xff]
        %v880 = vld [vmem:[#allocation2 + $0x1f8] sm:$0xff]
        %v881 = vld [vmem:[#allocation2 + $0x200] sm:$0xff]
        %v882 = vld [vmem:[#allocation2 + $0x208] sm:$0xff]
        %v883 = vld [vmem:[#allocation2 + $0x210] sm:$0xff]
        %v884 = vld [vmem:[#allocation2 + $0x218] sm:$0xff]
        %v885 = vld [vmem:[#allocation2 + $0x220] sm:$0xff]
        %v886 = vld [vmem:[#allocation2 + $0x228] sm:$0xff]
        %v887 = vld [vmem:[#allocation2 + $0x230] sm:$0xff]
        %v888 = vld [vmem:[#allocation2 + $0x238] sm:$0xff]
        %v889 = vld [vmem:[#allocation2 + $0x240] sm:$0xff]
        %v890 = vld [vmem:[#allocation2 + $0x248] sm:$0xff]
        %v891 = vld [vmem:[#allocation2 + $0x250] sm:$0xff]
        %v892 = vld [vmem:[#allocation2 + $0x258] sm:$0xff]
        %v893 = vld [vmem:[#allocation2 + $0x260] sm:$0xff]
        %v894 = vld [vmem:[#allocation2 + $0x268] sm:$0xff]
        %v895 = vld [vmem:[#allocation2 + $0x270] sm:$0xff]
        %v896 = vld [vmem:[#allocation2 + $0x278] sm:$0xff]
        %v897 = vld [vmem:[#allocation2 + $0x280] sm:$0xff]
        %v898 = vld [vmem:[#allocation2 + $0x288] sm:$0xff]
        %v899 = vld [vmem:[#allocation2 + $0x290] sm:$0xff]
        %v900 = vld [vmem:[#allocation2 + $0x298] sm:$0xff]
        %v901 = vld [vmem:[#allocation2 + $0x2a0] sm:$0xff]
        %v902 = vld [vmem:[#allocation2 + $0x2a8] sm:$0xff]
        %v903 = vld [vmem:[#allocation2 + $0x2b0] sm:$0xff]
        %v904 = vld [vmem:[#allocation2 + $0x2b8] sm:$0xff]
        %v905 = vld [vmem:[#allocation2 + $0x2c0] sm:$0xff]
        %v906 = vld [vmem:[#allocation2 + $0x2c8] sm:$0xff]
        %v907 = vld [vmem:[#allocation2 + $0x2d0] sm:$0xff]
        %v908 = vld [vmem:[#allocation2 + $0x2d8] sm:$0xff]
        %v909 = vld [vmem:[#allocation2 + $0x2e0] sm:$0xff]
        %v910 = vld [vmem:[#allocation2 + $0x2e8] sm:$0xff]
        %v911 = vld [vmem:[#allocation2 + $0x2f0] sm:$0xff]
        %v912 = vld [vmem:[#allocation2 + $0x2f8] sm:$0xff]
        %v913 = vmax.f32 %v721, %v817
        %v914 = vmax.f32 %v722, %v818
        %v915 = vmax.f32 %v723, %v819
        %v916 = vmax.f32 %v724, %v820
        %v917 = vmax.f32 %v725, %v821
        %v918 = vmax.f32 %v726, %v822
        %v919 = vmax.f32 %v727, %v823
        %v920 = vmax.f32 %v728, %v824
        %v921 = vmax.f32 %v729, %v825
        %v922 = vmax.f32 %v730, %v826
        %v923 = vmax.f32 %v731, %v827
        %v924 = vmax.f32 %v732, %v828
        %v925 = vmax.f32 %v733, %v829
        %v926 = vmax.f32 %v734, %v830
        %v927 = vmax.f32 %v735, %v831
        %v928 = vmax.f32 %v736, %v832
        %v929 = vmax.f32 %v737, %v833
        %v930 = vmax.f32 %v738, %v834
        %v931 = vmax.f32 %v739, %v835
        %v932 = vmax.f32 %v740, %v836
        %v933 = vmax.f32 %v741, %v837
        %v934 = vmax.f32 %v742, %v838
        %v935 = vmax.f32 %v743, %v839
        %v936 = vmax.f32 %v744, %v840
        %v937 = vmax.f32 %v745, %v841
        %v938 = vmax.f32 %v746, %v842
        %v939 = vmax.f32 %v747, %v843
        %v940 = vmax.f32 %v748, %v844
        %v941 = vmax.f32 %v749, %v845
        %v942 = vmax.f32 %v750, %v846
        %v943 = vmax.f32 %v751, %v847
        %v944 = vmax.f32 %v752, %v848
        %v945 = vmax.f32 %v753, %v849
        %v946 = vmax.f32 %v754, %v850
        %v947 = vmax.f32 %v755, %v851
        %v948 = vmax.f32 %v756, %v852
        %v949 = vmax.f32 %v757, %v853
        %v950 = vmax.f32 %v758, %v854
        %v951 = vmax.f32 %v759, %v855
        %v952 = vmax.f32 %v760, %v856
        %v953 = vmax.f32 %v761, %v857
        %v954 = vmax.f32 %v762, %v858
        %v955 = vmax.f32 %v763, %v859
        %v956 = vmax.f32 %v764, %v860
        %v957 = vmax.f32 %v765, %v861
        %v958 = vmax.f32 %v766, %v862
        %v959 = vmax.f32 %v767, %v863
        %v960 = vmax.f32 %v768, %v864
        %v961 = vmax.f32 %v769, %v865
        %v962 = vmax.f32 %v770, %v866
        %v963 = vmax.f32 %v771, %v867
        %v964 = vmax.f32 %v772, %v868
        %v965 = vmax.f32 %v773, %v869
        %v966 = vmax.f32 %v774, %v870
        %v967 = vmax.f32 %v775, %v871
        %v968 = vmax.f32 %v776, %v872
        %v969 = vmax.f32 %v777, %v873
        %v970 = vmax.f32 %v778, %v874
        %v971 = vmax.f32 %v779, %v875
        %v972 = vmax.f32 %v780, %v876
        %v973 = vmax.f32 %v781, %v877
        %v974 = vmax.f32 %v782, %v878
        %v975 = vmax.f32 %v783, %v879
        %v976 = vmax.f32 %v784, %v880
        %v977 = vmax.f32 %v785, %v881
        %v978 = vmax.f32 %v786, %v882
        %v979 = vmax.f32 %v787, %v883
        %v980 = vmax.f32 %v788, %v884
        %v981 = vmax.f32 %v789, %v885
        %v982 = vmax.f32 %v790, %v886
        %v983 = vmax.f32 %v791, %v887
        %v984 = vmax.f32 %v792, %v888
        %v985 = vmax.f32 %v793, %v889
        %v986 = vmax.f32 %v794, %v890
        %v987 = vmax.f32 %v795, %v891
        %v988 = vmax.f32 %v796, %v892
        %v989 = vmax.f32 %v797, %v893
        %v990 = vmax.f32 %v798, %v894
        %v991 = vmax.f32 %v799, %v895
        %v992 = vmax.f32 %v800, %v896
        %v993 = vmax.f32 %v801, %v897
        %v994 = vmax.f32 %v802, %v898
        %v995 = vmax.f32 %v803, %v899
        %v996 = vmax.f32 %v804, %v900
        %v997 = vmax.f32 %v805, %v901
        %v998 = vmax.f32 %v806, %v902
        %v999 = vmax.f32 %v807, %v903
        %v1000 = vmax.f32 %v808, %v904
        %v1001 = vmax.f32 %v809, %v905
        %v1002 = vmax.f32 %v810, %v906
        %v1003 = vmax.f32 %v811, %v907
        %v1004 = vmax.f32 %v812, %v908
        %v1005 = vmax.f32 %v813, %v909
        %v1006 = vmax.f32 %v814, %v910
        %v1007 = vmax.f32 %v815, %v911
        %v1008 = vmax.f32 %v816, %v912
        %s1009 = scalar_lea.vmem [#allocation2], 128
        %v1010 = vld [vmem:[%s1009] sm:$0xff]
        %v1011 = vld [vmem:[%s1009 + $0x8] sm:$0xff]
        %v1012 = vld [vmem:[%s1009 + $0x10] sm:$0xff]
        %v1013 = vld [vmem:[%s1009 + $0x18] sm:$0xff]
        %v1014 = vld [vmem:[%s1009 + $0x20] sm:$0xff]
        %v1015 = vld [vmem:[%s1009 + $0x28] sm:$0xff]
        %v1016 = vld [vmem:[%s1009 + $0x30] sm:$0xff]
        %v1017 = vld [vmem:[%s1009 + $0x38] sm:$0xff]
        %v1018 = vld [vmem:[%s1009 + $0x40] sm:$0xff]
        %v1019 = vld [vmem:[%s1009 + $0x48] sm:$0xff]
        %v1020 = vld [vmem:[%s1009 + $0x50] sm:$0xff]
        %v1021 = vld [vmem:[%s1009 + $0x58] sm:$0xff]
        %v1022 = vld [vmem:[%s1009 + $0x60] sm:$0xff]
        %v1023 = vld [vmem:[%s1009 + $0x68] sm:$0xff]
        %v1024 = vld [vmem:[%s1009 + $0x70] sm:$0xff]
        %v1025 = vld [vmem:[%s1009 + $0x78] sm:$0xff]
        %v1026 = vld [vmem:[%s1009 + $0x80] sm:$0xff]
        %v1027 = vld [vmem:[%s1009 + $0x88] sm:$0xff]
        %v1028 = vld [vmem:[%s1009 + $0x90] sm:$0xff]
        %v1029 = vld [vmem:[%s1009 + $0x98] sm:$0xff]
        %v1030 = vld [vmem:[%s1009 + $0xa0] sm:$0xff]
        %v1031 = vld [vmem:[%s1009 + $0xa8] sm:$0xff]
        %v1032 = vld [vmem:[%s1009 + $0xb0] sm:$0xff]
        %v1033 = vld [vmem:[%s1009 + $0xb8] sm:$0xff]
        %v1034 = vld [vmem:[%s1009 + $0xc0] sm:$0xff]
        %v1035 = vld [vmem:[%s1009 + $0xc8] sm:$0xff]
        %v1036 = vld [vmem:[%s1009 + $0xd0] sm:$0xff]
        %v1037 = vld [vmem:[%s1009 + $0xd8] sm:$0xff]
        %v1038 = vld [vmem:[%s1009 + $0xe0] sm:$0xff]
        %v1039 = vld [vmem:[%s1009 + $0xe8] sm:$0xff]
        %v1040 = vld [vmem:[%s1009 + $0xf0] sm:$0xff]
        %v1041 = vld [vmem:[%s1009 + $0xf8] sm:$0xff]
        %v1042 = vld [vmem:[%s1009 + $0x100] sm:$0xff]
        %v1043 = vld [vmem:[%s1009 + $0x108] sm:$0xff]
        %v1044 = vld [vmem:[%s1009 + $0x110] sm:$0xff]
        %v1045 = vld [vmem:[%s1009 + $0x118] sm:$0xff]
        %v1046 = vld [vmem:[%s1009 + $0x120] sm:$0xff]
        %v1047 = vld [vmem:[%s1009 + $0x128] sm:$0xff]
        %v1048 = vld [vmem:[%s1009 + $0x130] sm:$0xff]
        %v1049 = vld [vmem:[%s1009 + $0x138] sm:$0xff]
        %v1050 = vld [vmem:[%s1009 + $0x140] sm:$0xff]
        %v1051 = vld [vmem:[%s1009 + $0x148] sm:$0xff]
        %v1052 = vld [vmem:[%s1009 + $0x150] sm:$0xff]
        %v1053 = vld [vmem:[%s1009 + $0x158] sm:$0xff]
        %v1054 = vld [vmem:[%s1009 + $0x160] sm:$0xff]
        %v1055 = vld [vmem:[%s1009 + $0x168] sm:$0xff]
        %v1056 = vld [vmem:[%s1009 + $0x170] sm:$0xff]
        %v1057 = vld [vmem:[%s1009 + $0x178] sm:$0xff]
        %v1058 = vld [vmem:[%s1009 + $0x180] sm:$0xff]
        %v1059 = vld [vmem:[%s1009 + $0x188] sm:$0xff]
        %v1060 = vld [vmem:[%s1009 + $0x190] sm:$0xff]
        %v1061 = vld [vmem:[%s1009 + $0x198] sm:$0xff]
        %v1062 = vld [vmem:[%s1009 + $0x1a0] sm:$0xff]
        %v1063 = vld [vmem:[%s1009 + $0x1a8] sm:$0xff]
        %v1064 = vld [vmem:[%s1009 + $0x1b0] sm:$0xff]
        %v1065 = vld [vmem:[%s1009 + $0x1b8] sm:$0xff]
        %v1066 = vld [vmem:[%s1009 + $0x1c0] sm:$0xff]
        %v1067 = vld [vmem:[%s1009 + $0x1c8] sm:$0xff]
        %v1068 = vld [vmem:[%s1009 + $0x1d0] sm:$0xff]
        %v1069 = vld [vmem:[%s1009 + $0x1d8] sm:$0xff]
        %v1070 = vld [vmem:[%s1009 + $0x1e0] sm:$0xff]
        %v1071 = vld [vmem:[%s1009 + $0x1e8] sm:$0xff]
        %v1072 = vld [vmem:[%s1009 + $0x1f0] sm:$0xff]
        %v1073 = vld [vmem:[%s1009 + $0x1f8] sm:$0xff]
        %v1074 = vld [vmem:[%s1009 + $0x200] sm:$0xff]
        %v1075 = vld [vmem:[%s1009 + $0x208] sm:$0xff]
        %v1076 = vld [vmem:[%s1009 + $0x210] sm:$0xff]
        %v1077 = vld [vmem:[%s1009 + $0x218] sm:$0xff]
        %v1078 = vld [vmem:[%s1009 + $0x220] sm:$0xff]
        %v1079 = vld [vmem:[%s1009 + $0x228] sm:$0xff]
        %v1080 = vld [vmem:[%s1009 + $0x230] sm:$0xff]
        %v1081 = vld [vmem:[%s1009 + $0x238] sm:$0xff]
        %v1082 = vld [vmem:[%s1009 + $0x240] sm:$0xff]
        %v1083 = vld [vmem:[%s1009 + $0x248] sm:$0xff]
        %v1084 = vld [vmem:[%s1009 + $0x250] sm:$0xff]
        %v1085 = vld [vmem:[%s1009 + $0x258] sm:$0xff]
        %v1086 = vld [vmem:[%s1009 + $0x260] sm:$0xff]
        %v1087 = vld [vmem:[%s1009 + $0x268] sm:$0xff]
        %v1088 = vld [vmem:[%s1009 + $0x270] sm:$0xff]
        %v1089 = vld [vmem:[%s1009 + $0x278] sm:$0xff]
        %v1090 = vld [vmem:[%s1009 + $0x280] sm:$0xff]
        %v1091 = vld [vmem:[%s1009 + $0x288] sm:$0xff]
        %v1092 = vld [vmem:[%s1009 + $0x290] sm:$0xff]
        %v1093 = vld [vmem:[%s1009 + $0x298] sm:$0xff]
        %v1094 = vld [vmem:[%s1009 + $0x2a0] sm:$0xff]
        %v1095 = vld [vmem:[%s1009 + $0x2a8] sm:$0xff]
        %v1096 = vld [vmem:[%s1009 + $0x2b0] sm:$0xff]
        %v1097 = vld [vmem:[%s1009 + $0x2b8] sm:$0xff]
        %v1098 = vld [vmem:[%s1009 + $0x2c0] sm:$0xff]
        %v1099 = vld [vmem:[%s1009 + $0x2c8] sm:$0xff]
        %v1100 = vld [vmem:[%s1009 + $0x2d0] sm:$0xff]
        %v1101 = vld [vmem:[%s1009 + $0x2d8] sm:$0xff]
        %v1102 = vld [vmem:[%s1009 + $0x2e0] sm:$0xff]
        %v1103 = vld [vmem:[%s1009 + $0x2e8] sm:$0xff]
        %v1104 = vld [vmem:[%s1009 + $0x2f0] sm:$0xff]
        %v1105 = vld [vmem:[%s1009 + $0x2f8] sm:$0xff]
        %v1106 = vmax.f32 %v913, %v1010
        %v1107 = vmax.f32 %v914, %v1011
        %v1108 = vmax.f32 %v915, %v1012
        %v1109 = vmax.f32 %v916, %v1013
        %v1110 = vmax.f32 %v917, %v1014
        %v1111 = vmax.f32 %v918, %v1015
        %v1112 = vmax.f32 %v919, %v1016
        %v1113 = vmax.f32 %v920, %v1017
        %v1114 = vmax.f32 %v921, %v1018
        %v1115 = vmax.f32 %v922, %v1019
        %v1116 = vmax.f32 %v923, %v1020
        %v1117 = vmax.f32 %v924, %v1021
        %v1118 = vmax.f32 %v925, %v1022
        %v1119 = vmax.f32 %v926, %v1023
        %v1120 = vmax.f32 %v927, %v1024
        %v1121 = vmax.f32 %v928, %v1025
        %v1122 = vmax.f32 %v929, %v1026
        %v1123 = vmax.f32 %v930, %v1027
        %v1124 = vmax.f32 %v931, %v1028
        %v1125 = vmax.f32 %v932, %v1029
        %v1126 = vmax.f32 %v933, %v1030
        %v1127 = vmax.f32 %v934, %v1031
        %v1128 = vmax.f32 %v935, %v1032
        %v1129 = vmax.f32 %v936, %v1033
        %v1130 = vmax.f32 %v937, %v1034
        %v1131 = vmax.f32 %v938, %v1035
        %v1132 = vmax.f32 %v939, %v1036
        %v1133 = vmax.f32 %v940, %v1037
        %v1134 = vmax.f32 %v941, %v1038
        %v1135 = vmax.f32 %v942, %v1039
        %v1136 = vmax.f32 %v943, %v1040
        %v1137 = vmax.f32 %v944, %v1041
        %v1138 = vmax.f32 %v945, %v1042
        %v1139 = vmax.f32 %v946, %v1043
        %v1140 = vmax.f32 %v947, %v1044
        %v1141 = vmax.f32 %v948, %v1045
        %v1142 = vmax.f32 %v949, %v1046
        %v1143 = vmax.f32 %v950, %v1047
        %v1144 = vmax.f32 %v951, %v1048
        %v1145 = vmax.f32 %v952, %v1049
        %v1146 = vmax.f32 %v953, %v1050
        %v1147 = vmax.f32 %v954, %v1051
        %v1148 = vmax.f32 %v955, %v1052
        %v1149 = vmax.f32 %v956, %v1053
        %v1150 = vmax.f32 %v957, %v1054
        %v1151 = vmax.f32 %v958, %v1055
        %v1152 = vmax.f32 %v959, %v1056
        %v1153 = vmax.f32 %v960, %v1057
        %v1154 = vmax.f32 %v961, %v1058
        %v1155 = vmax.f32 %v962, %v1059
        %v1156 = vmax.f32 %v963, %v1060
        %v1157 = vmax.f32 %v964, %v1061
        %v1158 = vmax.f32 %v965, %v1062
        %v1159 = vmax.f32 %v966, %v1063
        %v1160 = vmax.f32 %v967, %v1064
        %v1161 = vmax.f32 %v968, %v1065
        %v1162 = vmax.f32 %v969, %v1066
        %v1163 = vmax.f32 %v970, %v1067
        %v1164 = vmax.f32 %v971, %v1068
        %v1165 = vmax.f32 %v972, %v1069
        %v1166 = vmax.f32 %v973, %v1070
        %v1167 = vmax.f32 %v974, %v1071
        %v1168 = vmax.f32 %v975, %v1072
        %v1169 = vmax.f32 %v976, %v1073
        %v1170 = vmax.f32 %v977, %v1074
        %v1171 = vmax.f32 %v978, %v1075
        %v1172 = vmax.f32 %v979, %v1076
        %v1173 = vmax.f32 %v980, %v1077
        %v1174 = vmax.f32 %v981, %v1078
        %v1175 = vmax.f32 %v982, %v1079
        %v1176 = vmax.f32 %v983, %v1080
        %v1177 = vmax.f32 %v984, %v1081
        %v1178 = vmax.f32 %v985, %v1082
        %v1179 = vmax.f32 %v986, %v1083
        %v1180 = vmax.f32 %v987, %v1084
        %v1181 = vmax.f32 %v988, %v1085
        %v1182 = vmax.f32 %v989, %v1086
        %v1183 = vmax.f32 %v990, %v1087
        %v1184 = vmax.f32 %v991, %v1088
        %v1185 = vmax.f32 %v992, %v1089
        %v1186 = vmax.f32 %v993, %v1090
        %v1187 = vmax.f32 %v994, %v1091
        %v1188 = vmax.f32 %v995, %v1092
        %v1189 = vmax.f32 %v996, %v1093
        %v1190 = vmax.f32 %v997, %v1094
        %v1191 = vmax.f32 %v998, %v1095
        %v1192 = vmax.f32 %v999, %v1096
        %v1193 = vmax.f32 %v1000, %v1097
        %v1194 = vmax.f32 %v1001, %v1098
        %v1195 = vmax.f32 %v1002, %v1099
        %v1196 = vmax.f32 %v1003, %v1100
        %v1197 = vmax.f32 %v1004, %v1101
        %v1198 = vmax.f32 %v1005, %v1102
        %v1199 = vmax.f32 %v1006, %v1103
        %v1200 = vmax.f32 %v1007, %v1104
        %v1201 = vmax.f32 %v1008, %v1105
        %vm1298 = vcmask 1040384
        %v1299 = vrot.slane %v1106, 7
        %v1300 = vrot.slane %v1107, 7
        %v1301 = vsel %vm1298, %v1299, %v1300
        %v1302 = vrot.slane %v1108, 7
        %v1303 = vsel %vm1298, %v1300, %v1302
        %v1304 = vrot.slane %v1109, 7
        %v1305 = vsel %vm1298, %v1302, %v1304
        %v1306 = vrot.slane %v1110, 7
        %v1307 = vrot.slane %v1111, 7
        %v1308 = vsel %vm1298, %v1306, %v1307
        %v1309 = vrot.slane %v1112, 7
        %v1310 = vsel %vm1298, %v1307, %v1309
        %v1311 = vrot.slane %v1113, 7
        %v1312 = vsel %vm1298, %v1309, %v1311
        %v1313 = vrot.slane %v1114, 7
        %v1314 = vrot.slane %v1115, 7
        %v1315 = vsel %vm1298, %v1313, %v1314
        %v1316 = vrot.slane %v1116, 7
        %v1317 = vsel %vm1298, %v1314, %v1316
        %v1318 = vrot.slane %v1117, 7
        %v1319 = vsel %vm1298, %v1316, %v1318
        %v1320 = vrot.slane %v1118, 7
        %v1321 = vrot.slane %v1119, 7
        %v1322 = vsel %vm1298, %v1320, %v1321
        %v1323 = vrot.slane %v1120, 7
        %v1324 = vsel %vm1298, %v1321, %v1323
        %v1325 = vrot.slane %v1121, 7
        %v1326 = vsel %vm1298, %v1323, %v1325
        %v1327 = vrot.slane %v1122, 7
        %v1328 = vrot.slane %v1123, 7
        %v1329 = vsel %vm1298, %v1327, %v1328
        %v1330 = vrot.slane %v1124, 7
        %v1331 = vsel %vm1298, %v1328, %v1330
        %v1332 = vrot.slane %v1125, 7
        %v1333 = vsel %vm1298, %v1330, %v1332
        %v1334 = vrot.slane %v1126, 7
        %v1335 = vrot.slane %v1127, 7
        %v1336 = vsel %vm1298, %v1334, %v1335
        %v1337 = vrot.slane %v1128, 7
        %v1338 = vsel %vm1298, %v1335, %v1337
        %v1339 = vrot.slane %v1129, 7
        %v1340 = vsel %vm1298, %v1337, %v1339
        %v1341 = vrot.slane %v1130, 7
        %v1342 = vrot.slane %v1131, 7
        %v1343 = vsel %vm1298, %v1341, %v1342
        %v1344 = vrot.slane %v1132, 7
        %v1345 = vsel %vm1298, %v1342, %v1344
        %v1346 = vrot.slane %v1133, 7
        %v1347 = vsel %vm1298, %v1344, %v1346
        %v1348 = vrot.slane %v1134, 7
        %v1349 = vrot.slane %v1135, 7
        %v1350 = vsel %vm1298, %v1348, %v1349
        %v1351 = vrot.slane %v1136, 7
        %v1352 = vsel %vm1298, %v1349, %v1351
        %v1353 = vrot.slane %v1137, 7
        %v1354 = vsel %vm1298, %v1351, %v1353
        %v1355 = vrot.slane %v1138, 7
        %v1356 = vrot.slane %v1139, 7
        %v1357 = vsel %vm1298, %v1355, %v1356
        %v1358 = vrot.slane %v1140, 7
        %v1359 = vsel %vm1298, %v1356, %v1358
        %v1360 = vrot.slane %v1141, 7
        %v1361 = vsel %vm1298, %v1358, %v1360
        %v1362 = vrot.slane %v1142, 7
        %v1363 = vrot.slane %v1143, 7
        %v1364 = vsel %vm1298, %v1362, %v1363
        %v1365 = vrot.slane %v1144, 7
        %v1366 = vsel %vm1298, %v1363, %v1365
        %v1367 = vrot.slane %v1145, 7
        %v1368 = vsel %vm1298, %v1365, %v1367
        %v1369 = vrot.slane %v1146, 7
        %v1370 = vrot.slane %v1147, 7
        %v1371 = vsel %vm1298, %v1369, %v1370
        %v1372 = vrot.slane %v1148, 7
        %v1373 = vsel %vm1298, %v1370, %v1372
        %v1374 = vrot.slane %v1149, 7
        %v1375 = vsel %vm1298, %v1372, %v1374
        %v1376 = vrot.slane %v1150, 7
        %v1377 = vrot.slane %v1151, 7
        %v1378 = vsel %vm1298, %v1376, %v1377
        %v1379 = vrot.slane %v1152, 7
        %v1380 = vsel %vm1298, %v1377, %v1379
        %v1381 = vrot.slane %v1153, 7
        %v1382 = vsel %vm1298, %v1379, %v1381
        %v1383 = vrot.slane %v1154, 7
        %v1384 = vrot.slane %v1155, 7
        %v1385 = vsel %vm1298, %v1383, %v1384
        %v1386 = vrot.slane %v1156, 7
        %v1387 = vsel %vm1298, %v1384, %v1386
        %v1388 = vrot.slane %v1157, 7
        %v1389 = vsel %vm1298, %v1386, %v1388
        %v1390 = vrot.slane %v1158, 7
        %v1391 = vrot.slane %v1159, 7
        %v1392 = vsel %vm1298, %v1390, %v1391
        %v1393 = vrot.slane %v1160, 7
        %v1394 = vsel %vm1298, %v1391, %v1393
        %v1395 = vrot.slane %v1161, 7
        %v1396 = vsel %vm1298, %v1393, %v1395
        %v1397 = vrot.slane %v1162, 7
        %v1398 = vrot.slane %v1163, 7
        %v1399 = vsel %vm1298, %v1397, %v1398
        %v1400 = vrot.slane %v1164, 7
        %v1401 = vsel %vm1298, %v1398, %v1400
        %v1402 = vrot.slane %v1165, 7
        %v1403 = vsel %vm1298, %v1400, %v1402
        %v1404 = vrot.slane %v1166, 7
        %v1405 = vrot.slane %v1167, 7
        %v1406 = vsel %vm1298, %v1404, %v1405
        %v1407 = vrot.slane %v1168, 7
        %v1408 = vsel %vm1298, %v1405, %v1407
        %v1409 = vrot.slane %v1169, 7
        %v1410 = vsel %vm1298, %v1407, %v1409
        %v1411 = vrot.slane %v1170, 7
        %v1412 = vrot.slane %v1171, 7
        %v1413 = vsel %vm1298, %v1411, %v1412
        %v1414 = vrot.slane %v1172, 7
        %v1415 = vsel %vm1298, %v1412, %v1414
        %v1416 = vrot.slane %v1173, 7
        %v1417 = vsel %vm1298, %v1414, %v1416
        %v1418 = vrot.slane %v1174, 7
        %v1419 = vrot.slane %v1175, 7
        %v1420 = vsel %vm1298, %v1418, %v1419
        %v1421 = vrot.slane %v1176, 7
        %v1422 = vsel %vm1298, %v1419, %v1421
        %v1423 = vrot.slane %v1177, 7
        %v1424 = vsel %vm1298, %v1421, %v1423
        %v1425 = vrot.slane %v1178, 7
        %v1426 = vrot.slane %v1179, 7
        %v1427 = vsel %vm1298, %v1425, %v1426
        %v1428 = vrot.slane %v1180, 7
        %v1429 = vsel %vm1298, %v1426, %v1428
        %v1430 = vrot.slane %v1181, 7
        %v1431 = vsel %vm1298, %v1428, %v1430
        %v1432 = vrot.slane %v1182, 7
        %v1433 = vrot.slane %v1183, 7
        %v1434 = vsel %vm1298, %v1432, %v1433
        %v1435 = vrot.slane %v1184, 7
        %v1436 = vsel %vm1298, %v1433, %v1435
        %v1437 = vrot.slane %v1185, 7
        %v1438 = vsel %vm1298, %v1435, %v1437
        %v1439 = vrot.slane %v1186, 7
        %v1440 = vrot.slane %v1187, 7
        %v1441 = vsel %vm1298, %v1439, %v1440
        %v1442 = vrot.slane %v1188, 7
        %v1443 = vsel %vm1298, %v1440, %v1442
        %v1444 = vrot.slane %v1189, 7
        %v1445 = vsel %vm1298, %v1442, %v1444
        %v1446 = vrot.slane %v1190, 7
        %v1447 = vrot.slane %v1191, 7
        %v1448 = vsel %vm1298, %v1446, %v1447
        %v1449 = vrot.slane %v1192, 7
        %v1450 = vsel %vm1298, %v1447, %v1449
        %v1451 = vrot.slane %v1193, 7
        %v1452 = vsel %vm1298, %v1449, %v1451
        %v1453 = vrot.slane %v1194, 7
        %v1454 = vrot.slane %v1195, 7
        %v1455 = vsel %vm1298, %v1453, %v1454
        %v1456 = vrot.slane %v1196, 7
        %v1457 = vsel %vm1298, %v1454, %v1456
        %v1458 = vrot.slane %v1197, 7
        %v1459 = vsel %vm1298, %v1456, %v1458
        %v1460 = vrot.slane %v1198, 7
        %v1461 = vrot.slane %v1199, 7
        %v1462 = vsel %vm1298, %v1460, %v1461
        %v1463 = vrot.slane %v1200, 7
        %v1464 = vsel %vm1298, %v1461, %v1463
        %v1465 = vrot.slane %v1201, 7
        %v1466 = vsel %vm1298, %v1463, %v1465
        %v1563 = vmax.f32 %v1106, %v1299
        %v1564 = vmax.f32 %v1107, %v1301
        %v1565 = vmax.f32 %v1108, %v1303
        %v1566 = vmax.f32 %v1109, %v1305
        %v1567 = vmax.f32 %v1110, %v1306
        %v1568 = vmax.f32 %v1111, %v1308
        %v1569 = vmax.f32 %v1112, %v1310
        %v1570 = vmax.f32 %v1113, %v1312
        %v1571 = vmax.f32 %v1114, %v1313
        %v1572 = vmax.f32 %v1115, %v1315
        %v1573 = vmax.f32 %v1116, %v1317
        %v1574 = vmax.f32 %v1117, %v1319
        %v1575 = vmax.f32 %v1118, %v1320
        %v1576 = vmax.f32 %v1119, %v1322
        %v1577 = vmax.f32 %v1120, %v1324
        %v1578 = vmax.f32 %v1121, %v1326
        %v1579 = vmax.f32 %v1122, %v1327
        %v1580 = vmax.f32 %v1123, %v1329
        %v1581 = vmax.f32 %v1124, %v1331
        %v1582 = vmax.f32 %v1125, %v1333
        %v1583 = vmax.f32 %v1126, %v1334
        %v1584 = vmax.f32 %v1127, %v1336
        %v1585 = vmax.f32 %v1128, %v1338
        %v1586 = vmax.f32 %v1129, %v1340
        %v1587 = vmax.f32 %v1130, %v1341
        %v1588 = vmax.f32 %v1131, %v1343
        %v1589 = vmax.f32 %v1132, %v1345
        %v1590 = vmax.f32 %v1133, %v1347
        %v1591 = vmax.f32 %v1134, %v1348
        %v1592 = vmax.f32 %v1135, %v1350
        %v1593 = vmax.f32 %v1136, %v1352
        %v1594 = vmax.f32 %v1137, %v1354
        %v1595 = vmax.f32 %v1138, %v1355
        %v1596 = vmax.f32 %v1139, %v1357
        %v1597 = vmax.f32 %v1140, %v1359
        %v1598 = vmax.f32 %v1141, %v1361
        %v1599 = vmax.f32 %v1142, %v1362
        %v1600 = vmax.f32 %v1143, %v1364
        %v1601 = vmax.f32 %v1144, %v1366
        %v1602 = vmax.f32 %v1145, %v1368
        %v1603 = vmax.f32 %v1146, %v1369
        %v1604 = vmax.f32 %v1147, %v1371
        %v1605 = vmax.f32 %v1148, %v1373
        %v1606 = vmax.f32 %v1149, %v1375
        %v1607 = vmax.f32 %v1150, %v1376
        %v1608 = vmax.f32 %v1151, %v1378
        %v1609 = vmax.f32 %v1152, %v1380
        %v1610 = vmax.f32 %v1153, %v1382
        %v1611 = vmax.f32 %v1154, %v1383
        %v1612 = vmax.f32 %v1155, %v1385
        %v1613 = vmax.f32 %v1156, %v1387
        %v1614 = vmax.f32 %v1157, %v1389
        %v1615 = vmax.f32 %v1158, %v1390
        %v1616 = vmax.f32 %v1159, %v1392
        %v1617 = vmax.f32 %v1160, %v1394
        %v1618 = vmax.f32 %v1161, %v1396
        %v1619 = vmax.f32 %v1162, %v1397
        %v1620 = vmax.f32 %v1163, %v1399
        %v1621 = vmax.f32 %v1164, %v1401
        %v1622 = vmax.f32 %v1165, %v1403
        %v1623 = vmax.f32 %v1166, %v1404
        %v1624 = vmax.f32 %v1167, %v1406
        %v1625 = vmax.f32 %v1168, %v1408
        %v1626 = vmax.f32 %v1169, %v1410
        %v1627 = vmax.f32 %v1170, %v1411
        %v1628 = vmax.f32 %v1171, %v1413
        %v1629 = vmax.f32 %v1172, %v1415
        %v1630 = vmax.f32 %v1173, %v1417
        %v1631 = vmax.f32 %v1174, %v1418
        %v1632 = vmax.f32 %v1175, %v1420
        %v1633 = vmax.f32 %v1176, %v1422
        %v1634 = vmax.f32 %v1177, %v1424
        %v1635 = vmax.f32 %v1178, %v1425
        %v1636 = vmax.f32 %v1179, %v1427
        %v1637 = vmax.f32 %v1180, %v1429
        %v1638 = vmax.f32 %v1181, %v1431
        %v1639 = vmax.f32 %v1182, %v1432
        %v1640 = vmax.f32 %v1183, %v1434
        %v1641 = vmax.f32 %v1184, %v1436
        %v1642 = vmax.f32 %v1185, %v1438
        %v1643 = vmax.f32 %v1186, %v1439
        %v1644 = vmax.f32 %v1187, %v1441
        %v1645 = vmax.f32 %v1188, %v1443
        %v1646 = vmax.f32 %v1189, %v1445
        %v1647 = vmax.f32 %v1190, %v1446
        %v1648 = vmax.f32 %v1191, %v1448
        %v1649 = vmax.f32 %v1192, %v1450
        %v1650 = vmax.f32 %v1193, %v1452
        %v1651 = vmax.f32 %v1194, %v1453
        %v1652 = vmax.f32 %v1195, %v1455
        %v1653 = vmax.f32 %v1196, %v1457
        %v1654 = vmax.f32 %v1197, %v1459
        %v1655 = vmax.f32 %v1198, %v1460
        %v1656 = vmax.f32 %v1199, %v1462
        %v1657 = vmax.f32 %v1200, %v1464
        %v1658 = vmax.f32 %v1201, %v1466
        %vm1659 = vcmask 1046528
        %v1660 = vrot.slane %v1106, 1
        %v1661 = vrot.slane %v1107, 1
        %v1662 = vsel %vm1659, %v1660, %v1661
        %v1663 = vrot.slane %v1108, 1
        %v1664 = vsel %vm1659, %v1661, %v1663
        %v1665 = vrot.slane %v1109, 1
        %v1666 = vsel %vm1659, %v1663, %v1665
        %v1667 = vrot.slane %v1110, 1
        %v1668 = vrot.slane %v1111, 1
        %v1669 = vsel %vm1659, %v1667, %v1668
        %v1670 = vrot.slane %v1112, 1
        %v1671 = vsel %vm1659, %v1668, %v1670
        %v1672 = vrot.slane %v1113, 1
        %v1673 = vsel %vm1659, %v1670, %v1672
        %v1674 = vrot.slane %v1114, 1
        %v1675 = vrot.slane %v1115, 1
        %v1676 = vsel %vm1659, %v1674, %v1675
        %v1677 = vrot.slane %v1116, 1
        %v1678 = vsel %vm1659, %v1675, %v1677
        %v1679 = vrot.slane %v1117, 1
        %v1680 = vsel %vm1659, %v1677, %v1679
        %v1681 = vrot.slane %v1118, 1
        %v1682 = vrot.slane %v1119, 1
        %v1683 = vsel %vm1659, %v1681, %v1682
        %v1684 = vrot.slane %v1120, 1
        %v1685 = vsel %vm1659, %v1682, %v1684
        %v1686 = vrot.slane %v1121, 1
        %v1687 = vsel %vm1659, %v1684, %v1686
        %v1688 = vrot.slane %v1122, 1
        %v1689 = vrot.slane %v1123, 1
        %v1690 = vsel %vm1659, %v1688, %v1689
        %v1691 = vrot.slane %v1124, 1
        %v1692 = vsel %vm1659, %v1689, %v1691
        %v1693 = vrot.slane %v1125, 1
        %v1694 = vsel %vm1659, %v1691, %v1693
        %v1695 = vrot.slane %v1126, 1
        %v1696 = vrot.slane %v1127, 1
        %v1697 = vsel %vm1659, %v1695, %v1696
        %v1698 = vrot.slane %v1128, 1
        %v1699 = vsel %vm1659, %v1696, %v1698
        %v1700 = vrot.slane %v1129, 1
        %v1701 = vsel %vm1659, %v1698, %v1700
        %v1702 = vrot.slane %v1130, 1
        %v1703 = vrot.slane %v1131, 1
        %v1704 = vsel %vm1659, %v1702, %v1703
        %v1705 = vrot.slane %v1132, 1
        %v1706 = vsel %vm1659, %v1703, %v1705
        %v1707 = vrot.slane %v1133, 1
        %v1708 = vsel %vm1659, %v1705, %v1707
        %v1709 = vrot.slane %v1134, 1
        %v1710 = vrot.slane %v1135, 1
        %v1711 = vsel %vm1659, %v1709, %v1710
        %v1712 = vrot.slane %v1136, 1
        %v1713 = vsel %vm1659, %v1710, %v1712
        %v1714 = vrot.slane %v1137, 1
        %v1715 = vsel %vm1659, %v1712, %v1714
        %v1716 = vrot.slane %v1138, 1
        %v1717 = vrot.slane %v1139, 1
        %v1718 = vsel %vm1659, %v1716, %v1717
        %v1719 = vrot.slane %v1140, 1
        %v1720 = vsel %vm1659, %v1717, %v1719
        %v1721 = vrot.slane %v1141, 1
        %v1722 = vsel %vm1659, %v1719, %v1721
        %v1723 = vrot.slane %v1142, 1
        %v1724 = vrot.slane %v1143, 1
        %v1725 = vsel %vm1659, %v1723, %v1724
        %v1726 = vrot.slane %v1144, 1
        %v1727 = vsel %vm1659, %v1724, %v1726
        %v1728 = vrot.slane %v1145, 1
        %v1729 = vsel %vm1659, %v1726, %v1728
        %v1730 = vrot.slane %v1146, 1
        %v1731 = vrot.slane %v1147, 1
        %v1732 = vsel %vm1659, %v1730, %v1731
        %v1733 = vrot.slane %v1148, 1
        %v1734 = vsel %vm1659, %v1731, %v1733
        %v1735 = vrot.slane %v1149, 1
        %v1736 = vsel %vm1659, %v1733, %v1735
        %v1737 = vrot.slane %v1150, 1
        %v1738 = vrot.slane %v1151, 1
        %v1739 = vsel %vm1659, %v1737, %v1738
        %v1740 = vrot.slane %v1152, 1
        %v1741 = vsel %vm1659, %v1738, %v1740
        %v1742 = vrot.slane %v1153, 1
        %v1743 = vsel %vm1659, %v1740, %v1742
        %v1744 = vrot.slane %v1154, 1
        %v1745 = vrot.slane %v1155, 1
        %v1746 = vsel %vm1659, %v1744, %v1745
        %v1747 = vrot.slane %v1156, 1
        %v1748 = vsel %vm1659, %v1745, %v1747
        %v1749 = vrot.slane %v1157, 1
        %v1750 = vsel %vm1659, %v1747, %v1749
        %v1751 = vrot.slane %v1158, 1
        %v1752 = vrot.slane %v1159, 1
        %v1753 = vsel %vm1659, %v1751, %v1752
        %v1754 = vrot.slane %v1160, 1
        %v1755 = vsel %vm1659, %v1752, %v1754
        %v1756 = vrot.slane %v1161, 1
        %v1757 = vsel %vm1659, %v1754, %v1756
        %v1758 = vrot.slane %v1162, 1
        %v1759 = vrot.slane %v1163, 1
        %v1760 = vsel %vm1659, %v1758, %v1759
        %v1761 = vrot.slane %v1164, 1
        %v1762 = vsel %vm1659, %v1759, %v1761
        %v1763 = vrot.slane %v1165, 1
        %v1764 = vsel %vm1659, %v1761, %v1763
        %v1765 = vrot.slane %v1166, 1
        %v1766 = vrot.slane %v1167, 1
        %v1767 = vsel %vm1659, %v1765, %v1766
        %v1768 = vrot.slane %v1168, 1
        %v1769 = vsel %vm1659, %v1766, %v1768
        %v1770 = vrot.slane %v1169, 1
        %v1771 = vsel %vm1659, %v1768, %v1770
        %v1772 = vrot.slane %v1170, 1
        %v1773 = vrot.slane %v1171, 1
        %v1774 = vsel %vm1659, %v1772, %v1773
        %v1775 = vrot.slane %v1172, 1
        %v1776 = vsel %vm1659, %v1773, %v1775
        %v1777 = vrot.slane %v1173, 1
        %v1778 = vsel %vm1659, %v1775, %v1777
        %v1779 = vrot.slane %v1174, 1
        %v1780 = vrot.slane %v1175, 1
        %v1781 = vsel %vm1659, %v1779, %v1780
        %v1782 = vrot.slane %v1176, 1
        %v1783 = vsel %vm1659, %v1780, %v1782
        %v1784 = vrot.slane %v1177, 1
        %v1785 = vsel %vm1659, %v1782, %v1784
        %v1786 = vrot.slane %v1178, 1
        %v1787 = vrot.slane %v1179, 1
        %v1788 = vsel %vm1659, %v1786, %v1787
        %v1789 = vrot.slane %v1180, 1
        %v1790 = vsel %vm1659, %v1787, %v1789
        %v1791 = vrot.slane %v1181, 1
        %v1792 = vsel %vm1659, %v1789, %v1791
        %v1793 = vrot.slane %v1182, 1
        %v1794 = vrot.slane %v1183, 1
        %v1795 = vsel %vm1659, %v1793, %v1794
        %v1796 = vrot.slane %v1184, 1
        %v1797 = vsel %vm1659, %v1794, %v1796
        %v1798 = vrot.slane %v1185, 1
        %v1799 = vsel %vm1659, %v1796, %v1798
        %v1800 = vrot.slane %v1186, 1
        %v1801 = vrot.slane %v1187, 1
        %v1802 = vsel %vm1659, %v1800, %v1801
        %v1803 = vrot.slane %v1188, 1
        %v1804 = vsel %vm1659, %v1801, %v1803
        %v1805 = vrot.slane %v1189, 1
        %v1806 = vsel %vm1659, %v1803, %v1805
        %v1807 = vrot.slane %v1190, 1
        %v1808 = vrot.slane %v1191, 1
        %v1809 = vsel %vm1659, %v1807, %v1808
        %v1810 = vrot.slane %v1192, 1
        %v1811 = vsel %vm1659, %v1808, %v1810
        %v1812 = vrot.slane %v1193, 1
        %v1813 = vsel %vm1659, %v1810, %v1812
        %v1814 = vrot.slane %v1194, 1
        %v1815 = vrot.slane %v1195, 1
        %v1816 = vsel %vm1659, %v1814, %v1815
        %v1817 = vrot.slane %v1196, 1
        %v1818 = vsel %vm1659, %v1815, %v1817
        %v1819 = vrot.slane %v1197, 1
        %v1820 = vsel %vm1659, %v1817, %v1819
        %v1821 = vrot.slane %v1198, 1
        %v1822 = vrot.slane %v1199, 1
        %v1823 = vsel %vm1659, %v1821, %v1822
        %v1824 = vrot.slane %v1200, 1
        %v1825 = vsel %vm1659, %v1822, %v1824
        %v1826 = vrot.slane %v1201, 1
        %v1827 = vsel %vm1659, %v1824, %v1826
        %v1924 = vmax.f32 %v1563, %v1662
        %v1925 = vmax.f32 %v1564, %v1664
        %v1926 = vmax.f32 %v1565, %v1666
        %v1927 = vmax.f32 %v1566, %v1665
        %v1928 = vmax.f32 %v1567, %v1669
        %v1929 = vmax.f32 %v1568, %v1671
        %v1930 = vmax.f32 %v1569, %v1673
        %v1931 = vmax.f32 %v1570, %v1672
        %v1932 = vmax.f32 %v1571, %v1676
        %v1933 = vmax.f32 %v1572, %v1678
        %v1934 = vmax.f32 %v1573, %v1680
        %v1935 = vmax.f32 %v1574, %v1679
        %v1936 = vmax.f32 %v1575, %v1683
        %v1937 = vmax.f32 %v1576, %v1685
        %v1938 = vmax.f32 %v1577, %v1687
        %v1939 = vmax.f32 %v1578, %v1686
        %v1940 = vmax.f32 %v1579, %v1690
        %v1941 = vmax.f32 %v1580, %v1692
        %v1942 = vmax.f32 %v1581, %v1694
        %v1943 = vmax.f32 %v1582, %v1693
        %v1944 = vmax.f32 %v1583, %v1697
        %v1945 = vmax.f32 %v1584, %v1699
        %v1946 = vmax.f32 %v1585, %v1701
        %v1947 = vmax.f32 %v1586, %v1700
        %v1948 = vmax.f32 %v1587, %v1704
        %v1949 = vmax.f32 %v1588, %v1706
        %v1950 = vmax.f32 %v1589, %v1708
        %v1951 = vmax.f32 %v1590, %v1707
        %v1952 = vmax.f32 %v1591, %v1711
        %v1953 = vmax.f32 %v1592, %v1713
        %v1954 = vmax.f32 %v1593, %v1715
        %v1955 = vmax.f32 %v1594, %v1714
        %v1956 = vmax.f32 %v1595, %v1718
        %v1957 = vmax.f32 %v1596, %v1720
        %v1958 = vmax.f32 %v1597, %v1722
        %v1959 = vmax.f32 %v1598, %v1721
        %v1960 = vmax.f32 %v1599, %v1725
        %v1961 = vmax.f32 %v1600, %v1727
        %v1962 = vmax.f32 %v1601, %v1729
        %v1963 = vmax.f32 %v1602, %v1728
        %v1964 = vmax.f32 %v1603, %v1732
        %v1965 = vmax.f32 %v1604, %v1734
        %v1966 = vmax.f32 %v1605, %v1736
        %v1967 = vmax.f32 %v1606, %v1735
        %v1968 = vmax.f32 %v1607, %v1739
        %v1969 = vmax.f32 %v1608, %v1741
        %v1970 = vmax.f32 %v1609, %v1743
        %v1971 = vmax.f32 %v1610, %v1742
        %v1972 = vmax.f32 %v1611, %v1746
        %v1973 = vmax.f32 %v1612, %v1748
        %v1974 = vmax.f32 %v1613, %v1750
        %v1975 = vmax.f32 %v1614, %v1749
        %v1976 = vmax.f32 %v1615, %v1753
        %v1977 = vmax.f32 %v1616, %v1755
        %v1978 = vmax.f32 %v1617, %v1757
        %v1979 = vmax.f32 %v1618, %v1756
        %v1980 = vmax.f32 %v1619, %v1760
        %v1981 = vmax.f32 %v1620, %v1762
        %v1982 = vmax.f32 %v1621, %v1764
        %v1983 = vmax.f32 %v1622, %v1763
        %v1984 = vmax.f32 %v1623, %v1767
        %v1985 = vmax.f32 %v1624, %v1769
        %v1986 = vmax.f32 %v1625, %v1771
        %v1987 = vmax.f32 %v1626, %v1770
        %v1988 = vmax.f32 %v1627, %v1774
        %v1989 = vmax.f32 %v1628, %v1776
        %v1990 = vmax.f32 %v1629, %v1778
        %v1991 = vmax.f32 %v1630, %v1777
        %v1992 = vmax.f32 %v1631, %v1781
        %v1993 = vmax.f32 %v1632, %v1783
        %v1994 = vmax.f32 %v1633, %v1785
        %v1995 = vmax.f32 %v1634, %v1784
        %v1996 = vmax.f32 %v1635, %v1788
        %v1997 = vmax.f32 %v1636, %v1790
        %v1998 = vmax.f32 %v1637, %v1792
        %v1999 = vmax.f32 %v1638, %v1791
        %v2000 = vmax.f32 %v1639, %v1795
        %v2001 = vmax.f32 %v1640, %v1797
        %v2002 = vmax.f32 %v1641, %v1799
        %v2003 = vmax.f32 %v1642, %v1798
        %v2004 = vmax.f32 %v1643, %v1802
        %v2005 = vmax.f32 %v1644, %v1804
        %v2006 = vmax.f32 %v1645, %v1806
        %v2007 = vmax.f32 %v1646, %v1805
        %v2008 = vmax.f32 %v1647, %v1809
        %v2009 = vmax.f32 %v1648, %v1811
        %v2010 = vmax.f32 %v1649, %v1813
        %v2011 = vmax.f32 %v1650, %v1812
        %v2012 = vmax.f32 %v1651, %v1816
        %v2013 = vmax.f32 %v1652, %v1818
        %v2014 = vmax.f32 %v1653, %v1820
        %v2015 = vmax.f32 %v1654, %v1819
        %v2016 = vmax.f32 %v1655, %v1823
        %v2017 = vmax.f32 %v1656, %v1825
        %v2018 = vmax.f32 %v1657, %v1827
        %v2019 = vmax.f32 %v1658, %v1826
        %vm2020 = vcmask 1041408
        %v2021 = vrot.slane %v1106, 6
        %v2022 = vrot.slane %v1107, 6
        %v2023 = vsel %vm2020, %v2021, %v2022
        %v2024 = vrot.slane %v1108, 6
        %v2025 = vsel %vm2020, %v2022, %v2024
        %v2026 = vrot.slane %v1109, 6
        %v2027 = vsel %vm2020, %v2024, %v2026
        %v2028 = vrot.slane %v1110, 6
        %v2029 = vrot.slane %v1111, 6
        %v2030 = vsel %vm2020, %v2028, %v2029
        %v2031 = vrot.slane %v1112, 6
        %v2032 = vsel %vm2020, %v2029, %v2031
        %v2033 = vrot.slane %v1113, 6
        %v2034 = vsel %vm2020, %v2031, %v2033
        %v2035 = vrot.slane %v1114, 6
        %v2036 = vrot.slane %v1115, 6
        %v2037 = vsel %vm2020, %v2035, %v2036
        %v2038 = vrot.slane %v1116, 6
        %v2039 = vsel %vm2020, %v2036, %v2038
        %v2040 = vrot.slane %v1117, 6
        %v2041 = vsel %vm2020, %v2038, %v2040
        %v2042 = vrot.slane %v1118, 6
        %v2043 = vrot.slane %v1119, 6
        %v2044 = vsel %vm2020, %v2042, %v2043
        %v2045 = vrot.slane %v1120, 6
        %v2046 = vsel %vm2020, %v2043, %v2045
        %v2047 = vrot.slane %v1121, 6
        %v2048 = vsel %vm2020, %v2045, %v2047
        %v2049 = vrot.slane %v1122, 6
        %v2050 = vrot.slane %v1123, 6
        %v2051 = vsel %vm2020, %v2049, %v2050
        %v2052 = vrot.slane %v1124, 6
        %v2053 = vsel %vm2020, %v2050, %v2052
        %v2054 = vrot.slane %v1125, 6
        %v2055 = vsel %vm2020, %v2052, %v2054
        %v2056 = vrot.slane %v1126, 6
        %v2057 = vrot.slane %v1127, 6
        %v2058 = vsel %vm2020, %v2056, %v2057
        %v2059 = vrot.slane %v1128, 6
        %v2060 = vsel %vm2020, %v2057, %v2059
        %v2061 = vrot.slane %v1129, 6
        %v2062 = vsel %vm2020, %v2059, %v2061
        %v2063 = vrot.slane %v1130, 6
        %v2064 = vrot.slane %v1131, 6
        %v2065 = vsel %vm2020, %v2063, %v2064
        %v2066 = vrot.slane %v1132, 6
        %v2067 = vsel %vm2020, %v2064, %v2066
        %v2068 = vrot.slane %v1133, 6
        %v2069 = vsel %vm2020, %v2066, %v2068
        %v2070 = vrot.slane %v1134, 6
        %v2071 = vrot.slane %v1135, 6
        %v2072 = vsel %vm2020, %v2070, %v2071
        %v2073 = vrot.slane %v1136, 6
        %v2074 = vsel %vm2020, %v2071, %v2073
        %v2075 = vrot.slane %v1137, 6
        %v2076 = vsel %vm2020, %v2073, %v2075
        %v2077 = vrot.slane %v1138, 6
        %v2078 = vrot.slane %v1139, 6
        %v2079 = vsel %vm2020, %v2077, %v2078
        %v2080 = vrot.slane %v1140, 6
        %v2081 = vsel %vm2020, %v2078, %v2080
        %v2082 = vrot.slane %v1141, 6
        %v2083 = vsel %vm2020, %v2080, %v2082
        %v2084 = vrot.slane %v1142, 6
        %v2085 = vrot.slane %v1143, 6
        %v2086 = vsel %vm2020, %v2084, %v2085
        %v2087 = vrot.slane %v1144, 6
        %v2088 = vsel %vm2020, %v2085, %v2087
        %v2089 = vrot.slane %v1145, 6
        %v2090 = vsel %vm2020, %v2087, %v2089
        %v2091 = vrot.slane %v1146, 6
        %v2092 = vrot.slane %v1147, 6
        %v2093 = vsel %vm2020, %v2091, %v2092
        %v2094 = vrot.slane %v1148, 6
        %v2095 = vsel %vm2020, %v2092, %v2094
        %v2096 = vrot.slane %v1149, 6
        %v2097 = vsel %vm2020, %v2094, %v2096
        %v2098 = vrot.slane %v1150, 6
        %v2099 = vrot.slane %v1151, 6
        %v2100 = vsel %vm2020, %v2098, %v2099
        %v2101 = vrot.slane %v1152, 6
        %v2102 = vsel %vm2020, %v2099, %v2101
        %v2103 = vrot.slane %v1153, 6
        %v2104 = vsel %vm2020, %v2101, %v2103
        %v2105 = vrot.slane %v1154, 6
        %v2106 = vrot.slane %v1155, 6
        %v2107 = vsel %vm2020, %v2105, %v2106
        %v2108 = vrot.slane %v1156, 6
        %v2109 = vsel %vm2020, %v2106, %v2108
        %v2110 = vrot.slane %v1157, 6
        %v2111 = vsel %vm2020, %v2108, %v2110
        %v2112 = vrot.slane %v1158, 6
        %v2113 = vrot.slane %v1159, 6
        %v2114 = vsel %vm2020, %v2112, %v2113
        %v2115 = vrot.slane %v1160, 6
        %v2116 = vsel %vm2020, %v2113, %v2115
        %v2117 = vrot.slane %v1161, 6
        %v2118 = vsel %vm2020, %v2115, %v2117
        %v2119 = vrot.slane %v1162, 6
        %v2120 = vrot.slane %v1163, 6
        %v2121 = vsel %vm2020, %v2119, %v2120
        %v2122 = vrot.slane %v1164, 6
        %v2123 = vsel %vm2020, %v2120, %v2122
        %v2124 = vrot.slane %v1165, 6
        %v2125 = vsel %vm2020, %v2122, %v2124
        %v2126 = vrot.slane %v1166, 6
        %v2127 = vrot.slane %v1167, 6
        %v2128 = vsel %vm2020, %v2126, %v2127
        %v2129 = vrot.slane %v1168, 6
        %v2130 = vsel %vm2020, %v2127, %v2129
        %v2131 = vrot.slane %v1169, 6
        %v2132 = vsel %vm2020, %v2129, %v2131
        %v2133 = vrot.slane %v1170, 6
        %v2134 = vrot.slane %v1171, 6
        %v2135 = vsel %vm2020, %v2133, %v2134
        %v2136 = vrot.slane %v1172, 6
        %v2137 = vsel %vm2020, %v2134, %v2136
        %v2138 = vrot.slane %v1173, 6
        %v2139 = vsel %vm2020, %v2136, %v2138
        %v2140 = vrot.slane %v1174, 6
        %v2141 = vrot.slane %v1175, 6
        %v2142 = vsel %vm2020, %v2140, %v2141
        %v2143 = vrot.slane %v1176, 6
        %v2144 = vsel %vm2020, %v2141, %v2143
        %v2145 = vrot.slane %v1177, 6
        %v2146 = vsel %vm2020, %v2143, %v2145
        %v2147 = vrot.slane %v1178, 6
        %v2148 = vrot.slane %v1179, 6
        %v2149 = vsel %vm2020, %v2147, %v2148
        %v2150 = vrot.slane %v1180, 6
        %v2151 = vsel %vm2020, %v2148, %v2150
        %v2152 = vrot.slane %v1181, 6
        %v2153 = vsel %vm2020, %v2150, %v2152
        %v2154 = vrot.slane %v1182, 6
        %v2155 = vrot.slane %v1183, 6
        %v2156 = vsel %vm2020, %v2154, %v2155
        %v2157 = vrot.slane %v1184, 6
        %v2158 = vsel %vm2020, %v2155, %v2157
        %v2159 = vrot.slane %v1185, 6
        %v2160 = vsel %vm2020, %v2157, %v2159
        %v2161 = vrot.slane %v1186, 6
        %v2162 = vrot.slane %v1187, 6
        %v2163 = vsel %vm2020, %v2161, %v2162
        %v2164 = vrot.slane %v1188, 6
        %v2165 = vsel %vm2020, %v2162, %v2164
        %v2166 = vrot.slane %v1189, 6
        %v2167 = vsel %vm2020, %v2164, %v2166
        %v2168 = vrot.slane %v1190, 6
        %v2169 = vrot.slane %v1191, 6
        %v2170 = vsel %vm2020, %v2168, %v2169
        %v2171 = vrot.slane %v1192, 6
        %v2172 = vsel %vm2020, %v2169, %v2171
        %v2173 = vrot.slane %v1193, 6
        %v2174 = vsel %vm2020, %v2171, %v2173
        %v2175 = vrot.slane %v1194, 6
        %v2176 = vrot.slane %v1195, 6
        %v2177 = vsel %vm2020, %v2175, %v2176
        %v2178 = vrot.slane %v1196, 6
        %v2179 = vsel %vm2020, %v2176, %v2178
        %v2180 = vrot.slane %v1197, 6
        %v2181 = vsel %vm2020, %v2178, %v2180
        %v2182 = vrot.slane %v1198, 6
        %v2183 = vrot.slane %v1199, 6
        %v2184 = vsel %vm2020, %v2182, %v2183
        %v2185 = vrot.slane %v1200, 6
        %v2186 = vsel %vm2020, %v2183, %v2185
        %v2187 = vrot.slane %v1201, 6
        %v2188 = vsel %vm2020, %v2185, %v2187
        %v2285 = vmax.f32 %v1924, %v2021
        %v2286 = vmax.f32 %v1925, %v2023
        %v2287 = vmax.f32 %v1926, %v2025
        %v2288 = vmax.f32 %v1927, %v2027
        %v2289 = vmax.f32 %v1928, %v2028
        %v2290 = vmax.f32 %v1929, %v2030
        %v2291 = vmax.f32 %v1930, %v2032
        %v2292 = vmax.f32 %v1931, %v2034
        %v2293 = vmax.f32 %v1932, %v2035
        %v2294 = vmax.f32 %v1933, %v2037
        %v2295 = vmax.f32 %v1934, %v2039
        %v2296 = vmax.f32 %v1935, %v2041
        %v2297 = vmax.f32 %v1936, %v2042
        %v2298 = vmax.f32 %v1937, %v2044
        %v2299 = vmax.f32 %v1938, %v2046
        %v2300 = vmax.f32 %v1939, %v2048
        %v2301 = vmax.f32 %v1940, %v2049
        %v2302 = vmax.f32 %v1941, %v2051
        %v2303 = vmax.f32 %v1942, %v2053
        %v2304 = vmax.f32 %v1943, %v2055
        %v2305 = vmax.f32 %v1944, %v2056
        %v2306 = vmax.f32 %v1945, %v2058
        %v2307 = vmax.f32 %v1946, %v2060
        %v2308 = vmax.f32 %v1947, %v2062
        %v2309 = vmax.f32 %v1948, %v2063
        %v2310 = vmax.f32 %v1949, %v2065
        %v2311 = vmax.f32 %v1950, %v2067
        %v2312 = vmax.f32 %v1951, %v2069
        %v2313 = vmax.f32 %v1952, %v2070
        %v2314 = vmax.f32 %v1953, %v2072
        %v2315 = vmax.f32 %v1954, %v2074
        %v2316 = vmax.f32 %v1955, %v2076
        %v2317 = vmax.f32 %v1956, %v2077
        %v2318 = vmax.f32 %v1957, %v2079
        %v2319 = vmax.f32 %v1958, %v2081
        %v2320 = vmax.f32 %v1959, %v2083
        %v2321 = vmax.f32 %v1960, %v2084
        %v2322 = vmax.f32 %v1961, %v2086
        %v2323 = vmax.f32 %v1962, %v2088
        %v2324 = vmax.f32 %v1963, %v2090
        %v2325 = vmax.f32 %v1964, %v2091
        %v2326 = vmax.f32 %v1965, %v2093
        %v2327 = vmax.f32 %v1966, %v2095
        %v2328 = vmax.f32 %v1967, %v2097
        %v2329 = vmax.f32 %v1968, %v2098
        %v2330 = vmax.f32 %v1969, %v2100
        %v2331 = vmax.f32 %v1970, %v2102
        %v2332 = vmax.f32 %v1971, %v2104
        %v2333 = vmax.f32 %v1972, %v2105
        %v2334 = vmax.f32 %v1973, %v2107
        %v2335 = vmax.f32 %v1974, %v2109
        %v2336 = vmax.f32 %v1975, %v2111
        %v2337 = vmax.f32 %v1976, %v2112
        %v2338 = vmax.f32 %v1977, %v2114
        %v2339 = vmax.f32 %v1978, %v2116
        %v2340 = vmax.f32 %v1979, %v2118
        %v2341 = vmax.f32 %v1980, %v2119
        %v2342 = vmax.f32 %v1981, %v2121
        %v2343 = vmax.f32 %v1982, %v2123
        %v2344 = vmax.f32 %v1983, %v2125
        %v2345 = vmax.f32 %v1984, %v2126
        %v2346 = vmax.f32 %v1985, %v2128
        %v2347 = vmax.f32 %v1986, %v2130
        %v2348 = vmax.f32 %v1987, %v2132
        %v2349 = vmax.f32 %v1988, %v2133
        %v2350 = vmax.f32 %v1989, %v2135
        %v2351 = vmax.f32 %v1990, %v2137
        %v2352 = vmax.f32 %v1991, %v2139
        %v2353 = vmax.f32 %v1992, %v2140
        %v2354 = vmax.f32 %v1993, %v2142
        %v2355 = vmax.f32 %v1994, %v2144
        %v2356 = vmax.f32 %v1995, %v2146
        %v2357 = vmax.f32 %v1996, %v2147
        %v2358 = vmax.f32 %v1997, %v2149
        %v2359 = vmax.f32 %v1998, %v2151
        %v2360 = vmax.f32 %v1999, %v2153
        %v2361 = vmax.f32 %v2000, %v2154
        %v2362 = vmax.f32 %v2001, %v2156
        %v2363 = vmax.f32 %v2002, %v2158
        %v2364 = vmax.f32 %v2003, %v2160
        %v2365 = vmax.f32 %v2004, %v2161
        %v2366 = vmax.f32 %v2005, %v2163
        %v2367 = vmax.f32 %v2006, %v2165
        %v2368 = vmax.f32 %v2007, %v2167
        %v2369 = vmax.f32 %v2008, %v2168
        %v2370 = vmax.f32 %v2009, %v2170
        %v2371 = vmax.f32 %v2010, %v2172
        %v2372 = vmax.f32 %v2011, %v2174
        %v2373 = vmax.f32 %v2012, %v2175
        %v2374 = vmax.f32 %v2013, %v2177
        %v2375 = vmax.f32 %v2014, %v2179
        %v2376 = vmax.f32 %v2015, %v2181
        %v2377 = vmax.f32 %v2016, %v2182
        %v2378 = vmax.f32 %v2017, %v2184
        %v2379 = vmax.f32 %v2018, %v2186
        %v2380 = vmax.f32 %v2019, %v2188
        %vm2381 = vcmask 1045504
        %v2382 = vrot.slane %v1106, 2
        %v2383 = vrot.slane %v1107, 2
        %v2384 = vsel %vm2381, %v2382, %v2383
        %v2385 = vrot.slane %v1108, 2
        %v2386 = vsel %vm2381, %v2383, %v2385
        %v2387 = vrot.slane %v1109, 2
        %v2388 = vsel %vm2381, %v2385, %v2387
        %v2389 = vrot.slane %v1110, 2
        %v2390 = vrot.slane %v1111, 2
        %v2391 = vsel %vm2381, %v2389, %v2390
        %v2392 = vrot.slane %v1112, 2
        %v2393 = vsel %vm2381, %v2390, %v2392
        %v2394 = vrot.slane %v1113, 2
        %v2395 = vsel %vm2381, %v2392, %v2394
        %v2396 = vrot.slane %v1114, 2
        %v2397 = vrot.slane %v1115, 2
        %v2398 = vsel %vm2381, %v2396, %v2397
        %v2399 = vrot.slane %v1116, 2
        %v2400 = vsel %vm2381, %v2397, %v2399
        %v2401 = vrot.slane %v1117, 2
        %v2402 = vsel %vm2381, %v2399, %v2401
        %v2403 = vrot.slane %v1118, 2
        %v2404 = vrot.slane %v1119, 2
        %v2405 = vsel %vm2381, %v2403, %v2404
        %v2406 = vrot.slane %v1120, 2
        %v2407 = vsel %vm2381, %v2404, %v2406
        %v2408 = vrot.slane %v1121, 2
        %v2409 = vsel %vm2381, %v2406, %v2408
        %v2410 = vrot.slane %v1122, 2
        %v2411 = vrot.slane %v1123, 2
        %v2412 = vsel %vm2381, %v2410, %v2411
        %v2413 = vrot.slane %v1124, 2
        %v2414 = vsel %vm2381, %v2411, %v2413
        %v2415 = vrot.slane %v1125, 2
        %v2416 = vsel %vm2381, %v2413, %v2415
        %v2417 = vrot.slane %v1126, 2
        %v2418 = vrot.slane %v1127, 2
        %v2419 = vsel %vm2381, %v2417, %v2418
        %v2420 = vrot.slane %v1128, 2
        %v2421 = vsel %vm2381, %v2418, %v2420
        %v2422 = vrot.slane %v1129, 2
        %v2423 = vsel %vm2381, %v2420, %v2422
        %v2424 = vrot.slane %v1130, 2
        %v2425 = vrot.slane %v1131, 2
        %v2426 = vsel %vm2381, %v2424, %v2425
        %v2427 = vrot.slane %v1132, 2
        %v2428 = vsel %vm2381, %v2425, %v2427
        %v2429 = vrot.slane %v1133, 2
        %v2430 = vsel %vm2381, %v2427, %v2429
        %v2431 = vrot.slane %v1134, 2
        %v2432 = vrot.slane %v1135, 2
        %v2433 = vsel %vm2381, %v2431, %v2432
        %v2434 = vrot.slane %v1136, 2
        %v2435 = vsel %vm2381, %v2432, %v2434
        %v2436 = vrot.slane %v1137, 2
        %v2437 = vsel %vm2381, %v2434, %v2436
        %v2438 = vrot.slane %v1138, 2
        %v2439 = vrot.slane %v1139, 2
        %v2440 = vsel %vm2381, %v2438, %v2439
        %v2441 = vrot.slane %v1140, 2
        %v2442 = vsel %vm2381, %v2439, %v2441
        %v2443 = vrot.slane %v1141, 2
        %v2444 = vsel %vm2381, %v2441, %v2443
        %v2445 = vrot.slane %v1142, 2
        %v2446 = vrot.slane %v1143, 2
        %v2447 = vsel %vm2381, %v2445, %v2446
        %v2448 = vrot.slane %v1144, 2
        %v2449 = vsel %vm2381, %v2446, %v2448
        %v2450 = vrot.slane %v1145, 2
        %v2451 = vsel %vm2381, %v2448, %v2450
        %v2452 = vrot.slane %v1146, 2
        %v2453 = vrot.slane %v1147, 2
        %v2454 = vsel %vm2381, %v2452, %v2453
        %v2455 = vrot.slane %v1148, 2
        %v2456 = vsel %vm2381, %v2453, %v2455
        %v2457 = vrot.slane %v1149, 2
        %v2458 = vsel %vm2381, %v2455, %v2457
        %v2459 = vrot.slane %v1150, 2
        %v2460 = vrot.slane %v1151, 2
        %v2461 = vsel %vm2381, %v2459, %v2460
        %v2462 = vrot.slane %v1152, 2
        %v2463 = vsel %vm2381, %v2460, %v2462
        %v2464 = vrot.slane %v1153, 2
        %v2465 = vsel %vm2381, %v2462, %v2464
        %v2466 = vrot.slane %v1154, 2
        %v2467 = vrot.slane %v1155, 2
        %v2468 = vsel %vm2381, %v2466, %v2467
        %v2469 = vrot.slane %v1156, 2
        %v2470 = vsel %vm2381, %v2467, %v2469
        %v2471 = vrot.slane %v1157, 2
        %v2472 = vsel %vm2381, %v2469, %v2471
        %v2473 = vrot.slane %v1158, 2
        %v2474 = vrot.slane %v1159, 2
        %v2475 = vsel %vm2381, %v2473, %v2474
        %v2476 = vrot.slane %v1160, 2
        %v2477 = vsel %vm2381, %v2474, %v2476
        %v2478 = vrot.slane %v1161, 2
        %v2479 = vsel %vm2381, %v2476, %v2478
        %v2480 = vrot.slane %v1162, 2
        %v2481 = vrot.slane %v1163, 2
        %v2482 = vsel %vm2381, %v2480, %v2481
        %v2483 = vrot.slane %v1164, 2
        %v2484 = vsel %vm2381, %v2481, %v2483
        %v2485 = vrot.slane %v1165, 2
        %v2486 = vsel %vm2381, %v2483, %v2485
        %v2487 = vrot.slane %v1166, 2
        %v2488 = vrot.slane %v1167, 2
        %v2489 = vsel %vm2381, %v2487, %v2488
        %v2490 = vrot.slane %v1168, 2
        %v2491 = vsel %vm2381, %v2488, %v2490
        %v2492 = vrot.slane %v1169, 2
        %v2493 = vsel %vm2381, %v2490, %v2492
        %v2494 = vrot.slane %v1170, 2
        %v2495 = vrot.slane %v1171, 2
        %v2496 = vsel %vm2381, %v2494, %v2495
        %v2497 = vrot.slane %v1172, 2
        %v2498 = vsel %vm2381, %v2495, %v2497
        %v2499 = vrot.slane %v1173, 2
        %v2500 = vsel %vm2381, %v2497, %v2499
        %v2501 = vrot.slane %v1174, 2
        %v2502 = vrot.slane %v1175, 2
        %v2503 = vsel %vm2381, %v2501, %v2502
        %v2504 = vrot.slane %v1176, 2
        %v2505 = vsel %vm2381, %v2502, %v2504
        %v2506 = vrot.slane %v1177, 2
        %v2507 = vsel %vm2381, %v2504, %v2506
        %v2508 = vrot.slane %v1178, 2
        %v2509 = vrot.slane %v1179, 2
        %v2510 = vsel %vm2381, %v2508, %v2509
        %v2511 = vrot.slane %v1180, 2
        %v2512 = vsel %vm2381, %v2509, %v2511
        %v2513 = vrot.slane %v1181, 2
        %v2514 = vsel %vm2381, %v2511, %v2513
        %v2515 = vrot.slane %v1182, 2
        %v2516 = vrot.slane %v1183, 2
        %v2517 = vsel %vm2381, %v2515, %v2516
        %v2518 = vrot.slane %v1184, 2
        %v2519 = vsel %vm2381, %v2516, %v2518
        %v2520 = vrot.slane %v1185, 2
        %v2521 = vsel %vm2381, %v2518, %v2520
        %v2522 = vrot.slane %v1186, 2
        %v2523 = vrot.slane %v1187, 2
        %v2524 = vsel %vm2381, %v2522, %v2523
        %v2525 = vrot.slane %v1188, 2
        %v2526 = vsel %vm2381, %v2523, %v2525
        %v2527 = vrot.slane %v1189, 2
        %v2528 = vsel %vm2381, %v2525, %v2527
        %v2529 = vrot.slane %v1190, 2
        %v2530 = vrot.slane %v1191, 2
        %v2531 = vsel %vm2381, %v2529, %v2530
        %v2532 = vrot.slane %v1192, 2
        %v2533 = vsel %vm2381, %v2530, %v2532
        %v2534 = vrot.slane %v1193, 2
        %v2535 = vsel %vm2381, %v2532, %v2534
        %v2536 = vrot.slane %v1194, 2
        %v2537 = vrot.slane %v1195, 2
        %v2538 = vsel %vm2381, %v2536, %v2537
        %v2539 = vrot.slane %v1196, 2
        %v2540 = vsel %vm2381, %v2537, %v2539
        %v2541 = vrot.slane %v1197, 2
        %v2542 = vsel %vm2381, %v2539, %v2541
        %v2543 = vrot.slane %v1198, 2
        %v2544 = vrot.slane %v1199, 2
        %v2545 = vsel %vm2381, %v2543, %v2544
        %v2546 = vrot.slane %v1200, 2
        %v2547 = vsel %vm2381, %v2544, %v2546
        %v2548 = vrot.slane %v1201, 2
        %v2549 = vsel %vm2381, %v2546, %v2548
        %v2646 = vmax.f32 %v2285, %v2384
        %v2647 = vmax.f32 %v2286, %v2386
        %v2648 = vmax.f32 %v2287, %v2388
        %v2649 = vmax.f32 %v2288, %v2387
        %v2650 = vmax.f32 %v2289, %v2391
        %v2651 = vmax.f32 %v2290, %v2393
        %v2652 = vmax.f32 %v2291, %v2395
        %v2653 = vmax.f32 %v2292, %v2394
        %v2654 = vmax.f32 %v2293, %v2398
        %v2655 = vmax.f32 %v2294, %v2400
        %v2656 = vmax.f32 %v2295, %v2402
        %v2657 = vmax.f32 %v2296, %v2401
        %v2658 = vmax.f32 %v2297, %v2405
        %v2659 = vmax.f32 %v2298, %v2407
        %v2660 = vmax.f32 %v2299, %v2409
        %v2661 = vmax.f32 %v2300, %v2408
        %v2662 = vmax.f32 %v2301, %v2412
        %v2663 = vmax.f32 %v2302, %v2414
        %v2664 = vmax.f32 %v2303, %v2416
        %v2665 = vmax.f32 %v2304, %v2415
        %v2666 = vmax.f32 %v2305, %v2419
        %v2667 = vmax.f32 %v2306, %v2421
        %v2668 = vmax.f32 %v2307, %v2423
        %v2669 = vmax.f32 %v2308, %v2422
        %v2670 = vmax.f32 %v2309, %v2426
        %v2671 = vmax.f32 %v2310, %v2428
        %v2672 = vmax.f32 %v2311, %v2430
        %v2673 = vmax.f32 %v2312, %v2429
        %v2674 = vmax.f32 %v2313, %v2433
        %v2675 = vmax.f32 %v2314, %v2435
        %v2676 = vmax.f32 %v2315, %v2437
        %v2677 = vmax.f32 %v2316, %v2436
        %v2678 = vmax.f32 %v2317, %v2440
        %v2679 = vmax.f32 %v2318, %v2442
        %v2680 = vmax.f32 %v2319, %v2444
        %v2681 = vmax.f32 %v2320, %v2443
        %v2682 = vmax.f32 %v2321, %v2447
        %v2683 = vmax.f32 %v2322, %v2449
        %v2684 = vmax.f32 %v2323, %v2451
        %v2685 = vmax.f32 %v2324, %v2450
        %v2686 = vmax.f32 %v2325, %v2454
        %v2687 = vmax.f32 %v2326, %v2456
        %v2688 = vmax.f32 %v2327, %v2458
        %v2689 = vmax.f32 %v2328, %v2457
        %v2690 = vmax.f32 %v2329, %v2461
        %v2691 = vmax.f32 %v2330, %v2463
        %v2692 = vmax.f32 %v2331, %v2465
        %v2693 = vmax.f32 %v2332, %v2464
        %v2694 = vmax.f32 %v2333, %v2468
        %v2695 = vmax.f32 %v2334, %v2470
        %v2696 = vmax.f32 %v2335, %v2472
        %v2697 = vmax.f32 %v2336, %v2471
        %v2698 = vmax.f32 %v2337, %v2475
        %v2699 = vmax.f32 %v2338, %v2477
        %v2700 = vmax.f32 %v2339, %v2479
        %v2701 = vmax.f32 %v2340, %v2478
        %v2702 = vmax.f32 %v2341, %v2482
        %v2703 = vmax.f32 %v2342, %v2484
        %v2704 = vmax.f32 %v2343, %v2486
        %v2705 = vmax.f32 %v2344, %v2485
        %v2706 = vmax.f32 %v2345, %v2489
        %v2707 = vmax.f32 %v2346, %v2491
        %v2708 = vmax.f32 %v2347, %v2493
        %v2709 = vmax.f32 %v2348, %v2492
        %v2710 = vmax.f32 %v2349, %v2496
        %v2711 = vmax.f32 %v2350, %v2498
        %v2712 = vmax.f32 %v2351, %v2500
        %v2713 = vmax.f32 %v2352, %v2499
        %v2714 = vmax.f32 %v2353, %v2503
        %v2715 = vmax.f32 %v2354, %v2505
        %v2716 = vmax.f32 %v2355, %v2507
        %v2717 = vmax.f32 %v2356, %v2506
        %v2718 = vmax.f32 %v2357, %v2510
        %v2719 = vmax.f32 %v2358, %v2512
        %v2720 = vmax.f32 %v2359, %v2514
        %v2721 = vmax.f32 %v2360, %v2513
        %v2722 = vmax.f32 %v2361, %v2517
        %v2723 = vmax.f32 %v2362, %v2519
        %v2724 = vmax.f32 %v2363, %v2521
        %v2725 = vmax.f32 %v2364, %v2520
        %v2726 = vmax.f32 %v2365, %v2524
        %v2727 = vmax.f32 %v2366, %v2526
        %v2728 = vmax.f32 %v2367, %v2528
        %v2729 = vmax.f32 %v2368, %v2527
        %v2730 = vmax.f32 %v2369, %v2531
        %v2731 = vmax.f32 %v2370, %v2533
        %v2732 = vmax.f32 %v2371, %v2535
        %v2733 = vmax.f32 %v2372, %v2534
        %v2734 = vmax.f32 %v2373, %v2538
        %v2735 = vmax.f32 %v2374, %v2540
        %v2736 = vmax.f32 %v2375, %v2542
        %v2737 = vmax.f32 %v2376, %v2541
        %v2738 = vmax.f32 %v2377, %v2545
        %v2739 = vmax.f32 %v2378, %v2547
        %v2740 = vmax.f32 %v2379, %v2549
        %v2741 = vmax.f32 %v2380, %v2548
        %vm2742 = vcmask 31746
        %2743 = vst.msk [vmem:[#allocation3 - $0x2] sm:$0xfc] %vm2742, %v2646
        %2744 = vst.msk [vmem:[#allocation3 + $0x6] sm:$0xff] %vm151, %v2647
        %2745 = vst.msk [vmem:[#allocation3 + $0xe] sm:$0xff] %vm151, %v2648
        %vm2746 = vcmask 29696
        %2747 = vst.msk [vmem:[#allocation3 + $0x16] sm:$0x3f] %vm2746, %v2649
        %2748 = vst.msk [vmem:[#allocation3 + $0x1e] sm:$0xfc] %vm2742, %v2650
        %2749 = vst.msk [vmem:[#allocation3 + $0x26] sm:$0xff] %vm151, %v2651
        %2750 = vst.msk [vmem:[#allocation3 + $0x2e] sm:$0xff] %vm151, %v2652
        %2751 = vst.msk [vmem:[#allocation3 + $0x36] sm:$0x3f] %vm2746, %v2653
        %2752 = vst.msk [vmem:[#allocation3 + $0x3e] sm:$0xfc] %vm2742, %v2654
        %2753 = vst.msk [vmem:[#allocation3 + $0x46] sm:$0xff] %vm151, %v2655
        %2754 = vst.msk [vmem:[#allocation3 + $0x4e] sm:$0xff] %vm151, %v2656
        %2755 = vst.msk [vmem:[#allocation3 + $0x56] sm:$0x3f] %vm2746, %v2657
        %2756 = vst.msk [vmem:[#allocation3 + $0x5e] sm:$0xfc] %vm2742, %v2658
        %2757 = vst.msk [vmem:[#allocation3 + $0x66] sm:$0xff] %vm151, %v2659
        %2758 = vst.msk [vmem:[#allocation3 + $0x6e] sm:$0xff] %vm151, %v2660
        %2759 = vst.msk [vmem:[#allocation3 + $0x76] sm:$0x3f] %vm2746, %v2661
        %2760 = vst.msk [vmem:[#allocation3 + $0x7e] sm:$0xfc] %vm2742, %v2662
        %2761 = vst.msk [vmem:[#allocation3 + $0x86] sm:$0xff] %vm151, %v2663
        %2762 = vst.msk [vmem:[#allocation3 + $0x8e] sm:$0xff] %vm151, %v2664
        %2763 = vst.msk [vmem:[#allocation3 + $0x96] sm:$0x3f] %vm2746, %v2665
        %2764 = vst.msk [vmem:[#allocation3 + $0x9e] sm:$0xfc] %vm2742, %v2666
        %2765 = vst.msk [vmem:[#allocation3 + $0xa6] sm:$0xff] %vm151, %v2667
        %2766 = vst.msk [vmem:[#allocation3 + $0xae] sm:$0xff] %vm151, %v2668
        %2767 = vst.msk [vmem:[#allocation3 + $0xb6] sm:$0x3f] %vm2746, %v2669
        %2768 = vst.msk [vmem:[#allocation3 + $0xbe] sm:$0xfc] %vm2742, %v2670
        %2769 = vst.msk [vmem:[#allocation3 + $0xc6] sm:$0xff] %vm151, %v2671
        %2770 = vst.msk [vmem:[#allocation3 + $0xce] sm:$0xff] %vm151, %v2672
        %2771 = vst.msk [vmem:[#allocation3 + $0xd6] sm:$0x3f] %vm2746, %v2673
        %2772 = vst.msk [vmem:[#allocation3 + $0xde] sm:$0xfc] %vm2742, %v2674
        %2773 = vst.msk [vmem:[#allocation3 + $0xe6] sm:$0xff] %vm151, %v2675
        %2774 = vst.msk [vmem:[#allocation3 + $0xee] sm:$0xff] %vm151, %v2676
        %2775 = vst.msk [vmem:[#allocation3 + $0xf6] sm:$0x3f] %vm2746, %v2677
        %2776 = vst.msk [vmem:[#allocation3 + $0xfe] sm:$0xfc] %vm2742, %v2678
        %2777 = vst.msk [vmem:[#allocation3 + $0x106] sm:$0xff] %vm151, %v2679
        %2778 = vst.msk [vmem:[#allocation3 + $0x10e] sm:$0xff] %vm151, %v2680
        %2779 = vst.msk [vmem:[#allocation3 + $0x116] sm:$0x3f] %vm2746, %v2681
        %2780 = vst.msk [vmem:[#allocation3 + $0x11e] sm:$0xfc] %vm2742, %v2682
        %2781 = vst.msk [vmem:[#allocation3 + $0x126] sm:$0xff] %vm151, %v2683
        %2782 = vst.msk [vmem:[#allocation3 + $0x12e] sm:$0xff] %vm151, %v2684
        %2783 = vst.msk [vmem:[#allocation3 + $0x136] sm:$0x3f] %vm2746, %v2685
        %2784 = vst.msk [vmem:[#allocation3 + $0x13e] sm:$0xfc] %vm2742, %v2686
        %2785 = vst.msk [vmem:[#allocation3 + $0x146] sm:$0xff] %vm151, %v2687
        %2786 = vst.msk [vmem:[#allocation3 + $0x14e] sm:$0xff] %vm151, %v2688
        %2787 = vst.msk [vmem:[#allocation3 + $0x156] sm:$0x3f] %vm2746, %v2689
        %2788 = vst.msk [vmem:[#allocation3 + $0x15e] sm:$0xfc] %vm2742, %v2690
        %2789 = vst.msk [vmem:[#allocation3 + $0x166] sm:$0xff] %vm151, %v2691
        %2790 = vst.msk [vmem:[#allocation3 + $0x16e] sm:$0xff] %vm151, %v2692
        %2791 = vst.msk [vmem:[#allocation3 + $0x176] sm:$0x3f] %vm2746, %v2693
        %2792 = vst.msk [vmem:[#allocation3 + $0x17e] sm:$0xfc] %vm2742, %v2694
        %2793 = vst.msk [vmem:[#allocation3 + $0x186] sm:$0xff] %vm151, %v2695
        %2794 = vst.msk [vmem:[#allocation3 + $0x18e] sm:$0xff] %vm151, %v2696
        %2795 = vst.msk [vmem:[#allocation3 + $0x196] sm:$0x3f] %vm2746, %v2697
        %2796 = vst.msk [vmem:[#allocation3 + $0x19e] sm:$0xfc] %vm2742, %v2698
        %2797 = vst.msk [vmem:[#allocation3 + $0x1a6] sm:$0xff] %vm151, %v2699
        %2798 = vst.msk [vmem:[#allocation3 + $0x1ae] sm:$0xff] %vm151, %v2700
        %2799 = vst.msk [vmem:[#allocation3 + $0x1b6] sm:$0x3f] %vm2746, %v2701
        %2800 = vst.msk [vmem:[#allocation3 + $0x1be] sm:$0xfc] %vm2742, %v2702
        %2801 = vst.msk [vmem:[#allocation3 + $0x1c6] sm:$0xff] %vm151, %v2703
        %2802 = vst.msk [vmem:[#allocation3 + $0x1ce] sm:$0xff] %vm151, %v2704
        %2803 = vst.msk [vmem:[#allocation3 + $0x1d6] sm:$0x3f] %vm2746, %v2705
        %2804 = vst.msk [vmem:[#allocation3 + $0x1de] sm:$0xfc] %vm2742, %v2706
        %2805 = vst.msk [vmem:[#allocation3 + $0x1e6] sm:$0xff] %vm151, %v2707
        %2806 = vst.msk [vmem:[#allocation3 + $0x1ee] sm:$0xff] %vm151, %v2708
        %2807 = vst.msk [vmem:[#allocation3 + $0x1f6] sm:$0x3f] %vm2746, %v2709
        %2808 = vst.msk [vmem:[#allocation3 + $0x1fe] sm:$0xfc] %vm2742, %v2710
        %2809 = vst.msk [vmem:[#allocation3 + $0x206] sm:$0xff] %vm151, %v2711
        %2810 = vst.msk [vmem:[#allocation3 + $0x20e] sm:$0xff] %vm151, %v2712
        %2811 = vst.msk [vmem:[#allocation3 + $0x216] sm:$0x3f] %vm2746, %v2713
        %2812 = vst.msk [vmem:[#allocation3 + $0x21e] sm:$0xfc] %vm2742, %v2714
        %2813 = vst.msk [vmem:[#allocation3 + $0x226] sm:$0xff] %vm151, %v2715
        %2814 = vst.msk [vmem:[#allocation3 + $0x22e] sm:$0xff] %vm151, %v2716
        %2815 = vst.msk [vmem:[#allocation3 + $0x236] sm:$0x3f] %vm2746, %v2717
        %2816 = vst.msk [vmem:[#allocation3 + $0x23e] sm:$0xfc] %vm2742, %v2718
        %2817 = vst.msk [vmem:[#allocation3 + $0x246] sm:$0xff] %vm151, %v2719
        %2818 = vst.msk [vmem:[#allocation3 + $0x24e] sm:$0xff] %vm151, %v2720
        %2819 = vst.msk [vmem:[#allocation3 + $0x256] sm:$0x3f] %vm2746, %v2721
        %2820 = vst.msk [vmem:[#allocation3 + $0x25e] sm:$0xfc] %vm2742, %v2722
        %2821 = vst.msk [vmem:[#allocation3 + $0x266] sm:$0xff] %vm151, %v2723
        %2822 = vst.msk [vmem:[#allocation3 + $0x26e] sm:$0xff] %vm151, %v2724
        %2823 = vst.msk [vmem:[#allocation3 + $0x276] sm:$0x3f] %vm2746, %v2725
        %2824 = vst.msk [vmem:[#allocation3 + $0x27e] sm:$0xfc] %vm2742, %v2726
        %2825 = vst.msk [vmem:[#allocation3 + $0x286] sm:$0xff] %vm151, %v2727
        %2826 = vst.msk [vmem:[#allocation3 + $0x28e] sm:$0xff] %vm151, %v2728
        %2827 = vst.msk [vmem:[#allocation3 + $0x296] sm:$0x3f] %vm2746, %v2729
        %2828 = vst.msk [vmem:[#allocation3 + $0x29e] sm:$0xfc] %vm2742, %v2730
        %2829 = vst.msk [vmem:[#allocation3 + $0x2a6] sm:$0xff] %vm151, %v2731
        %2830 = vst.msk [vmem:[#allocation3 + $0x2ae] sm:$0xff] %vm151, %v2732
        %2831 = vst.msk [vmem:[#allocation3 + $0x2b6] sm:$0x3f] %vm2746, %v2733
        %2832 = vst.msk [vmem:[#allocation3 + $0x2be] sm:$0xfc] %vm2742, %v2734
        %2833 = vst.msk [vmem:[#allocation3 + $0x2c6] sm:$0xff] %vm151, %v2735
        %2834 = vst.msk [vmem:[#allocation3 + $0x2ce] sm:$0xff] %vm151, %v2736
        %2835 = vst.msk [vmem:[#allocation3 + $0x2d6] sm:$0x3f] %vm2746, %v2737
        %2836 = vst.msk [vmem:[#allocation3 + $0x2de] sm:$0xfc] %vm2742, %v2738
        %2837 = vst.msk [vmem:[#allocation3 + $0x2e6] sm:$0xff] %vm151, %v2739
        %2838 = vst.msk [vmem:[#allocation3 + $0x2ee] sm:$0xff] %vm151, %v2740
        %2839 = vst.msk [vmem:[#allocation3 + $0x2f6] sm:$0x3f] %vm2746, %v2741
        %s2840 = scalar_lea.vmem [#allocation3], 64
        %v2841 = vld [vmem:[%s2840] sm:$0xff]
        %v2842 = vld [vmem:[%s2840 + $0x8] sm:$0xff]
        %v2843 = vld [vmem:[%s2840 + $0x10] sm:$0xff]
        %v2844 = vld [vmem:[%s2840 + $0x18] sm:$0xf]
        %v2845 = vld [vmem:[%s2840 + $0x20] sm:$0xff]
        %v2846 = vld [vmem:[%s2840 + $0x28] sm:$0xff]
        %v2847 = vld [vmem:[%s2840 + $0x30] sm:$0xff]
        %v2848 = vld [vmem:[%s2840 + $0x38] sm:$0xf]
        %v2849 = vld [vmem:[%s2840 + $0x40] sm:$0xff]
        %v2850 = vld [vmem:[%s2840 + $0x48] sm:$0xff]
        %v2851 = vld [vmem:[%s2840 + $0x50] sm:$0xff]
        %v2852 = vld [vmem:[%s2840 + $0x58] sm:$0xf]
        %v2853 = vld [vmem:[%s2840 + $0x60] sm:$0xff]
        %v2854 = vld [vmem:[%s2840 + $0x68] sm:$0xff]
        %v2855 = vld [vmem:[%s2840 + $0x70] sm:$0xff]
        %v2856 = vld [vmem:[%s2840 + $0x78] sm:$0xf]
        %v2857 = vld [vmem:[%s2840 + $0x80] sm:$0xff]
        %v2858 = vld [vmem:[%s2840 + $0x88] sm:$0xff]
        %v2859 = vld [vmem:[%s2840 + $0x90] sm:$0xff]
        %v2860 = vld [vmem:[%s2840 + $0x98] sm:$0xf]
        %v2861 = vld [vmem:[%s2840 + $0xa0] sm:$0xff]
        %v2862 = vld [vmem:[%s2840 + $0xa8] sm:$0xff]
        %v2863 = vld [vmem:[%s2840 + $0xb0] sm:$0xff]
        %v2864 = vld [vmem:[%s2840 + $0xb8] sm:$0xf]
        %v2865 = vld [vmem:[%s2840 + $0xc0] sm:$0xff]
        %v2866 = vld [vmem:[%s2840 + $0xc8] sm:$0xff]
        %v2867 = vld [vmem:[%s2840 + $0xd0] sm:$0xff]
        %v2868 = vld [vmem:[%s2840 + $0xd8] sm:$0xf]
        %v2869 = vld [vmem:[%s2840 + $0xe0] sm:$0xff]
        %v2870 = vld [vmem:[%s2840 + $0xe8] sm:$0xff]
        %v2871 = vld [vmem:[%s2840 + $0xf0] sm:$0xff]
        %v2872 = vld [vmem:[%s2840 + $0xf8] sm:$0xf]
        %v2873 = vld [vmem:[%s2840 + $0x100] sm:$0xff]
        %v2874 = vld [vmem:[%s2840 + $0x108] sm:$0xff]
        %v2875 = vld [vmem:[%s2840 + $0x110] sm:$0xff]
        %v2876 = vld [vmem:[%s2840 + $0x118] sm:$0xf]
        %v2877 = vld [vmem:[%s2840 + $0x120] sm:$0xff]
        %v2878 = vld [vmem:[%s2840 + $0x128] sm:$0xff]
        %v2879 = vld [vmem:[%s2840 + $0x130] sm:$0xff]
        %v2880 = vld [vmem:[%s2840 + $0x138] sm:$0xf]
        %v2881 = vld [vmem:[%s2840 + $0x140] sm:$0xff]
        %v2882 = vld [vmem:[%s2840 + $0x148] sm:$0xff]
        %v2883 = vld [vmem:[%s2840 + $0x150] sm:$0xff]
        %v2884 = vld [vmem:[%s2840 + $0x158] sm:$0xf]
        %v2885 = vld [vmem:[%s2840 + $0x160] sm:$0xff]
        %v2886 = vld [vmem:[%s2840 + $0x168] sm:$0xff]
        %v2887 = vld [vmem:[%s2840 + $0x170] sm:$0xff]
        %v2888 = vld [vmem:[%s2840 + $0x178] sm:$0xf]
        %v2889 = vld [vmem:[%s2840 + $0x180] sm:$0xff]
        %v2890 = vld [vmem:[%s2840 + $0x188] sm:$0xff]
        %v2891 = vld [vmem:[%s2840 + $0x190] sm:$0xff]
        %v2892 = vld [vmem:[%s2840 + $0x198] sm:$0xf]
        %v2893 = vld [vmem:[%s2840 + $0x1a0] sm:$0xff]
        %v2894 = vld [vmem:[%s2840 + $0x1a8] sm:$0xff]
        %v2895 = vld [vmem:[%s2840 + $0x1b0] sm:$0xff]
        %v2896 = vld [vmem:[%s2840 + $0x1b8] sm:$0xf]
        %v2897 = vld [vmem:[%s2840 + $0x1c0] sm:$0xff]
        %v2898 = vld [vmem:[%s2840 + $0x1c8] sm:$0xff]
        %v2899 = vld [vmem:[%s2840 + $0x1d0] sm:$0xff]
        %v2900 = vld [vmem:[%s2840 + $0x1d8] sm:$0xf]
        %v2901 = vld [vmem:[%s2840 + $0x1e0] sm:$0xff]
        %v2902 = vld [vmem:[%s2840 + $0x1e8] sm:$0xff]
        %v2903 = vld [vmem:[%s2840 + $0x1f0] sm:$0xff]
        %v2904 = vld [vmem:[%s2840 + $0x1f8] sm:$0xf]
        %v2905 = vld [vmem:[%s2840 + $0x200] sm:$0xff]
        %v2906 = vld [vmem:[%s2840 + $0x208] sm:$0xff]
        %v2907 = vld [vmem:[%s2840 + $0x210] sm:$0xff]
        %v2908 = vld [vmem:[%s2840 + $0x218] sm:$0xf]
        %v2909 = vld [vmem:[%s2840 + $0x220] sm:$0xff]
        %v2910 = vld [vmem:[%s2840 + $0x228] sm:$0xff]
        %v2911 = vld [vmem:[%s2840 + $0x230] sm:$0xff]
        %v2912 = vld [vmem:[%s2840 + $0x238] sm:$0xf]
        %v2913 = vld [vmem:[%s2840 + $0x240] sm:$0xff]
        %v2914 = vld [vmem:[%s2840 + $0x248] sm:$0xff]
        %v2915 = vld [vmem:[%s2840 + $0x250] sm:$0xff]
        %v2916 = vld [vmem:[%s2840 + $0x258] sm:$0xf]
        %v2917 = vld [vmem:[%s2840 + $0x260] sm:$0xff]
        %v2918 = vld [vmem:[%s2840 + $0x268] sm:$0xff]
        %v2919 = vld [vmem:[%s2840 + $0x270] sm:$0xff]
        %v2920 = vld [vmem:[%s2840 + $0x278] sm:$0xf]
        %s2921 = scalar_lea.vmem [#allocation3], 32
        %v2922 = vld [vmem:[%s2921] sm:$0xff]
        %v2923 = vld [vmem:[%s2921 + $0x8] sm:$0xff]
        %v2924 = vld [vmem:[%s2921 + $0x10] sm:$0xff]
        %v2925 = vld [vmem:[%s2921 + $0x18] sm:$0xf]
        %v2926 = vld [vmem:[%s2921 + $0x20] sm:$0xff]
        %v2927 = vld [vmem:[%s2921 + $0x28] sm:$0xff]
        %v2928 = vld [vmem:[%s2921 + $0x30] sm:$0xff]
        %v2929 = vld [vmem:[%s2921 + $0x38] sm:$0xf]
        %v2930 = vld [vmem:[%s2921 + $0x40] sm:$0xff]
        %v2931 = vld [vmem:[%s2921 + $0x48] sm:$0xff]
        %v2932 = vld [vmem:[%s2921 + $0x50] sm:$0xff]
        %v2933 = vld [vmem:[%s2921 + $0x58] sm:$0xf]
        %v2934 = vld [vmem:[%s2921 + $0x60] sm:$0xff]
        %v2935 = vld [vmem:[%s2921 + $0x68] sm:$0xff]
        %v2936 = vld [vmem:[%s2921 + $0x70] sm:$0xff]
        %v2937 = vld [vmem:[%s2921 + $0x78] sm:$0xf]
        %v2938 = vld [vmem:[%s2921 + $0x80] sm:$0xff]
        %v2939 = vld [vmem:[%s2921 + $0x88] sm:$0xff]
        %v2940 = vld [vmem:[%s2921 + $0x90] sm:$0xff]
        %v2941 = vld [vmem:[%s2921 + $0x98] sm:$0xf]
        %v2942 = vld [vmem:[%s2921 + $0xa0] sm:$0xff]
        %v2943 = vld [vmem:[%s2921 + $0xa8] sm:$0xff]
        %v2944 = vld [vmem:[%s2921 + $0xb0] sm:$0xff]
        %v2945 = vld [vmem:[%s2921 + $0xb8] sm:$0xf]
        %v2946 = vld [vmem:[%s2921 + $0xc0] sm:$0xff]
        %v2947 = vld [vmem:[%s2921 + $0xc8] sm:$0xff]
        %v2948 = vld [vmem:[%s2921 + $0xd0] sm:$0xff]
        %v2949 = vld [vmem:[%s2921 + $0xd8] sm:$0xf]
        %v2950 = vld [vmem:[%s2921 + $0xe0] sm:$0xff]
        %v2951 = vld [vmem:[%s2921 + $0xe8] sm:$0xff]
        %v2952 = vld [vmem:[%s2921 + $0xf0] sm:$0xff]
        %v2953 = vld [vmem:[%s2921 + $0xf8] sm:$0xf]
        %v2954 = vld [vmem:[%s2921 + $0x100] sm:$0xff]
        %v2955 = vld [vmem:[%s2921 + $0x108] sm:$0xff]
        %v2956 = vld [vmem:[%s2921 + $0x110] sm:$0xff]
        %v2957 = vld [vmem:[%s2921 + $0x118] sm:$0xf]
        %v2958 = vld [vmem:[%s2921 + $0x120] sm:$0xff]
        %v2959 = vld [vmem:[%s2921 + $0x128] sm:$0xff]
        %v2960 = vld [vmem:[%s2921 + $0x130] sm:$0xff]
        %v2961 = vld [vmem:[%s2921 + $0x138] sm:$0xf]
        %v2962 = vld [vmem:[%s2921 + $0x140] sm:$0xff]
        %v2963 = vld [vmem:[%s2921 + $0x148] sm:$0xff]
        %v2964 = vld [vmem:[%s2921 + $0x150] sm:$0xff]
        %v2965 = vld [vmem:[%s2921 + $0x158] sm:$0xf]
        %v2966 = vld [vmem:[%s2921 + $0x160] sm:$0xff]
        %v2967 = vld [vmem:[%s2921 + $0x168] sm:$0xff]
        %v2968 = vld [vmem:[%s2921 + $0x170] sm:$0xff]
        %v2969 = vld [vmem:[%s2921 + $0x178] sm:$0xf]
        %v2970 = vld [vmem:[%s2921 + $0x180] sm:$0xff]
        %v2971 = vld [vmem:[%s2921 + $0x188] sm:$0xff]
        %v2972 = vld [vmem:[%s2921 + $0x190] sm:$0xff]
        %v2973 = vld [vmem:[%s2921 + $0x198] sm:$0xf]
        %v2974 = vld [vmem:[%s2921 + $0x1a0] sm:$0xff]
        %v2975 = vld [vmem:[%s2921 + $0x1a8] sm:$0xff]
        %v2976 = vld [vmem:[%s2921 + $0x1b0] sm:$0xff]
        %v2977 = vld [vmem:[%s2921 + $0x1b8] sm:$0xf]
        %v2978 = vld [vmem:[%s2921 + $0x1c0] sm:$0xff]
        %v2979 = vld [vmem:[%s2921 + $0x1c8] sm:$0xff]
        %v2980 = vld [vmem:[%s2921 + $0x1d0] sm:$0xff]
        %v2981 = vld [vmem:[%s2921 + $0x1d8] sm:$0xf]
        %v2982 = vld [vmem:[%s2921 + $0x1e0] sm:$0xff]
        %v2983 = vld [vmem:[%s2921 + $0x1e8] sm:$0xff]
        %v2984 = vld [vmem:[%s2921 + $0x1f0] sm:$0xff]
        %v2985 = vld [vmem:[%s2921 + $0x1f8] sm:$0xf]
        %v2986 = vld [vmem:[%s2921 + $0x200] sm:$0xff]
        %v2987 = vld [vmem:[%s2921 + $0x208] sm:$0xff]
        %v2988 = vld [vmem:[%s2921 + $0x210] sm:$0xff]
        %v2989 = vld [vmem:[%s2921 + $0x218] sm:$0xf]
        %v2990 = vld [vmem:[%s2921 + $0x220] sm:$0xff]
        %v2991 = vld [vmem:[%s2921 + $0x228] sm:$0xff]
        %v2992 = vld [vmem:[%s2921 + $0x230] sm:$0xff]
        %v2993 = vld [vmem:[%s2921 + $0x238] sm:$0xf]
        %v2994 = vld [vmem:[%s2921 + $0x240] sm:$0xff]
        %v2995 = vld [vmem:[%s2921 + $0x248] sm:$0xff]
        %v2996 = vld [vmem:[%s2921 + $0x250] sm:$0xff]
        %v2997 = vld [vmem:[%s2921 + $0x258] sm:$0xf]
        %v2998 = vld [vmem:[%s2921 + $0x260] sm:$0xff]
        %v2999 = vld [vmem:[%s2921 + $0x268] sm:$0xff]
        %v3000 = vld [vmem:[%s2921 + $0x270] sm:$0xff]
        %v3001 = vld [vmem:[%s2921 + $0x278] sm:$0xf]
        %v3002 = vmax.f32 %v2841, %v2922
        %v3003 = vmax.f32 %v2842, %v2923
        %v3004 = vmax.f32 %v2843, %v2924
        %v3005 = vmax.f32 %v2844, %v2925
        %v3006 = vmax.f32 %v2845, %v2926
        %v3007 = vmax.f32 %v2846, %v2927
        %v3008 = vmax.f32 %v2847, %v2928
        %v3009 = vmax.f32 %v2848, %v2929
        %v3010 = vmax.f32 %v2849, %v2930
        %v3011 = vmax.f32 %v2850, %v2931
        %v3012 = vmax.f32 %v2851, %v2932
        %v3013 = vmax.f32 %v2852, %v2933
        %v3014 = vmax.f32 %v2853, %v2934
        %v3015 = vmax.f32 %v2854, %v2935
        %v3016 = vmax.f32 %v2855, %v2936
        %v3017 = vmax.f32 %v2856, %v2937
        %v3018 = vmax.f32 %v2857, %v2938
        %v3019 = vmax.f32 %v2858, %v2939
        %v3020 = vmax.f32 %v2859, %v2940
        %v3021 = vmax.f32 %v2860, %v2941
        %v3022 = vmax.f32 %v2861, %v2942
        %v3023 = vmax.f32 %v2862, %v2943
        %v3024 = vmax.f32 %v2863, %v2944
        %v3025 = vmax.f32 %v2864, %v2945
        %v3026 = vmax.f32 %v2865, %v2946
        %v3027 = vmax.f32 %v2866, %v2947
        %v3028 = vmax.f32 %v2867, %v2948
        %v3029 = vmax.f32 %v2868, %v2949
        %v3030 = vmax.f32 %v2869, %v2950
        %v3031 = vmax.f32 %v2870, %v2951
        %v3032 = vmax.f32 %v2871, %v2952
        %v3033 = vmax.f32 %v2872, %v2953
        %v3034 = vmax.f32 %v2873, %v2954
        %v3035 = vmax.f32 %v2874, %v2955
        %v3036 = vmax.f32 %v2875, %v2956
        %v3037 = vmax.f32 %v2876, %v2957
        %v3038 = vmax.f32 %v2877, %v2958
        %v3039 = vmax.f32 %v2878, %v2959
        %v3040 = vmax.f32 %v2879, %v2960
        %v3041 = vmax.f32 %v2880, %v2961
        %v3042 = vmax.f32 %v2881, %v2962
        %v3043 = vmax.f32 %v2882, %v2963
        %v3044 = vmax.f32 %v2883, %v2964
        %v3045 = vmax.f32 %v2884, %v2965
        %v3046 = vmax.f32 %v2885, %v2966
        %v3047 = vmax.f32 %v2886, %v2967
        %v3048 = vmax.f32 %v2887, %v2968
        %v3049 = vmax.f32 %v2888, %v2969
        %v3050 = vmax.f32 %v2889, %v2970
        %v3051 = vmax.f32 %v2890, %v2971
        %v3052 = vmax.f32 %v2891, %v2972
        %v3053 = vmax.f32 %v2892, %v2973
        %v3054 = vmax.f32 %v2893, %v2974
        %v3055 = vmax.f32 %v2894, %v2975
        %v3056 = vmax.f32 %v2895, %v2976
        %v3057 = vmax.f32 %v2896, %v2977
        %v3058 = vmax.f32 %v2897, %v2978
        %v3059 = vmax.f32 %v2898, %v2979
        %v3060 = vmax.f32 %v2899, %v2980
        %v3061 = vmax.f32 %v2900, %v2981
        %v3062 = vmax.f32 %v2901, %v2982
        %v3063 = vmax.f32 %v2902, %v2983
        %v3064 = vmax.f32 %v2903, %v2984
        %v3065 = vmax.f32 %v2904, %v2985
        %v3066 = vmax.f32 %v2905, %v2986
        %v3067 = vmax.f32 %v2906, %v2987
        %v3068 = vmax.f32 %v2907, %v2988
        %v3069 = vmax.f32 %v2908, %v2989
        %v3070 = vmax.f32 %v2909, %v2990
        %v3071 = vmax.f32 %v2910, %v2991
        %v3072 = vmax.f32 %v2911, %v2992
        %v3073 = vmax.f32 %v2912, %v2993
        %v3074 = vmax.f32 %v2913, %v2994
        %v3075 = vmax.f32 %v2914, %v2995
        %v3076 = vmax.f32 %v2915, %v2996
        %v3077 = vmax.f32 %v2916, %v2997
        %v3078 = vmax.f32 %v2917, %v2998
        %v3079 = vmax.f32 %v2918, %v2999
        %v3080 = vmax.f32 %v2919, %v3000
        %v3081 = vmax.f32 %v2920, %v3001
        %s3082 = scalar_lea.vmem [#allocation3], 96
        %v3083 = vld [vmem:[%s3082] sm:$0xff]
        %v3084 = vld [vmem:[%s3082 + $0x8] sm:$0xff]
        %v3085 = vld [vmem:[%s3082 + $0x10] sm:$0xff]
        %v3086 = vld [vmem:[%s3082 + $0x18] sm:$0xf]
        %v3087 = vld [vmem:[%s3082 + $0x20] sm:$0xff]
        %v3088 = vld [vmem:[%s3082 + $0x28] sm:$0xff]
        %v3089 = vld [vmem:[%s3082 + $0x30] sm:$0xff]
        %v3090 = vld [vmem:[%s3082 + $0x38] sm:$0xf]
        %v3091 = vld [vmem:[%s3082 + $0x40] sm:$0xff]
        %v3092 = vld [vmem:[%s3082 + $0x48] sm:$0xff]
        %v3093 = vld [vmem:[%s3082 + $0x50] sm:$0xff]
        %v3094 = vld [vmem:[%s3082 + $0x58] sm:$0xf]
        %v3095 = vld [vmem:[%s3082 + $0x60] sm:$0xff]
        %v3096 = vld [vmem:[%s3082 + $0x68] sm:$0xff]
        %v3097 = vld [vmem:[%s3082 + $0x70] sm:$0xff]
        %v3098 = vld [vmem:[%s3082 + $0x78] sm:$0xf]
        %v3099 = vld [vmem:[%s3082 + $0x80] sm:$0xff]
        %v3100 = vld [vmem:[%s3082 + $0x88] sm:$0xff]
        %v3101 = vld [vmem:[%s3082 + $0x90] sm:$0xff]
        %v3102 = vld [vmem:[%s3082 + $0x98] sm:$0xf]
        %v3103 = vld [vmem:[%s3082 + $0xa0] sm:$0xff]
        %v3104 = vld [vmem:[%s3082 + $0xa8] sm:$0xff]
        %v3105 = vld [vmem:[%s3082 + $0xb0] sm:$0xff]
        %v3106 = vld [vmem:[%s3082 + $0xb8] sm:$0xf]
        %v3107 = vld [vmem:[%s3082 + $0xc0] sm:$0xff]
        %v3108 = vld [vmem:[%s3082 + $0xc8] sm:$0xff]
        %v3109 = vld [vmem:[%s3082 + $0xd0] sm:$0xff]
        %v3110 = vld [vmem:[%s3082 + $0xd8] sm:$0xf]
        %v3111 = vld [vmem:[%s3082 + $0xe0] sm:$0xff]
        %v3112 = vld [vmem:[%s3082 + $0xe8] sm:$0xff]
        %v3113 = vld [vmem:[%s3082 + $0xf0] sm:$0xff]
        %v3114 = vld [vmem:[%s3082 + $0xf8] sm:$0xf]
        %v3115 = vld [vmem:[%s3082 + $0x100] sm:$0xff]
        %v3116 = vld [vmem:[%s3082 + $0x108] sm:$0xff]
        %v3117 = vld [vmem:[%s3082 + $0x110] sm:$0xff]
        %v3118 = vld [vmem:[%s3082 + $0x118] sm:$0xf]
        %v3119 = vld [vmem:[%s3082 + $0x120] sm:$0xff]
        %v3120 = vld [vmem:[%s3082 + $0x128] sm:$0xff]
        %v3121 = vld [vmem:[%s3082 + $0x130] sm:$0xff]
        %v3122 = vld [vmem:[%s3082 + $0x138] sm:$0xf]
        %v3123 = vld [vmem:[%s3082 + $0x140] sm:$0xff]
        %v3124 = vld [vmem:[%s3082 + $0x148] sm:$0xff]
        %v3125 = vld [vmem:[%s3082 + $0x150] sm:$0xff]
        %v3126 = vld [vmem:[%s3082 + $0x158] sm:$0xf]
        %v3127 = vld [vmem:[%s3082 + $0x160] sm:$0xff]
        %v3128 = vld [vmem:[%s3082 + $0x168] sm:$0xff]
        %v3129 = vld [vmem:[%s3082 + $0x170] sm:$0xff]
        %v3130 = vld [vmem:[%s3082 + $0x178] sm:$0xf]
        %v3131 = vld [vmem:[%s3082 + $0x180] sm:$0xff]
        %v3132 = vld [vmem:[%s3082 + $0x188] sm:$0xff]
        %v3133 = vld [vmem:[%s3082 + $0x190] sm:$0xff]
        %v3134 = vld [vmem:[%s3082 + $0x198] sm:$0xf]
        %v3135 = vld [vmem:[%s3082 + $0x1a0] sm:$0xff]
        %v3136 = vld [vmem:[%s3082 + $0x1a8] sm:$0xff]
        %v3137 = vld [vmem:[%s3082 + $0x1b0] sm:$0xff]
        %v3138 = vld [vmem:[%s3082 + $0x1b8] sm:$0xf]
        %v3139 = vld [vmem:[%s3082 + $0x1c0] sm:$0xff]
        %v3140 = vld [vmem:[%s3082 + $0x1c8] sm:$0xff]
        %v3141 = vld [vmem:[%s3082 + $0x1d0] sm:$0xff]
        %v3142 = vld [vmem:[%s3082 + $0x1d8] sm:$0xf]
        %v3143 = vld [vmem:[%s3082 + $0x1e0] sm:$0xff]
        %v3144 = vld [vmem:[%s3082 + $0x1e8] sm:$0xff]
        %v3145 = vld [vmem:[%s3082 + $0x1f0] sm:$0xff]
        %v3146 = vld [vmem:[%s3082 + $0x1f8] sm:$0xf]
        %v3147 = vld [vmem:[%s3082 + $0x200] sm:$0xff]
        %v3148 = vld [vmem:[%s3082 + $0x208] sm:$0xff]
        %v3149 = vld [vmem:[%s3082 + $0x210] sm:$0xff]
        %v3150 = vld [vmem:[%s3082 + $0x218] sm:$0xf]
        %v3151 = vld [vmem:[%s3082 + $0x220] sm:$0xff]
        %v3152 = vld [vmem:[%s3082 + $0x228] sm:$0xff]
        %v3153 = vld [vmem:[%s3082 + $0x230] sm:$0xff]
        %v3154 = vld [vmem:[%s3082 + $0x238] sm:$0xf]
        %v3155 = vld [vmem:[%s3082 + $0x240] sm:$0xff]
        %v3156 = vld [vmem:[%s3082 + $0x248] sm:$0xff]
        %v3157 = vld [vmem:[%s3082 + $0x250] sm:$0xff]
        %v3158 = vld [vmem:[%s3082 + $0x258] sm:$0xf]
        %v3159 = vld [vmem:[%s3082 + $0x260] sm:$0xff]
        %v3160 = vld [vmem:[%s3082 + $0x268] sm:$0xff]
        %v3161 = vld [vmem:[%s3082 + $0x270] sm:$0xff]
        %v3162 = vld [vmem:[%s3082 + $0x278] sm:$0xf]
        %v3163 = vmax.f32 %v3002, %v3083
        %v3164 = vmax.f32 %v3003, %v3084
        %v3165 = vmax.f32 %v3004, %v3085
        %v3166 = vmax.f32 %v3005, %v3086
        %v3167 = vmax.f32 %v3006, %v3087
        %v3168 = vmax.f32 %v3007, %v3088
        %v3169 = vmax.f32 %v3008, %v3089
        %v3170 = vmax.f32 %v3009, %v3090
        %v3171 = vmax.f32 %v3010, %v3091
        %v3172 = vmax.f32 %v3011, %v3092
        %v3173 = vmax.f32 %v3012, %v3093
        %v3174 = vmax.f32 %v3013, %v3094
        %v3175 = vmax.f32 %v3014, %v3095
        %v3176 = vmax.f32 %v3015, %v3096
        %v3177 = vmax.f32 %v3016, %v3097
        %v3178 = vmax.f32 %v3017, %v3098
        %v3179 = vmax.f32 %v3018, %v3099
        %v3180 = vmax.f32 %v3019, %v3100
        %v3181 = vmax.f32 %v3020, %v3101
        %v3182 = vmax.f32 %v3021, %v3102
        %v3183 = vmax.f32 %v3022, %v3103
        %v3184 = vmax.f32 %v3023, %v3104
        %v3185 = vmax.f32 %v3024, %v3105
        %v3186 = vmax.f32 %v3025, %v3106
        %v3187 = vmax.f32 %v3026, %v3107
        %v3188 = vmax.f32 %v3027, %v3108
        %v3189 = vmax.f32 %v3028, %v3109
        %v3190 = vmax.f32 %v3029, %v3110
        %v3191 = vmax.f32 %v3030, %v3111
        %v3192 = vmax.f32 %v3031, %v3112
        %v3193 = vmax.f32 %v3032, %v3113
        %v3194 = vmax.f32 %v3033, %v3114
        %v3195 = vmax.f32 %v3034, %v3115
        %v3196 = vmax.f32 %v3035, %v3116
        %v3197 = vmax.f32 %v3036, %v3117
        %v3198 = vmax.f32 %v3037, %v3118
        %v3199 = vmax.f32 %v3038, %v3119
        %v3200 = vmax.f32 %v3039, %v3120
        %v3201 = vmax.f32 %v3040, %v3121
        %v3202 = vmax.f32 %v3041, %v3122
        %v3203 = vmax.f32 %v3042, %v3123
        %v3204 = vmax.f32 %v3043, %v3124
        %v3205 = vmax.f32 %v3044, %v3125
        %v3206 = vmax.f32 %v3045, %v3126
        %v3207 = vmax.f32 %v3046, %v3127
        %v3208 = vmax.f32 %v3047, %v3128
        %v3209 = vmax.f32 %v3048, %v3129
        %v3210 = vmax.f32 %v3049, %v3130
        %v3211 = vmax.f32 %v3050, %v3131
        %v3212 = vmax.f32 %v3051, %v3132
        %v3213 = vmax.f32 %v3052, %v3133
        %v3214 = vmax.f32 %v3053, %v3134
        %v3215 = vmax.f32 %v3054, %v3135
        %v3216 = vmax.f32 %v3055, %v3136
        %v3217 = vmax.f32 %v3056, %v3137
        %v3218 = vmax.f32 %v3057, %v3138
        %v3219 = vmax.f32 %v3058, %v3139
        %v3220 = vmax.f32 %v3059, %v3140
        %v3221 = vmax.f32 %v3060, %v3141
        %v3222 = vmax.f32 %v3061, %v3142
        %v3223 = vmax.f32 %v3062, %v3143
        %v3224 = vmax.f32 %v3063, %v3144
        %v3225 = vmax.f32 %v3064, %v3145
        %v3226 = vmax.f32 %v3065, %v3146
        %v3227 = vmax.f32 %v3066, %v3147
        %v3228 = vmax.f32 %v3067, %v3148
        %v3229 = vmax.f32 %v3068, %v3149
        %v3230 = vmax.f32 %v3069, %v3150
        %v3231 = vmax.f32 %v3070, %v3151
        %v3232 = vmax.f32 %v3071, %v3152
        %v3233 = vmax.f32 %v3072, %v3153
        %v3234 = vmax.f32 %v3073, %v3154
        %v3235 = vmax.f32 %v3074, %v3155
        %v3236 = vmax.f32 %v3075, %v3156
        %v3237 = vmax.f32 %v3076, %v3157
        %v3238 = vmax.f32 %v3077, %v3158
        %v3239 = vmax.f32 %v3078, %v3159
        %v3240 = vmax.f32 %v3079, %v3160
        %v3241 = vmax.f32 %v3080, %v3161
        %v3242 = vmax.f32 %v3081, %v3162
        %v3243 = vld [vmem:[#allocation3] sm:$0xff]
        %v3244 = vld [vmem:[#allocation3 + $0x8] sm:$0xff]
        %v3245 = vld [vmem:[#allocation3 + $0x10] sm:$0xff]
        %v3246 = vld [vmem:[#allocation3 + $0x18] sm:$0xf]
        %v3247 = vld [vmem:[#allocation3 + $0x20] sm:$0xff]
        %v3248 = vld [vmem:[#allocation3 + $0x28] sm:$0xff]
        %v3249 = vld [vmem:[#allocation3 + $0x30] sm:$0xff]
        %v3250 = vld [vmem:[#allocation3 + $0x38] sm:$0xf]
        %v3251 = vld [vmem:[#allocation3 + $0x40] sm:$0xff]
        %v3252 = vld [vmem:[#allocation3 + $0x48] sm:$0xff]
        %v3253 = vld [vmem:[#allocation3 + $0x50] sm:$0xff]
        %v3254 = vld [vmem:[#allocation3 + $0x58] sm:$0xf]
        %v3255 = vld [vmem:[#allocation3 + $0x60] sm:$0xff]
        %v3256 = vld [vmem:[#allocation3 + $0x68] sm:$0xff]
        %v3257 = vld [vmem:[#allocation3 + $0x70] sm:$0xff]
        %v3258 = vld [vmem:[#allocation3 + $0x78] sm:$0xf]
        %v3259 = vld [vmem:[#allocation3 + $0x80] sm:$0xff]
        %v3260 = vld [vmem:[#allocation3 + $0x88] sm:$0xff]
        %v3261 = vld [vmem:[#allocation3 + $0x90] sm:$0xff]
        %v3262 = vld [vmem:[#allocation3 + $0x98] sm:$0xf]
        %v3263 = vld [vmem:[#allocation3 + $0xa0] sm:$0xff]
        %v3264 = vld [vmem:[#allocation3 + $0xa8] sm:$0xff]
        %v3265 = vld [vmem:[#allocation3 + $0xb0] sm:$0xff]
        %v3266 = vld [vmem:[#allocation3 + $0xb8] sm:$0xf]
        %v3267 = vld [vmem:[#allocation3 + $0xc0] sm:$0xff]
        %v3268 = vld [vmem:[#allocation3 + $0xc8] sm:$0xff]
        %v3269 = vld [vmem:[#allocation3 + $0xd0] sm:$0xff]
        %v3270 = vld [vmem:[#allocation3 + $0xd8] sm:$0xf]
        %v3271 = vld [vmem:[#allocation3 + $0xe0] sm:$0xff]
        %v3272 = vld [vmem:[#allocation3 + $0xe8] sm:$0xff]
        %v3273 = vld [vmem:[#allocation3 + $0xf0] sm:$0xff]
        %v3274 = vld [vmem:[#allocation3 + $0xf8] sm:$0xf]
        %v3275 = vld [vmem:[#allocation3 + $0x100] sm:$0xff]
        %v3276 = vld [vmem:[#allocation3 + $0x108] sm:$0xff]
        %v3277 = vld [vmem:[#allocation3 + $0x110] sm:$0xff]
        %v3278 = vld [vmem:[#allocation3 + $0x118] sm:$0xf]
        %v3279 = vld [vmem:[#allocation3 + $0x120] sm:$0xff]
        %v3280 = vld [vmem:[#allocation3 + $0x128] sm:$0xff]
        %v3281 = vld [vmem:[#allocation3 + $0x130] sm:$0xff]
        %v3282 = vld [vmem:[#allocation3 + $0x138] sm:$0xf]
        %v3283 = vld [vmem:[#allocation3 + $0x140] sm:$0xff]
        %v3284 = vld [vmem:[#allocation3 + $0x148] sm:$0xff]
        %v3285 = vld [vmem:[#allocation3 + $0x150] sm:$0xff]
        %v3286 = vld [vmem:[#allocation3 + $0x158] sm:$0xf]
        %v3287 = vld [vmem:[#allocation3 + $0x160] sm:$0xff]
        %v3288 = vld [vmem:[#allocation3 + $0x168] sm:$0xff]
        %v3289 = vld [vmem:[#allocation3 + $0x170] sm:$0xff]
        %v3290 = vld [vmem:[#allocation3 + $0x178] sm:$0xf]
        %v3291 = vld [vmem:[#allocation3 + $0x180] sm:$0xff]
        %v3292 = vld [vmem:[#allocation3 + $0x188] sm:$0xff]
        %v3293 = vld [vmem:[#allocation3 + $0x190] sm:$0xff]
        %v3294 = vld [vmem:[#allocation3 + $0x198] sm:$0xf]
        %v3295 = vld [vmem:[#allocation3 + $0x1a0] sm:$0xff]
        %v3296 = vld [vmem:[#allocation3 + $0x1a8] sm:$0xff]
        %v3297 = vld [vmem:[#allocation3 + $0x1b0] sm:$0xff]
        %v3298 = vld [vmem:[#allocation3 + $0x1b8] sm:$0xf]
        %v3299 = vld [vmem:[#allocation3 + $0x1c0] sm:$0xff]
        %v3300 = vld [vmem:[#allocation3 + $0x1c8] sm:$0xff]
        %v3301 = vld [vmem:[#allocation3 + $0x1d0] sm:$0xff]
        %v3302 = vld [vmem:[#allocation3 + $0x1d8] sm:$0xf]
        %v3303 = vld [vmem:[#allocation3 + $0x1e0] sm:$0xff]
        %v3304 = vld [vmem:[#allocation3 + $0x1e8] sm:$0xff]
        %v3305 = vld [vmem:[#allocation3 + $0x1f0] sm:$0xff]
        %v3306 = vld [vmem:[#allocation3 + $0x1f8] sm:$0xf]
        %v3307 = vld [vmem:[#allocation3 + $0x200] sm:$0xff]
        %v3308 = vld [vmem:[#allocation3 + $0x208] sm:$0xff]
        %v3309 = vld [vmem:[#allocation3 + $0x210] sm:$0xff]
        %v3310 = vld [vmem:[#allocation3 + $0x218] sm:$0xf]
        %v3311 = vld [vmem:[#allocation3 + $0x220] sm:$0xff]
        %v3312 = vld [vmem:[#allocation3 + $0x228] sm:$0xff]
        %v3313 = vld [vmem:[#allocation3 + $0x230] sm:$0xff]
        %v3314 = vld [vmem:[#allocation3 + $0x238] sm:$0xf]
        %v3315 = vld [vmem:[#allocation3 + $0x240] sm:$0xff]
        %v3316 = vld [vmem:[#allocation3 + $0x248] sm:$0xff]
        %v3317 = vld [vmem:[#allocation3 + $0x250] sm:$0xff]
        %v3318 = vld [vmem:[#allocation3 + $0x258] sm:$0xf]
        %v3319 = vld [vmem:[#allocation3 + $0x260] sm:$0xff]
        %v3320 = vld [vmem:[#allocation3 + $0x268] sm:$0xff]
        %v3321 = vld [vmem:[#allocation3 + $0x270] sm:$0xff]
        %v3322 = vld [vmem:[#allocation3 + $0x278] sm:$0xf]
        %v3323 = vmax.f32 %v3163, %v3243
        %v3324 = vmax.f32 %v3164, %v3244
        %v3325 = vmax.f32 %v3165, %v3245
        %v3326 = vmax.f32 %v3166, %v3246
        %v3327 = vmax.f32 %v3167, %v3247
        %v3328 = vmax.f32 %v3168, %v3248
        %v3329 = vmax.f32 %v3169, %v3249
        %v3330 = vmax.f32 %v3170, %v3250
        %v3331 = vmax.f32 %v3171, %v3251
        %v3332 = vmax.f32 %v3172, %v3252
        %v3333 = vmax.f32 %v3173, %v3253
        %v3334 = vmax.f32 %v3174, %v3254
        %v3335 = vmax.f32 %v3175, %v3255
        %v3336 = vmax.f32 %v3176, %v3256
        %v3337 = vmax.f32 %v3177, %v3257
        %v3338 = vmax.f32 %v3178, %v3258
        %v3339 = vmax.f32 %v3179, %v3259
        %v3340 = vmax.f32 %v3180, %v3260
        %v3341 = vmax.f32 %v3181, %v3261
        %v3342 = vmax.f32 %v3182, %v3262
        %v3343 = vmax.f32 %v3183, %v3263
        %v3344 = vmax.f32 %v3184, %v3264
        %v3345 = vmax.f32 %v3185, %v3265
        %v3346 = vmax.f32 %v3186, %v3266
        %v3347 = vmax.f32 %v3187, %v3267
        %v3348 = vmax.f32 %v3188, %v3268
        %v3349 = vmax.f32 %v3189, %v3269
        %v3350 = vmax.f32 %v3190, %v3270
        %v3351 = vmax.f32 %v3191, %v3271
        %v3352 = vmax.f32 %v3192, %v3272
        %v3353 = vmax.f32 %v3193, %v3273
        %v3354 = vmax.f32 %v3194, %v3274
        %v3355 = vmax.f32 %v3195, %v3275
        %v3356 = vmax.f32 %v3196, %v3276
        %v3357 = vmax.f32 %v3197, %v3277
        %v3358 = vmax.f32 %v3198, %v3278
        %v3359 = vmax.f32 %v3199, %v3279
        %v3360 = vmax.f32 %v3200, %v3280
        %v3361 = vmax.f32 %v3201, %v3281
        %v3362 = vmax.f32 %v3202, %v3282
        %v3363 = vmax.f32 %v3203, %v3283
        %v3364 = vmax.f32 %v3204, %v3284
        %v3365 = vmax.f32 %v3205, %v3285
        %v3366 = vmax.f32 %v3206, %v3286
        %v3367 = vmax.f32 %v3207, %v3287
        %v3368 = vmax.f32 %v3208, %v3288
        %v3369 = vmax.f32 %v3209, %v3289
        %v3370 = vmax.f32 %v3210, %v3290
        %v3371 = vmax.f32 %v3211, %v3291
        %v3372 = vmax.f32 %v3212, %v3292
        %v3373 = vmax.f32 %v3213, %v3293
        %v3374 = vmax.f32 %v3214, %v3294
        %v3375 = vmax.f32 %v3215, %v3295
        %v3376 = vmax.f32 %v3216, %v3296
        %v3377 = vmax.f32 %v3217, %v3297
        %v3378 = vmax.f32 %v3218, %v3298
        %v3379 = vmax.f32 %v3219, %v3299
        %v3380 = vmax.f32 %v3220, %v3300
        %v3381 = vmax.f32 %v3221, %v3301
        %v3382 = vmax.f32 %v3222, %v3302
        %v3383 = vmax.f32 %v3223, %v3303
        %v3384 = vmax.f32 %v3224, %v3304
        %v3385 = vmax.f32 %v3225, %v3305
        %v3386 = vmax.f32 %v3226, %v3306
        %v3387 = vmax.f32 %v3227, %v3307
        %v3388 = vmax.f32 %v3228, %v3308
        %v3389 = vmax.f32 %v3229, %v3309
        %v3390 = vmax.f32 %v3230, %v3310
        %v3391 = vmax.f32 %v3231, %v3311
        %v3392 = vmax.f32 %v3232, %v3312
        %v3393 = vmax.f32 %v3233, %v3313
        %v3394 = vmax.f32 %v3234, %v3314
        %v3395 = vmax.f32 %v3235, %v3315
        %v3396 = vmax.f32 %v3236, %v3316
        %v3397 = vmax.f32 %v3237, %v3317
        %v3398 = vmax.f32 %v3238, %v3318
        %v3399 = vmax.f32 %v3239, %v3319
        %v3400 = vmax.f32 %v3240, %v3320
        %v3401 = vmax.f32 %v3241, %v3321
        %v3402 = vmax.f32 %v3242, %v3322
        %s3403 = scalar_lea.vmem [#allocation3], 128
        %v3404 = vld [vmem:[%s3403] sm:$0xff]
        %v3405 = vld [vmem:[%s3403 + $0x8] sm:$0xff]
        %v3406 = vld [vmem:[%s3403 + $0x10] sm:$0xff]
        %v3407 = vld [vmem:[%s3403 + $0x18] sm:$0xf]
        %v3408 = vld [vmem:[%s3403 + $0x20] sm:$0xff]
        %v3409 = vld [vmem:[%s3403 + $0x28] sm:$0xff]
        %v3410 = vld [vmem:[%s3403 + $0x30] sm:$0xff]
        %v3411 = vld [vmem:[%s3403 + $0x38] sm:$0xf]
        %v3412 = vld [vmem:[%s3403 + $0x40] sm:$0xff]
        %v3413 = vld [vmem:[%s3403 + $0x48] sm:$0xff]
        %v3414 = vld [vmem:[%s3403 + $0x50] sm:$0xff]
        %v3415 = vld [vmem:[%s3403 + $0x58] sm:$0xf]
        %v3416 = vld [vmem:[%s3403 + $0x60] sm:$0xff]
        %v3417 = vld [vmem:[%s3403 + $0x68] sm:$0xff]
        %v3418 = vld [vmem:[%s3403 + $0x70] sm:$0xff]
        %v3419 = vld [vmem:[%s3403 + $0x78] sm:$0xf]
        %v3420 = vld [vmem:[%s3403 + $0x80] sm:$0xff]
        %v3421 = vld [vmem:[%s3403 + $0x88] sm:$0xff]
        %v3422 = vld [vmem:[%s3403 + $0x90] sm:$0xff]
        %v3423 = vld [vmem:[%s3403 + $0x98] sm:$0xf]
        %v3424 = vld [vmem:[%s3403 + $0xa0] sm:$0xff]
        %v3425 = vld [vmem:[%s3403 + $0xa8] sm:$0xff]
        %v3426 = vld [vmem:[%s3403 + $0xb0] sm:$0xff]
        %v3427 = vld [vmem:[%s3403 + $0xb8] sm:$0xf]
        %v3428 = vld [vmem:[%s3403 + $0xc0] sm:$0xff]
        %v3429 = vld [vmem:[%s3403 + $0xc8] sm:$0xff]
        %v3430 = vld [vmem:[%s3403 + $0xd0] sm:$0xff]
        %v3431 = vld [vmem:[%s3403 + $0xd8] sm:$0xf]
        %v3432 = vld [vmem:[%s3403 + $0xe0] sm:$0xff]
        %v3433 = vld [vmem:[%s3403 + $0xe8] sm:$0xff]
        %v3434 = vld [vmem:[%s3403 + $0xf0] sm:$0xff]
        %v3435 = vld [vmem:[%s3403 + $0xf8] sm:$0xf]
        %v3436 = vld [vmem:[%s3403 + $0x100] sm:$0xff]
        %v3437 = vld [vmem:[%s3403 + $0x108] sm:$0xff]
        %v3438 = vld [vmem:[%s3403 + $0x110] sm:$0xff]
        %v3439 = vld [vmem:[%s3403 + $0x118] sm:$0xf]
        %v3440 = vld [vmem:[%s3403 + $0x120] sm:$0xff]
        %v3441 = vld [vmem:[%s3403 + $0x128] sm:$0xff]
        %v3442 = vld [vmem:[%s3403 + $0x130] sm:$0xff]
        %v3443 = vld [vmem:[%s3403 + $0x138] sm:$0xf]
        %v3444 = vld [vmem:[%s3403 + $0x140] sm:$0xff]
        %v3445 = vld [vmem:[%s3403 + $0x148] sm:$0xff]
        %v3446 = vld [vmem:[%s3403 + $0x150] sm:$0xff]
        %v3447 = vld [vmem:[%s3403 + $0x158] sm:$0xf]
        %v3448 = vld [vmem:[%s3403 + $0x160] sm:$0xff]
        %v3449 = vld [vmem:[%s3403 + $0x168] sm:$0xff]
        %v3450 = vld [vmem:[%s3403 + $0x170] sm:$0xff]
        %v3451 = vld [vmem:[%s3403 + $0x178] sm:$0xf]
        %v3452 = vld [vmem:[%s3403 + $0x180] sm:$0xff]
        %v3453 = vld [vmem:[%s3403 + $0x188] sm:$0xff]
        %v3454 = vld [vmem:[%s3403 + $0x190] sm:$0xff]
        %v3455 = vld [vmem:[%s3403 + $0x198] sm:$0xf]
        %v3456 = vld [vmem:[%s3403 + $0x1a0] sm:$0xff]
        %v3457 = vld [vmem:[%s3403 + $0x1a8] sm:$0xff]
        %v3458 = vld [vmem:[%s3403 + $0x1b0] sm:$0xff]
        %v3459 = vld [vmem:[%s3403 + $0x1b8] sm:$0xf]
        %v3460 = vld [vmem:[%s3403 + $0x1c0] sm:$0xff]
        %v3461 = vld [vmem:[%s3403 + $0x1c8] sm:$0xff]
        %v3462 = vld [vmem:[%s3403 + $0x1d0] sm:$0xff]
        %v3463 = vld [vmem:[%s3403 + $0x1d8] sm:$0xf]
        %v3464 = vld [vmem:[%s3403 + $0x1e0] sm:$0xff]
        %v3465 = vld [vmem:[%s3403 + $0x1e8] sm:$0xff]
        %v3466 = vld [vmem:[%s3403 + $0x1f0] sm:$0xff]
        %v3467 = vld [vmem:[%s3403 + $0x1f8] sm:$0xf]
        %v3468 = vld [vmem:[%s3403 + $0x200] sm:$0xff]
        %v3469 = vld [vmem:[%s3403 + $0x208] sm:$0xff]
        %v3470 = vld [vmem:[%s3403 + $0x210] sm:$0xff]
        %v3471 = vld [vmem:[%s3403 + $0x218] sm:$0xf]
        %v3472 = vld [vmem:[%s3403 + $0x220] sm:$0xff]
        %v3473 = vld [vmem:[%s3403 + $0x228] sm:$0xff]
        %v3474 = vld [vmem:[%s3403 + $0x230] sm:$0xff]
        %v3475 = vld [vmem:[%s3403 + $0x238] sm:$0xf]
        %v3476 = vld [vmem:[%s3403 + $0x240] sm:$0xff]
        %v3477 = vld [vmem:[%s3403 + $0x248] sm:$0xff]
        %v3478 = vld [vmem:[%s3403 + $0x250] sm:$0xff]
        %v3479 = vld [vmem:[%s3403 + $0x258] sm:$0xf]
        %v3480 = vld [vmem:[%s3403 + $0x260] sm:$0xff]
        %v3481 = vld [vmem:[%s3403 + $0x268] sm:$0xff]
        %v3482 = vld [vmem:[%s3403 + $0x270] sm:$0xff]
        %v3483 = vld [vmem:[%s3403 + $0x278] sm:$0xf]
        %v3484 = vmax.f32 %v3323, %v3404
        %v3485 = vmax.f32 %v3324, %v3405
        %v3486 = vmax.f32 %v3325, %v3406
        %v3487 = vmax.f32 %v3326, %v3407
        %v3488 = vmax.f32 %v3327, %v3408
        %v3489 = vmax.f32 %v3328, %v3409
        %v3490 = vmax.f32 %v3329, %v3410
        %v3491 = vmax.f32 %v3330, %v3411
        %v3492 = vmax.f32 %v3331, %v3412
        %v3493 = vmax.f32 %v3332, %v3413
        %v3494 = vmax.f32 %v3333, %v3414
        %v3495 = vmax.f32 %v3334, %v3415
        %v3496 = vmax.f32 %v3335, %v3416
        %v3497 = vmax.f32 %v3336, %v3417
        %v3498 = vmax.f32 %v3337, %v3418
        %v3499 = vmax.f32 %v3338, %v3419
        %v3500 = vmax.f32 %v3339, %v3420
        %v3501 = vmax.f32 %v3340, %v3421
        %v3502 = vmax.f32 %v3341, %v3422
        %v3503 = vmax.f32 %v3342, %v3423
        %v3504 = vmax.f32 %v3343, %v3424
        %v3505 = vmax.f32 %v3344, %v3425
        %v3506 = vmax.f32 %v3345, %v3426
        %v3507 = vmax.f32 %v3346, %v3427
        %v3508 = vmax.f32 %v3347, %v3428
        %v3509 = vmax.f32 %v3348, %v3429
        %v3510 = vmax.f32 %v3349, %v3430
        %v3511 = vmax.f32 %v3350, %v3431
        %v3512 = vmax.f32 %v3351, %v3432
        %v3513 = vmax.f32 %v3352, %v3433
        %v3514 = vmax.f32 %v3353, %v3434
        %v3515 = vmax.f32 %v3354, %v3435
        %v3516 = vmax.f32 %v3355, %v3436
        %v3517 = vmax.f32 %v3356, %v3437
        %v3518 = vmax.f32 %v3357, %v3438
        %v3519 = vmax.f32 %v3358, %v3439
        %v3520 = vmax.f32 %v3359, %v3440
        %v3521 = vmax.f32 %v3360, %v3441
        %v3522 = vmax.f32 %v3361, %v3442
        %v3523 = vmax.f32 %v3362, %v3443
        %v3524 = vmax.f32 %v3363, %v3444
        %v3525 = vmax.f32 %v3364, %v3445
        %v3526 = vmax.f32 %v3365, %v3446
        %v3527 = vmax.f32 %v3366, %v3447
        %v3528 = vmax.f32 %v3367, %v3448
        %v3529 = vmax.f32 %v3368, %v3449
        %v3530 = vmax.f32 %v3369, %v3450
        %v3531 = vmax.f32 %v3370, %v3451
        %v3532 = vmax.f32 %v3371, %v3452
        %v3533 = vmax.f32 %v3372, %v3453
        %v3534 = vmax.f32 %v3373, %v3454
        %v3535 = vmax.f32 %v3374, %v3455
        %v3536 = vmax.f32 %v3375, %v3456
        %v3537 = vmax.f32 %v3376, %v3457
        %v3538 = vmax.f32 %v3377, %v3458
        %v3539 = vmax.f32 %v3378, %v3459
        %v3540 = vmax.f32 %v3379, %v3460
        %v3541 = vmax.f32 %v3380, %v3461
        %v3542 = vmax.f32 %v3381, %v3462
        %v3543 = vmax.f32 %v3382, %v3463
        %v3544 = vmax.f32 %v3383, %v3464
        %v3545 = vmax.f32 %v3384, %v3465
        %v3546 = vmax.f32 %v3385, %v3466
        %v3547 = vmax.f32 %v3386, %v3467
        %v3548 = vmax.f32 %v3387, %v3468
        %v3549 = vmax.f32 %v3388, %v3469
        %v3550 = vmax.f32 %v3389, %v3470
        %v3551 = vmax.f32 %v3390, %v3471
        %v3552 = vmax.f32 %v3391, %v3472
        %v3553 = vmax.f32 %v3392, %v3473
        %v3554 = vmax.f32 %v3393, %v3474
        %v3555 = vmax.f32 %v3394, %v3475
        %v3556 = vmax.f32 %v3395, %v3476
        %v3557 = vmax.f32 %v3396, %v3477
        %v3558 = vmax.f32 %v3397, %v3478
        %v3559 = vmax.f32 %v3398, %v3479
        %v3560 = vmax.f32 %v3399, %v3480
        %v3561 = vmax.f32 %v3400, %v3481
        %v3562 = vmax.f32 %v3401, %v3482
        %v3563 = vmax.f32 %v3402, %v3483
        %v3644 = vrot.slane %v3484, 7
        %v3645 = vrot.slane %v3485, 7
        %v3646 = vsel %vm1298, %v3644, %v3645
        %v3647 = vrot.slane %v3486, 7
        %v3648 = vsel %vm1298, %v3645, %v3647
        %v3649 = vrot.slane %v3487, 7
        %v3650 = vsel %vm1298, %v3647, %v3649
        %v3651 = vrot.slane %v3488, 7
        %v3652 = vrot.slane %v3489, 7
        %v3653 = vsel %vm1298, %v3651, %v3652
        %v3654 = vrot.slane %v3490, 7
        %v3655 = vsel %vm1298, %v3652, %v3654
        %v3656 = vrot.slane %v3491, 7
        %v3657 = vsel %vm1298, %v3654, %v3656
        %v3658 = vrot.slane %v3492, 7
        %v3659 = vrot.slane %v3493, 7
        %v3660 = vsel %vm1298, %v3658, %v3659
        %v3661 = vrot.slane %v3494, 7
        %v3662 = vsel %vm1298, %v3659, %v3661
        %v3663 = vrot.slane %v3495, 7
        %v3664 = vsel %vm1298, %v3661, %v3663
        %v3665 = vrot.slane %v3496, 7
        %v3666 = vrot.slane %v3497, 7
        %v3667 = vsel %vm1298, %v3665, %v3666
        %v3668 = vrot.slane %v3498, 7
        %v3669 = vsel %vm1298, %v3666, %v3668
        %v3670 = vrot.slane %v3499, 7
        %v3671 = vsel %vm1298, %v3668, %v3670
        %v3672 = vrot.slane %v3500, 7
        %v3673 = vrot.slane %v3501, 7
        %v3674 = vsel %vm1298, %v3672, %v3673
        %v3675 = vrot.slane %v3502, 7
        %v3676 = vsel %vm1298, %v3673, %v3675
        %v3677 = vrot.slane %v3503, 7
        %v3678 = vsel %vm1298, %v3675, %v3677
        %v3679 = vrot.slane %v3504, 7
        %v3680 = vrot.slane %v3505, 7
        %v3681 = vsel %vm1298, %v3679, %v3680
        %v3682 = vrot.slane %v3506, 7
        %v3683 = vsel %vm1298, %v3680, %v3682
        %v3684 = vrot.slane %v3507, 7
        %v3685 = vsel %vm1298, %v3682, %v3684
        %v3686 = vrot.slane %v3508, 7
        %v3687 = vrot.slane %v3509, 7
        %v3688 = vsel %vm1298, %v3686, %v3687
        %v3689 = vrot.slane %v3510, 7
        %v3690 = vsel %vm1298, %v3687, %v3689
        %v3691 = vrot.slane %v3511, 7
        %v3692 = vsel %vm1298, %v3689, %v3691
        %v3693 = vrot.slane %v3512, 7
        %v3694 = vrot.slane %v3513, 7
        %v3695 = vsel %vm1298, %v3693, %v3694
        %v3696 = vrot.slane %v3514, 7
        %v3697 = vsel %vm1298, %v3694, %v3696
        %v3698 = vrot.slane %v3515, 7
        %v3699 = vsel %vm1298, %v3696, %v3698
        %v3700 = vrot.slane %v3516, 7
        %v3701 = vrot.slane %v3517, 7
        %v3702 = vsel %vm1298, %v3700, %v3701
        %v3703 = vrot.slane %v3518, 7
        %v3704 = vsel %vm1298, %v3701, %v3703
        %v3705 = vrot.slane %v3519, 7
        %v3706 = vsel %vm1298, %v3703, %v3705
        %v3707 = vrot.slane %v3520, 7
        %v3708 = vrot.slane %v3521, 7
        %v3709 = vsel %vm1298, %v3707, %v3708
        %v3710 = vrot.slane %v3522, 7
        %v3711 = vsel %vm1298, %v3708, %v3710
        %v3712 = vrot.slane %v3523, 7
        %v3713 = vsel %vm1298, %v3710, %v3712
        %v3714 = vrot.slane %v3524, 7
        %v3715 = vrot.slane %v3525, 7
        %v3716 = vsel %vm1298, %v3714, %v3715
        %v3717 = vrot.slane %v3526, 7
        %v3718 = vsel %vm1298, %v3715, %v3717
        %v3719 = vrot.slane %v3527, 7
        %v3720 = vsel %vm1298, %v3717, %v3719
        %v3721 = vrot.slane %v3528, 7
        %v3722 = vrot.slane %v3529, 7
        %v3723 = vsel %vm1298, %v3721, %v3722
        %v3724 = vrot.slane %v3530, 7
        %v3725 = vsel %vm1298, %v3722, %v3724
        %v3726 = vrot.slane %v3531, 7
        %v3727 = vsel %vm1298, %v3724, %v3726
        %v3728 = vrot.slane %v3532, 7
        %v3729 = vrot.slane %v3533, 7
        %v3730 = vsel %vm1298, %v3728, %v3729
        %v3731 = vrot.slane %v3534, 7
        %v3732 = vsel %vm1298, %v3729, %v3731
        %v3733 = vrot.slane %v3535, 7
        %v3734 = vsel %vm1298, %v3731, %v3733
        %v3735 = vrot.slane %v3536, 7
        %v3736 = vrot.slane %v3537, 7
        %v3737 = vsel %vm1298, %v3735, %v3736
        %v3738 = vrot.slane %v3538, 7
        %v3739 = vsel %vm1298, %v3736, %v3738
        %v3740 = vrot.slane %v3539, 7
        %v3741 = vsel %vm1298, %v3738, %v3740
        %v3742 = vrot.slane %v3540, 7
        %v3743 = vrot.slane %v3541, 7
        %v3744 = vsel %vm1298, %v3742, %v3743
        %v3745 = vrot.slane %v3542, 7
        %v3746 = vsel %vm1298, %v3743, %v3745
        %v3747 = vrot.slane %v3543, 7
        %v3748 = vsel %vm1298, %v3745, %v3747
        %v3749 = vrot.slane %v3544, 7
        %v3750 = vrot.slane %v3545, 7
        %v3751 = vsel %vm1298, %v3749, %v3750
        %v3752 = vrot.slane %v3546, 7
        %v3753 = vsel %vm1298, %v3750, %v3752
        %v3754 = vrot.slane %v3547, 7
        %v3755 = vsel %vm1298, %v3752, %v3754
        %v3756 = vrot.slane %v3548, 7
        %v3757 = vrot.slane %v3549, 7
        %v3758 = vsel %vm1298, %v3756, %v3757
        %v3759 = vrot.slane %v3550, 7
        %v3760 = vsel %vm1298, %v3757, %v3759
        %v3761 = vrot.slane %v3551, 7
        %v3762 = vsel %vm1298, %v3759, %v3761
        %v3763 = vrot.slane %v3552, 7
        %v3764 = vrot.slane %v3553, 7
        %v3765 = vsel %vm1298, %v3763, %v3764
        %v3766 = vrot.slane %v3554, 7
        %v3767 = vsel %vm1298, %v3764, %v3766
        %v3768 = vrot.slane %v3555, 7
        %v3769 = vsel %vm1298, %v3766, %v3768
        %v3770 = vrot.slane %v3556, 7
        %v3771 = vrot.slane %v3557, 7
        %v3772 = vsel %vm1298, %v3770, %v3771
        %v3773 = vrot.slane %v3558, 7
        %v3774 = vsel %vm1298, %v3771, %v3773
        %v3775 = vrot.slane %v3559, 7
        %v3776 = vsel %vm1298, %v3773, %v3775
        %v3777 = vrot.slane %v3560, 7
        %v3778 = vrot.slane %v3561, 7
        %v3779 = vsel %vm1298, %v3777, %v3778
        %v3780 = vrot.slane %v3562, 7
        %v3781 = vsel %vm1298, %v3778, %v3780
        %v3782 = vrot.slane %v3563, 7
        %v3783 = vsel %vm1298, %v3780, %v3782
        %v3864 = vmax.f32 %v3484, %v3644
        %v3865 = vmax.f32 %v3485, %v3646
        %v3866 = vmax.f32 %v3486, %v3648
        %v3867 = vmax.f32 %v3487, %v3650
        %v3868 = vmax.f32 %v3488, %v3651
        %v3869 = vmax.f32 %v3489, %v3653
        %v3870 = vmax.f32 %v3490, %v3655
        %v3871 = vmax.f32 %v3491, %v3657
        %v3872 = vmax.f32 %v3492, %v3658
        %v3873 = vmax.f32 %v3493, %v3660
        %v3874 = vmax.f32 %v3494, %v3662
        %v3875 = vmax.f32 %v3495, %v3664
        %v3876 = vmax.f32 %v3496, %v3665
        %v3877 = vmax.f32 %v3497, %v3667
        %v3878 = vmax.f32 %v3498, %v3669
        %v3879 = vmax.f32 %v3499, %v3671
        %v3880 = vmax.f32 %v3500, %v3672
        %v3881 = vmax.f32 %v3501, %v3674
        %v3882 = vmax.f32 %v3502, %v3676
        %v3883 = vmax.f32 %v3503, %v3678
        %v3884 = vmax.f32 %v3504, %v3679
        %v3885 = vmax.f32 %v3505, %v3681
        %v3886 = vmax.f32 %v3506, %v3683
        %v3887 = vmax.f32 %v3507, %v3685
        %v3888 = vmax.f32 %v3508, %v3686
        %v3889 = vmax.f32 %v3509, %v3688
        %v3890 = vmax.f32 %v3510, %v3690
        %v3891 = vmax.f32 %v3511, %v3692
        %v3892 = vmax.f32 %v3512, %v3693
        %v3893 = vmax.f32 %v3513, %v3695
        %v3894 = vmax.f32 %v3514, %v3697
        %v3895 = vmax.f32 %v3515, %v3699
        %v3896 = vmax.f32 %v3516, %v3700
        %v3897 = vmax.f32 %v3517, %v3702
        %v3898 = vmax.f32 %v3518, %v3704
        %v3899 = vmax.f32 %v3519, %v3706
        %v3900 = vmax.f32 %v3520, %v3707
        %v3901 = vmax.f32 %v3521, %v3709
        %v3902 = vmax.f32 %v3522, %v3711
        %v3903 = vmax.f32 %v3523, %v3713
        %v3904 = vmax.f32 %v3524, %v3714
        %v3905 = vmax.f32 %v3525, %v3716
        %v3906 = vmax.f32 %v3526, %v3718
        %v3907 = vmax.f32 %v3527, %v3720
        %v3908 = vmax.f32 %v3528, %v3721
        %v3909 = vmax.f32 %v3529, %v3723
        %v3910 = vmax.f32 %v3530, %v3725
        %v3911 = vmax.f32 %v3531, %v3727
        %v3912 = vmax.f32 %v3532, %v3728
        %v3913 = vmax.f32 %v3533, %v3730
        %v3914 = vmax.f32 %v3534, %v3732
        %v3915 = vmax.f32 %v3535, %v3734
        %v3916 = vmax.f32 %v3536, %v3735
        %v3917 = vmax.f32 %v3537, %v3737
        %v3918 = vmax.f32 %v3538, %v3739
        %v3919 = vmax.f32 %v3539, %v3741
        %v3920 = vmax.f32 %v3540, %v3742
        %v3921 = vmax.f32 %v3541, %v3744
        %v3922 = vmax.f32 %v3542, %v3746
        %v3923 = vmax.f32 %v3543, %v3748
        %v3924 = vmax.f32 %v3544, %v3749
        %v3925 = vmax.f32 %v3545, %v3751
        %v3926 = vmax.f32 %v3546, %v3753
        %v3927 = vmax.f32 %v3547, %v3755
        %v3928 = vmax.f32 %v3548, %v3756
        %v3929 = vmax.f32 %v3549, %v3758
        %v3930 = vmax.f32 %v3550, %v3760
        %v3931 = vmax.f32 %v3551, %v3762
        %v3932 = vmax.f32 %v3552, %v3763
        %v3933 = vmax.f32 %v3553, %v3765
        %v3934 = vmax.f32 %v3554, %v3767
        %v3935 = vmax.f32 %v3555, %v3769
        %v3936 = vmax.f32 %v3556, %v3770
        %v3937 = vmax.f32 %v3557, %v3772
        %v3938 = vmax.f32 %v3558, %v3774
        %v3939 = vmax.f32 %v3559, %v3776
        %v3940 = vmax.f32 %v3560, %v3777
        %v3941 = vmax.f32 %v3561, %v3779
        %v3942 = vmax.f32 %v3562, %v3781
        %v3943 = vmax.f32 %v3563, %v3783
        %v3944 = vrot.slane %v3484, 1
        %v3945 = vrot.slane %v3485, 1
        %v3946 = vsel %vm1659, %v3944, %v3945
        %v3947 = vrot.slane %v3486, 1
        %v3948 = vsel %vm1659, %v3945, %v3947
        %v3949 = vrot.slane %v3487, 1
        %v3950 = vsel %vm1659, %v3947, %v3949
        %v3951 = vrot.slane %v3488, 1
        %v3952 = vrot.slane %v3489, 1
        %v3953 = vsel %vm1659, %v3951, %v3952
        %v3954 = vrot.slane %v3490, 1
        %v3955 = vsel %vm1659, %v3952, %v3954
        %v3956 = vrot.slane %v3491, 1
        %v3957 = vsel %vm1659, %v3954, %v3956
        %v3958 = vrot.slane %v3492, 1
        %v3959 = vrot.slane %v3493, 1
        %v3960 = vsel %vm1659, %v3958, %v3959
        %v3961 = vrot.slane %v3494, 1
        %v3962 = vsel %vm1659, %v3959, %v3961
        %v3963 = vrot.slane %v3495, 1
        %v3964 = vsel %vm1659, %v3961, %v3963
        %v3965 = vrot.slane %v3496, 1
        %v3966 = vrot.slane %v3497, 1
        %v3967 = vsel %vm1659, %v3965, %v3966
        %v3968 = vrot.slane %v3498, 1
        %v3969 = vsel %vm1659, %v3966, %v3968
        %v3970 = vrot.slane %v3499, 1
        %v3971 = vsel %vm1659, %v3968, %v3970
        %v3972 = vrot.slane %v3500, 1
        %v3973 = vrot.slane %v3501, 1
        %v3974 = vsel %vm1659, %v3972, %v3973
        %v3975 = vrot.slane %v3502, 1
        %v3976 = vsel %vm1659, %v3973, %v3975
        %v3977 = vrot.slane %v3503, 1
        %v3978 = vsel %vm1659, %v3975, %v3977
        %v3979 = vrot.slane %v3504, 1
        %v3980 = vrot.slane %v3505, 1
        %v3981 = vsel %vm1659, %v3979, %v3980
        %v3982 = vrot.slane %v3506, 1
        %v3983 = vsel %vm1659, %v3980, %v3982
        %v3984 = vrot.slane %v3507, 1
        %v3985 = vsel %vm1659, %v3982, %v3984
        %v3986 = vrot.slane %v3508, 1
        %v3987 = vrot.slane %v3509, 1
        %v3988 = vsel %vm1659, %v3986, %v3987
        %v3989 = vrot.slane %v3510, 1
        %v3990 = vsel %vm1659, %v3987, %v3989
        %v3991 = vrot.slane %v3511, 1
        %v3992 = vsel %vm1659, %v3989, %v3991
        %v3993 = vrot.slane %v3512, 1
        %v3994 = vrot.slane %v3513, 1
        %v3995 = vsel %vm1659, %v3993, %v3994
        %v3996 = vrot.slane %v3514, 1
        %v3997 = vsel %vm1659, %v3994, %v3996
        %v3998 = vrot.slane %v3515, 1
        %v3999 = vsel %vm1659, %v3996, %v3998
        %v4000 = vrot.slane %v3516, 1
        %v4001 = vrot.slane %v3517, 1
        %v4002 = vsel %vm1659, %v4000, %v4001
        %v4003 = vrot.slane %v3518, 1
        %v4004 = vsel %vm1659, %v4001, %v4003
        %v4005 = vrot.slane %v3519, 1
        %v4006 = vsel %vm1659, %v4003, %v4005
        %v4007 = vrot.slane %v3520, 1
        %v4008 = vrot.slane %v3521, 1
        %v4009 = vsel %vm1659, %v4007, %v4008
        %v4010 = vrot.slane %v3522, 1
        %v4011 = vsel %vm1659, %v4008, %v4010
        %v4012 = vrot.slane %v3523, 1
        %v4013 = vsel %vm1659, %v4010, %v4012
        %v4014 = vrot.slane %v3524, 1
        %v4015 = vrot.slane %v3525, 1
        %v4016 = vsel %vm1659, %v4014, %v4015
        %v4017 = vrot.slane %v3526, 1
        %v4018 = vsel %vm1659, %v4015, %v4017
        %v4019 = vrot.slane %v3527, 1
        %v4020 = vsel %vm1659, %v4017, %v4019
        %v4021 = vrot.slane %v3528, 1
        %v4022 = vrot.slane %v3529, 1
        %v4023 = vsel %vm1659, %v4021, %v4022
        %v4024 = vrot.slane %v3530, 1
        %v4025 = vsel %vm1659, %v4022, %v4024
        %v4026 = vrot.slane %v3531, 1
        %v4027 = vsel %vm1659, %v4024, %v4026
        %v4028 = vrot.slane %v3532, 1
        %v4029 = vrot.slane %v3533, 1
        %v4030 = vsel %vm1659, %v4028, %v4029
        %v4031 = vrot.slane %v3534, 1
        %v4032 = vsel %vm1659, %v4029, %v4031
        %v4033 = vrot.slane %v3535, 1
        %v4034 = vsel %vm1659, %v4031, %v4033
        %v4035 = vrot.slane %v3536, 1
        %v4036 = vrot.slane %v3537, 1
        %v4037 = vsel %vm1659, %v4035, %v4036
        %v4038 = vrot.slane %v3538, 1
        %v4039 = vsel %vm1659, %v4036, %v4038
        %v4040 = vrot.slane %v3539, 1
        %v4041 = vsel %vm1659, %v4038, %v4040
        %v4042 = vrot.slane %v3540, 1
        %v4043 = vrot.slane %v3541, 1
        %v4044 = vsel %vm1659, %v4042, %v4043
        %v4045 = vrot.slane %v3542, 1
        %v4046 = vsel %vm1659, %v4043, %v4045
        %v4047 = vrot.slane %v3543, 1
        %v4048 = vsel %vm1659, %v4045, %v4047
        %v4049 = vrot.slane %v3544, 1
        %v4050 = vrot.slane %v3545, 1
        %v4051 = vsel %vm1659, %v4049, %v4050
        %v4052 = vrot.slane %v3546, 1
        %v4053 = vsel %vm1659, %v4050, %v4052
        %v4054 = vrot.slane %v3547, 1
        %v4055 = vsel %vm1659, %v4052, %v4054
        %v4056 = vrot.slane %v3548, 1
        %v4057 = vrot.slane %v3549, 1
        %v4058 = vsel %vm1659, %v4056, %v4057
        %v4059 = vrot.slane %v3550, 1
        %v4060 = vsel %vm1659, %v4057, %v4059
        %v4061 = vrot.slane %v3551, 1
        %v4062 = vsel %vm1659, %v4059, %v4061
        %v4063 = vrot.slane %v3552, 1
        %v4064 = vrot.slane %v3553, 1
        %v4065 = vsel %vm1659, %v4063, %v4064
        %v4066 = vrot.slane %v3554, 1
        %v4067 = vsel %vm1659, %v4064, %v4066
        %v4068 = vrot.slane %v3555, 1
        %v4069 = vsel %vm1659, %v4066, %v4068
        %v4070 = vrot.slane %v3556, 1
        %v4071 = vrot.slane %v3557, 1
        %v4072 = vsel %vm1659, %v4070, %v4071
        %v4073 = vrot.slane %v3558, 1
        %v4074 = vsel %vm1659, %v4071, %v4073
        %v4075 = vrot.slane %v3559, 1
        %v4076 = vsel %vm1659, %v4073, %v4075
        %v4077 = vrot.slane %v3560, 1
        %v4078 = vrot.slane %v3561, 1
        %v4079 = vsel %vm1659, %v4077, %v4078
        %v4080 = vrot.slane %v3562, 1
        %v4081 = vsel %vm1659, %v4078, %v4080
        %v4082 = vrot.slane %v3563, 1
        %v4083 = vsel %vm1659, %v4080, %v4082
        %v4164 = vmax.f32 %v3864, %v3946
        %v4165 = vmax.f32 %v3865, %v3948
        %v4166 = vmax.f32 %v3866, %v3950
        %v4167 = vmax.f32 %v3867, %v3949
        %v4168 = vmax.f32 %v3868, %v3953
        %v4169 = vmax.f32 %v3869, %v3955
        %v4170 = vmax.f32 %v3870, %v3957
        %v4171 = vmax.f32 %v3871, %v3956
        %v4172 = vmax.f32 %v3872, %v3960
        %v4173 = vmax.f32 %v3873, %v3962
        %v4174 = vmax.f32 %v3874, %v3964
        %v4175 = vmax.f32 %v3875, %v3963
        %v4176 = vmax.f32 %v3876, %v3967
        %v4177 = vmax.f32 %v3877, %v3969
        %v4178 = vmax.f32 %v3878, %v3971
        %v4179 = vmax.f32 %v3879, %v3970
        %v4180 = vmax.f32 %v3880, %v3974
        %v4181 = vmax.f32 %v3881, %v3976
        %v4182 = vmax.f32 %v3882, %v3978
        %v4183 = vmax.f32 %v3883, %v3977
        %v4184 = vmax.f32 %v3884, %v3981
        %v4185 = vmax.f32 %v3885, %v3983
        %v4186 = vmax.f32 %v3886, %v3985
        %v4187 = vmax.f32 %v3887, %v3984
        %v4188 = vmax.f32 %v3888, %v3988
        %v4189 = vmax.f32 %v3889, %v3990
        %v4190 = vmax.f32 %v3890, %v3992
        %v4191 = vmax.f32 %v3891, %v3991
        %v4192 = vmax.f32 %v3892, %v3995
        %v4193 = vmax.f32 %v3893, %v3997
        %v4194 = vmax.f32 %v3894, %v3999
        %v4195 = vmax.f32 %v3895, %v3998
        %v4196 = vmax.f32 %v3896, %v4002
        %v4197 = vmax.f32 %v3897, %v4004
        %v4198 = vmax.f32 %v3898, %v4006
        %v4199 = vmax.f32 %v3899, %v4005
        %v4200 = vmax.f32 %v3900, %v4009
        %v4201 = vmax.f32 %v3901, %v4011
        %v4202 = vmax.f32 %v3902, %v4013
        %v4203 = vmax.f32 %v3903, %v4012
        %v4204 = vmax.f32 %v3904, %v4016
        %v4205 = vmax.f32 %v3905, %v4018
        %v4206 = vmax.f32 %v3906, %v4020
        %v4207 = vmax.f32 %v3907, %v4019
        %v4208 = vmax.f32 %v3908, %v4023
        %v4209 = vmax.f32 %v3909, %v4025
        %v4210 = vmax.f32 %v3910, %v4027
        %v4211 = vmax.f32 %v3911, %v4026
        %v4212 = vmax.f32 %v3912, %v4030
        %v4213 = vmax.f32 %v3913, %v4032
        %v4214 = vmax.f32 %v3914, %v4034
        %v4215 = vmax.f32 %v3915, %v4033
        %v4216 = vmax.f32 %v3916, %v4037
        %v4217 = vmax.f32 %v3917, %v4039
        %v4218 = vmax.f32 %v3918, %v4041
        %v4219 = vmax.f32 %v3919, %v4040
        %v4220 = vmax.f32 %v3920, %v4044
        %v4221 = vmax.f32 %v3921, %v4046
        %v4222 = vmax.f32 %v3922, %v4048
        %v4223 = vmax.f32 %v3923, %v4047
        %v4224 = vmax.f32 %v3924, %v4051
        %v4225 = vmax.f32 %v3925, %v4053
        %v4226 = vmax.f32 %v3926, %v4055
        %v4227 = vmax.f32 %v3927, %v4054
        %v4228 = vmax.f32 %v3928, %v4058
        %v4229 = vmax.f32 %v3929, %v4060
        %v4230 = vmax.f32 %v3930, %v4062
        %v4231 = vmax.f32 %v3931, %v4061
        %v4232 = vmax.f32 %v3932, %v4065
        %v4233 = vmax.f32 %v3933, %v4067
        %v4234 = vmax.f32 %v3934, %v4069
        %v4235 = vmax.f32 %v3935, %v4068
        %v4236 = vmax.f32 %v3936, %v4072
        %v4237 = vmax.f32 %v3937, %v4074
        %v4238 = vmax.f32 %v3938, %v4076
        %v4239 = vmax.f32 %v3939, %v4075
        %v4240 = vmax.f32 %v3940, %v4079
        %v4241 = vmax.f32 %v3941, %v4081
        %v4242 = vmax.f32 %v3942, %v4083
        %v4243 = vmax.f32 %v3943, %v4082
        %v4244 = vrot.slane %v3484, 6
        %v4245 = vrot.slane %v3485, 6
        %v4246 = vsel %vm2020, %v4244, %v4245
        %v4247 = vrot.slane %v3486, 6
        %v4248 = vsel %vm2020, %v4245, %v4247
        %v4249 = vrot.slane %v3488, 6
        %v4250 = vrot.slane %v3489, 6
        %v4251 = vsel %vm2020, %v4249, %v4250
        %v4252 = vrot.slane %v3490, 6
        %v4253 = vsel %vm2020, %v4250, %v4252
        %v4254 = vrot.slane %v3492, 6
        %v4255 = vrot.slane %v3493, 6
        %v4256 = vsel %vm2020, %v4254, %v4255
        %v4257 = vrot.slane %v3494, 6
        %v4258 = vsel %vm2020, %v4255, %v4257
        %v4259 = vrot.slane %v3496, 6
        %v4260 = vrot.slane %v3497, 6
        %v4261 = vsel %vm2020, %v4259, %v4260
        %v4262 = vrot.slane %v3498, 6
        %v4263 = vsel %vm2020, %v4260, %v4262
        %v4264 = vrot.slane %v3500, 6
        %v4265 = vrot.slane %v3501, 6
        %v4266 = vsel %vm2020, %v4264, %v4265
        %v4267 = vrot.slane %v3502, 6
        %v4268 = vsel %vm2020, %v4265, %v4267
        %v4269 = vrot.slane %v3504, 6
        %v4270 = vrot.slane %v3505, 6
        %v4271 = vsel %vm2020, %v4269, %v4270
        %v4272 = vrot.slane %v3506, 6
        %v4273 = vsel %vm2020, %v4270, %v4272
        %v4274 = vrot.slane %v3508, 6
        %v4275 = vrot.slane %v3509, 6
        %v4276 = vsel %vm2020, %v4274, %v4275
        %v4277 = vrot.slane %v3510, 6
        %v4278 = vsel %vm2020, %v4275, %v4277
        %v4279 = vrot.slane %v3512, 6
        %v4280 = vrot.slane %v3513, 6
        %v4281 = vsel %vm2020, %v4279, %v4280
        %v4282 = vrot.slane %v3514, 6
        %v4283 = vsel %vm2020, %v4280, %v4282
        %v4284 = vrot.slane %v3516, 6
        %v4285 = vrot.slane %v3517, 6
        %v4286 = vsel %vm2020, %v4284, %v4285
        %v4287 = vrot.slane %v3518, 6
        %v4288 = vsel %vm2020, %v4285, %v4287
        %v4289 = vrot.slane %v3520, 6
        %v4290 = vrot.slane %v3521, 6
        %v4291 = vsel %vm2020, %v4289, %v4290
        %v4292 = vrot.slane %v3522, 6
        %v4293 = vsel %vm2020, %v4290, %v4292
        %v4294 = vrot.slane %v3524, 6
        %v4295 = vrot.slane %v3525, 6
        %v4296 = vsel %vm2020, %v4294, %v4295
        %v4297 = vrot.slane %v3526, 6
        %v4298 = vsel %vm2020, %v4295, %v4297
        %v4299 = vrot.slane %v3528, 6
        %v4300 = vrot.slane %v3529, 6
        %v4301 = vsel %vm2020, %v4299, %v4300
        %v4302 = vrot.slane %v3530, 6
        %v4303 = vsel %vm2020, %v4300, %v4302
        %v4304 = vrot.slane %v3532, 6
        %v4305 = vrot.slane %v3533, 6
        %v4306 = vsel %vm2020, %v4304, %v4305
        %v4307 = vrot.slane %v3534, 6
        %v4308 = vsel %vm2020, %v4305, %v4307
        %v4309 = vrot.slane %v3536, 6
        %v4310 = vrot.slane %v3537, 6
        %v4311 = vsel %vm2020, %v4309, %v4310
        %v4312 = vrot.slane %v3538, 6
        %v4313 = vsel %vm2020, %v4310, %v4312
        %v4314 = vrot.slane %v3540, 6
        %v4315 = vrot.slane %v3541, 6
        %v4316 = vsel %vm2020, %v4314, %v4315
        %v4317 = vrot.slane %v3542, 6
        %v4318 = vsel %vm2020, %v4315, %v4317
        %v4319 = vrot.slane %v3544, 6
        %v4320 = vrot.slane %v3545, 6
        %v4321 = vsel %vm2020, %v4319, %v4320
        %v4322 = vrot.slane %v3546, 6
        %v4323 = vsel %vm2020, %v4320, %v4322
        %v4324 = vrot.slane %v3548, 6
        %v4325 = vrot.slane %v3549, 6
        %v4326 = vsel %vm2020, %v4324, %v4325
        %v4327 = vrot.slane %v3550, 6
        %v4328 = vsel %vm2020, %v4325, %v4327
        %v4329 = vrot.slane %v3552, 6
        %v4330 = vrot.slane %v3553, 6
        %v4331 = vsel %vm2020, %v4329, %v4330
        %v4332 = vrot.slane %v3554, 6
        %v4333 = vsel %vm2020, %v4330, %v4332
        %v4334 = vrot.slane %v3556, 6
        %v4335 = vrot.slane %v3557, 6
        %v4336 = vsel %vm2020, %v4334, %v4335
        %v4337 = vrot.slane %v3558, 6
        %v4338 = vsel %vm2020, %v4335, %v4337
        %v4339 = vrot.slane %v3560, 6
        %v4340 = vrot.slane %v3561, 6
        %v4341 = vsel %vm2020, %v4339, %v4340
        %v4342 = vrot.slane %v3562, 6
        %v4343 = vsel %vm2020, %v4340, %v4342
        %v4424 = vmax.f32 %v4164, %v4244
        %v4425 = vmax.f32 %v4165, %v4246
        %v4426 = vmax.f32 %v4166, %v4248
        %v4427 = vmax.f32 %v4167, %v4247
        %v4428 = vmax.f32 %v4168, %v4249
        %v4429 = vmax.f32 %v4169, %v4251
        %v4430 = vmax.f32 %v4170, %v4253
        %v4431 = vmax.f32 %v4171, %v4252
        %v4432 = vmax.f32 %v4172, %v4254
        %v4433 = vmax.f32 %v4173, %v4256
        %v4434 = vmax.f32 %v4174, %v4258
        %v4435 = vmax.f32 %v4175, %v4257
        %v4436 = vmax.f32 %v4176, %v4259
        %v4437 = vmax.f32 %v4177, %v4261
        %v4438 = vmax.f32 %v4178, %v4263
        %v4439 = vmax.f32 %v4179, %v4262
        %v4440 = vmax.f32 %v4180, %v4264
        %v4441 = vmax.f32 %v4181, %v4266
        %v4442 = vmax.f32 %v4182, %v4268
        %v4443 = vmax.f32 %v4183, %v4267
        %v4444 = vmax.f32 %v4184, %v4269
        %v4445 = vmax.f32 %v4185, %v4271
        %v4446 = vmax.f32 %v4186, %v4273
        %v4447 = vmax.f32 %v4187, %v4272
        %v4448 = vmax.f32 %v4188, %v4274
        %v4449 = vmax.f32 %v4189, %v4276
        %v4450 = vmax.f32 %v4190, %v4278
        %v4451 = vmax.f32 %v4191, %v4277
        %v4452 = vmax.f32 %v4192, %v4279
        %v4453 = vmax.f32 %v4193, %v4281
        %v4454 = vmax.f32 %v4194, %v4283
        %v4455 = vmax.f32 %v4195, %v4282
        %v4456 = vmax.f32 %v4196, %v4284
        %v4457 = vmax.f32 %v4197, %v4286
        %v4458 = vmax.f32 %v4198, %v4288
        %v4459 = vmax.f32 %v4199, %v4287
        %v4460 = vmax.f32 %v4200, %v4289
        %v4461 = vmax.f32 %v4201, %v4291
        %v4462 = vmax.f32 %v4202, %v4293
        %v4463 = vmax.f32 %v4203, %v4292
        %v4464 = vmax.f32 %v4204, %v4294
        %v4465 = vmax.f32 %v4205, %v4296
        %v4466 = vmax.f32 %v4206, %v4298
        %v4467 = vmax.f32 %v4207, %v4297
        %v4468 = vmax.f32 %v4208, %v4299
        %v4469 = vmax.f32 %v4209, %v4301
        %v4470 = vmax.f32 %v4210, %v4303
        %v4471 = vmax.f32 %v4211, %v4302
        %v4472 = vmax.f32 %v4212, %v4304
        %v4473 = vmax.f32 %v4213, %v4306
        %v4474 = vmax.f32 %v4214, %v4308
        %v4475 = vmax.f32 %v4215, %v4307
        %v4476 = vmax.f32 %v4216, %v4309
        %v4477 = vmax.f32 %v4217, %v4311
        %v4478 = vmax.f32 %v4218, %v4313
        %v4479 = vmax.f32 %v4219, %v4312
        %v4480 = vmax.f32 %v4220, %v4314
        %v4481 = vmax.f32 %v4221, %v4316
        %v4482 = vmax.f32 %v4222, %v4318
        %v4483 = vmax.f32 %v4223, %v4317
        %v4484 = vmax.f32 %v4224, %v4319
        %v4485 = vmax.f32 %v4225, %v4321
        %v4486 = vmax.f32 %v4226, %v4323
        %v4487 = vmax.f32 %v4227, %v4322
        %v4488 = vmax.f32 %v4228, %v4324
        %v4489 = vmax.f32 %v4229, %v4326
        %v4490 = vmax.f32 %v4230, %v4328
        %v4491 = vmax.f32 %v4231, %v4327
        %v4492 = vmax.f32 %v4232, %v4329
        %v4493 = vmax.f32 %v4233, %v4331
        %v4494 = vmax.f32 %v4234, %v4333
        %v4495 = vmax.f32 %v4235, %v4332
        %v4496 = vmax.f32 %v4236, %v4334
        %v4497 = vmax.f32 %v4237, %v4336
        %v4498 = vmax.f32 %v4238, %v4338
        %v4499 = vmax.f32 %v4239, %v4337
        %v4500 = vmax.f32 %v4240, %v4339
        %v4501 = vmax.f32 %v4241, %v4341
        %v4502 = vmax.f32 %v4242, %v4343
        %v4503 = vmax.f32 %v4243, %v4342
        %v4504 = vrot.slane %v3484, 2
        %v4505 = vrot.slane %v3485, 2
        %v4506 = vsel %vm2381, %v4504, %v4505
        %v4507 = vrot.slane %v3486, 2
        %v4508 = vsel %vm2381, %v4505, %v4507
        %v4509 = vrot.slane %v3487, 2
        %v4510 = vsel %vm2381, %v4507, %v4509
        %v4511 = vrot.slane %v3488, 2
        %v4512 = vrot.slane %v3489, 2
        %v4513 = vsel %vm2381, %v4511, %v4512
        %v4514 = vrot.slane %v3490, 2
        %v4515 = vsel %vm2381, %v4512, %v4514
        %v4516 = vrot.slane %v3491, 2
        %v4517 = vsel %vm2381, %v4514, %v4516
        %v4518 = vrot.slane %v3492, 2
        %v4519 = vrot.slane %v3493, 2
        %v4520 = vsel %vm2381, %v4518, %v4519
        %v4521 = vrot.slane %v3494, 2
        %v4522 = vsel %vm2381, %v4519, %v4521
        %v4523 = vrot.slane %v3495, 2
        %v4524 = vsel %vm2381, %v4521, %v4523
        %v4525 = vrot.slane %v3496, 2
        %v4526 = vrot.slane %v3497, 2
        %v4527 = vsel %vm2381, %v4525, %v4526
        %v4528 = vrot.slane %v3498, 2
        %v4529 = vsel %vm2381, %v4526, %v4528
        %v4530 = vrot.slane %v3499, 2
        %v4531 = vsel %vm2381, %v4528, %v4530
        %v4532 = vrot.slane %v3500, 2
        %v4533 = vrot.slane %v3501, 2
        %v4534 = vsel %vm2381, %v4532, %v4533
        %v4535 = vrot.slane %v3502, 2
        %v4536 = vsel %vm2381, %v4533, %v4535
        %v4537 = vrot.slane %v3503, 2
        %v4538 = vsel %vm2381, %v4535, %v4537
        %v4539 = vrot.slane %v3504, 2
        %v4540 = vrot.slane %v3505, 2
        %v4541 = vsel %vm2381, %v4539, %v4540
        %v4542 = vrot.slane %v3506, 2
        %v4543 = vsel %vm2381, %v4540, %v4542
        %v4544 = vrot.slane %v3507, 2
        %v4545 = vsel %vm2381, %v4542, %v4544
        %v4546 = vrot.slane %v3508, 2
        %v4547 = vrot.slane %v3509, 2
        %v4548 = vsel %vm2381, %v4546, %v4547
        %v4549 = vrot.slane %v3510, 2
        %v4550 = vsel %vm2381, %v4547, %v4549
        %v4551 = vrot.slane %v3511, 2
        %v4552 = vsel %vm2381, %v4549, %v4551
        %v4553 = vrot.slane %v3512, 2
        %v4554 = vrot.slane %v3513, 2
        %v4555 = vsel %vm2381, %v4553, %v4554
        %v4556 = vrot.slane %v3514, 2
        %v4557 = vsel %vm2381, %v4554, %v4556
        %v4558 = vrot.slane %v3515, 2
        %v4559 = vsel %vm2381, %v4556, %v4558
        %v4560 = vrot.slane %v3516, 2
        %v4561 = vrot.slane %v3517, 2
        %v4562 = vsel %vm2381, %v4560, %v4561
        %v4563 = vrot.slane %v3518, 2
        %v4564 = vsel %vm2381, %v4561, %v4563
        %v4565 = vrot.slane %v3519, 2
        %v4566 = vsel %vm2381, %v4563, %v4565
        %v4567 = vrot.slane %v3520, 2
        %v4568 = vrot.slane %v3521, 2
        %v4569 = vsel %vm2381, %v4567, %v4568
        %v4570 = vrot.slane %v3522, 2
        %v4571 = vsel %vm2381, %v4568, %v4570
        %v4572 = vrot.slane %v3523, 2
        %v4573 = vsel %vm2381, %v4570, %v4572
        %v4574 = vrot.slane %v3524, 2
        %v4575 = vrot.slane %v3525, 2
        %v4576 = vsel %vm2381, %v4574, %v4575
        %v4577 = vrot.slane %v3526, 2
        %v4578 = vsel %vm2381, %v4575, %v4577
        %v4579 = vrot.slane %v3527, 2
        %v4580 = vsel %vm2381, %v4577, %v4579
        %v4581 = vrot.slane %v3528, 2
        %v4582 = vrot.slane %v3529, 2
        %v4583 = vsel %vm2381, %v4581, %v4582
        %v4584 = vrot.slane %v3530, 2
        %v4585 = vsel %vm2381, %v4582, %v4584
        %v4586 = vrot.slane %v3531, 2
        %v4587 = vsel %vm2381, %v4584, %v4586
        %v4588 = vrot.slane %v3532, 2
        %v4589 = vrot.slane %v3533, 2
        %v4590 = vsel %vm2381, %v4588, %v4589
        %v4591 = vrot.slane %v3534, 2
        %v4592 = vsel %vm2381, %v4589, %v4591
        %v4593 = vrot.slane %v3535, 2
        %v4594 = vsel %vm2381, %v4591, %v4593
        %v4595 = vrot.slane %v3536, 2
        %v4596 = vrot.slane %v3537, 2
        %v4597 = vsel %vm2381, %v4595, %v4596
        %v4598 = vrot.slane %v3538, 2
        %v4599 = vsel %vm2381, %v4596, %v4598
        %v4600 = vrot.slane %v3539, 2
        %v4601 = vsel %vm2381, %v4598, %v4600
        %v4602 = vrot.slane %v3540, 2
        %v4603 = vrot.slane %v3541, 2
        %v4604 = vsel %vm2381, %v4602, %v4603
        %v4605 = vrot.slane %v3542, 2
        %v4606 = vsel %vm2381, %v4603, %v4605
        %v4607 = vrot.slane %v3543, 2
        %v4608 = vsel %vm2381, %v4605, %v4607
        %v4609 = vrot.slane %v3544, 2
        %v4610 = vrot.slane %v3545, 2
        %v4611 = vsel %vm2381, %v4609, %v4610
        %v4612 = vrot.slane %v3546, 2
        %v4613 = vsel %vm2381, %v4610, %v4612
        %v4614 = vrot.slane %v3547, 2
        %v4615 = vsel %vm2381, %v4612, %v4614
        %v4616 = vrot.slane %v3548, 2
        %v4617 = vrot.slane %v3549, 2
        %v4618 = vsel %vm2381, %v4616, %v4617
        %v4619 = vrot.slane %v3550, 2
        %v4620 = vsel %vm2381, %v4617, %v4619
        %v4621 = vrot.slane %v3551, 2
        %v4622 = vsel %vm2381, %v4619, %v4621
        %v4623 = vrot.slane %v3552, 2
        %v4624 = vrot.slane %v3553, 2
        %v4625 = vsel %vm2381, %v4623, %v4624
        %v4626 = vrot.slane %v3554, 2
        %v4627 = vsel %vm2381, %v4624, %v4626
        %v4628 = vrot.slane %v3555, 2
        %v4629 = vsel %vm2381, %v4626, %v4628
        %v4630 = vrot.slane %v3556, 2
        %v4631 = vrot.slane %v3557, 2
        %v4632 = vsel %vm2381, %v4630, %v4631
        %v4633 = vrot.slane %v3558, 2
        %v4634 = vsel %vm2381, %v4631, %v4633
        %v4635 = vrot.slane %v3559, 2
        %v4636 = vsel %vm2381, %v4633, %v4635
        %v4637 = vrot.slane %v3560, 2
        %v4638 = vrot.slane %v3561, 2
        %v4639 = vsel %vm2381, %v4637, %v4638
        %v4640 = vrot.slane %v3562, 2
        %v4641 = vsel %vm2381, %v4638, %v4640
        %v4642 = vrot.slane %v3563, 2
        %v4643 = vsel %vm2381, %v4640, %v4642
        %v4724 = vmax.f32 %v4424, %v4506
        %v4725 = vmax.f32 %v4425, %v4508
        %v4726 = vmax.f32 %v4426, %v4510
        %v4727 = vmax.f32 %v4427, %v4509
        %v4728 = vmax.f32 %v4428, %v4513
        %v4729 = vmax.f32 %v4429, %v4515
        %v4730 = vmax.f32 %v4430, %v4517
        %v4731 = vmax.f32 %v4431, %v4516
        %v4732 = vmax.f32 %v4432, %v4520
        %v4733 = vmax.f32 %v4433, %v4522
        %v4734 = vmax.f32 %v4434, %v4524
        %v4735 = vmax.f32 %v4435, %v4523
        %v4736 = vmax.f32 %v4436, %v4527
        %v4737 = vmax.f32 %v4437, %v4529
        %v4738 = vmax.f32 %v4438, %v4531
        %v4739 = vmax.f32 %v4439, %v4530
        %v4740 = vmax.f32 %v4440, %v4534
        %v4741 = vmax.f32 %v4441, %v4536
        %v4742 = vmax.f32 %v4442, %v4538
        %v4743 = vmax.f32 %v4443, %v4537
        %v4744 = vmax.f32 %v4444, %v4541
        %v4745 = vmax.f32 %v4445, %v4543
        %v4746 = vmax.f32 %v4446, %v4545
        %v4747 = vmax.f32 %v4447, %v4544
        %v4748 = vmax.f32 %v4448, %v4548
        %v4749 = vmax.f32 %v4449, %v4550
        %v4750 = vmax.f32 %v4450, %v4552
        %v4751 = vmax.f32 %v4451, %v4551
        %v4752 = vmax.f32 %v4452, %v4555
        %v4753 = vmax.f32 %v4453, %v4557
        %v4754 = vmax.f32 %v4454, %v4559
        %v4755 = vmax.f32 %v4455, %v4558
        %v4756 = vmax.f32 %v4456, %v4562
        %v4757 = vmax.f32 %v4457, %v4564
        %v4758 = vmax.f32 %v4458, %v4566
        %v4759 = vmax.f32 %v4459, %v4565
        %v4760 = vmax.f32 %v4460, %v4569
        %v4761 = vmax.f32 %v4461, %v4571
        %v4762 = vmax.f32 %v4462, %v4573
        %v4763 = vmax.f32 %v4463, %v4572
        %v4764 = vmax.f32 %v4464, %v4576
        %v4765 = vmax.f32 %v4465, %v4578
        %v4766 = vmax.f32 %v4466, %v4580
        %v4767 = vmax.f32 %v4467, %v4579
        %v4768 = vmax.f32 %v4468, %v4583
        %v4769 = vmax.f32 %v4469, %v4585
        %v4770 = vmax.f32 %v4470, %v4587
        %v4771 = vmax.f32 %v4471, %v4586
        %v4772 = vmax.f32 %v4472, %v4590
        %v4773 = vmax.f32 %v4473, %v4592
        %v4774 = vmax.f32 %v4474, %v4594
        %v4775 = vmax.f32 %v4475, %v4593
        %v4776 = vmax.f32 %v4476, %v4597
        %v4777 = vmax.f32 %v4477, %v4599
        %v4778 = vmax.f32 %v4478, %v4601
        %v4779 = vmax.f32 %v4479, %v4600
        %v4780 = vmax.f32 %v4480, %v4604
        %v4781 = vmax.f32 %v4481, %v4606
        %v4782 = vmax.f32 %v4482, %v4608
        %v4783 = vmax.f32 %v4483, %v4607
        %v4784 = vmax.f32 %v4484, %v4611
        %v4785 = vmax.f32 %v4485, %v4613
        %v4786 = vmax.f32 %v4486, %v4615
        %v4787 = vmax.f32 %v4487, %v4614
        %v4788 = vmax.f32 %v4488, %v4618
        %v4789 = vmax.f32 %v4489, %v4620
        %v4790 = vmax.f32 %v4490, %v4622
        %v4791 = vmax.f32 %v4491, %v4621
        %v4792 = vmax.f32 %v4492, %v4625
        %v4793 = vmax.f32 %v4493, %v4627
        %v4794 = vmax.f32 %v4494, %v4629
        %v4795 = vmax.f32 %v4495, %v4628
        %v4796 = vmax.f32 %v4496, %v4632
        %v4797 = vmax.f32 %v4497, %v4634
        %v4798 = vmax.f32 %v4498, %v4636
        %v4799 = vmax.f32 %v4499, %v4635
        %v4800 = vmax.f32 %v4500, %v4639
        %v4801 = vmax.f32 %v4501, %v4641
        %v4802 = vmax.f32 %v4502, %v4643
        %v4803 = vmax.f32 %v4503, %v4642
        %4804 = vst.msk [vmem:[#allocation4 - $0x2] sm:$0xfc] %vm2742, %v4724
        %4805 = vst.msk [vmem:[#allocation4 + $0x6] sm:$0xff] %vm151, %v4725
        %4806 = vst.msk [vmem:[#allocation4 + $0xe] sm:$0xff] %vm151, %v4726
        %vm4807 = vcmask 25600
        %4808 = vst.msk [vmem:[#allocation4 + $0x16] sm:$0x3] %vm4807, %v4727
        %4809 = vst.msk [vmem:[#allocation4 + $0x16] sm:$0xfc] %vm2742, %v4728
        %4810 = vst.msk [vmem:[#allocation4 + $0x1e] sm:$0xff] %vm151, %v4729
        %4811 = vst.msk [vmem:[#allocation4 + $0x26] sm:$0xff] %vm151, %v4730
        %4812 = vst.msk [vmem:[#allocation4 + $0x2e] sm:$0x3] %vm4807, %v4731
        %4813 = vst.msk [vmem:[#allocation4 + $0x2e] sm:$0xfc] %vm2742, %v4732
        %4814 = vst.msk [vmem:[#allocation4 + $0x36] sm:$0xff] %vm151, %v4733
        %4815 = vst.msk [vmem:[#allocation4 + $0x3e] sm:$0xff] %vm151, %v4734
        %4816 = vst.msk [vmem:[#allocation4 + $0x46] sm:$0x3] %vm4807, %v4735
        %4817 = vst.msk [vmem:[#allocation4 + $0x46] sm:$0xfc] %vm2742, %v4736
        %4818 = vst.msk [vmem:[#allocation4 + $0x4e] sm:$0xff] %vm151, %v4737
        %4819 = vst.msk [vmem:[#allocation4 + $0x56] sm:$0xff] %vm151, %v4738
        %4820 = vst.msk [vmem:[#allocation4 + $0x5e] sm:$0x3] %vm4807, %v4739
        %4821 = vst.msk [vmem:[#allocation4 + $0x5e] sm:$0xfc] %vm2742, %v4740
        %4822 = vst.msk [vmem:[#allocation4 + $0x66] sm:$0xff] %vm151, %v4741
        %4823 = vst.msk [vmem:[#allocation4 + $0x6e] sm:$0xff] %vm151, %v4742
        %4824 = vst.msk [vmem:[#allocation4 + $0x76] sm:$0x3] %vm4807, %v4743
        %4825 = vst.msk [vmem:[#allocation4 + $0x76] sm:$0xfc] %vm2742, %v4744
        %4826 = vst.msk [vmem:[#allocation4 + $0x7e] sm:$0xff] %vm151, %v4745
        %4827 = vst.msk [vmem:[#allocation4 + $0x86] sm:$0xff] %vm151, %v4746
        %4828 = vst.msk [vmem:[#allocation4 + $0x8e] sm:$0x3] %vm4807, %v4747
        %4829 = vst.msk [vmem:[#allocation4 + $0x8e] sm:$0xfc] %vm2742, %v4748
        %4830 = vst.msk [vmem:[#allocation4 + $0x96] sm:$0xff] %vm151, %v4749
        %4831 = vst.msk [vmem:[#allocation4 + $0x9e] sm:$0xff] %vm151, %v4750
        %4832 = vst.msk [vmem:[#allocation4 + $0xa6] sm:$0x3] %vm4807, %v4751
        %4833 = vst.msk [vmem:[#allocation4 + $0xa6] sm:$0xfc] %vm2742, %v4752
        %4834 = vst.msk [vmem:[#allocation4 + $0xae] sm:$0xff] %vm151, %v4753
        %4835 = vst.msk [vmem:[#allocation4 + $0xb6] sm:$0xff] %vm151, %v4754
        %4836 = vst.msk [vmem:[#allocation4 + $0xbe] sm:$0x3] %vm4807, %v4755
        %4837 = vst.msk [vmem:[#allocation4 + $0xbe] sm:$0xfc] %vm2742, %v4756
        %4838 = vst.msk [vmem:[#allocation4 + $0xc6] sm:$0xff] %vm151, %v4757
        %4839 = vst.msk [vmem:[#allocation4 + $0xce] sm:$0xff] %vm151, %v4758
        %4840 = vst.msk [vmem:[#allocation4 + $0xd6] sm:$0x3] %vm4807, %v4759
        %4841 = vst.msk [vmem:[#allocation4 + $0xd6] sm:$0xfc] %vm2742, %v4760
        %4842 = vst.msk [vmem:[#allocation4 + $0xde] sm:$0xff] %vm151, %v4761
        %4843 = vst.msk [vmem:[#allocation4 + $0xe6] sm:$0xff] %vm151, %v4762
        %4844 = vst.msk [vmem:[#allocation4 + $0xee] sm:$0x3] %vm4807, %v4763
        %4845 = vst.msk [vmem:[#allocation4 + $0xee] sm:$0xfc] %vm2742, %v4764
        %4846 = vst.msk [vmem:[#allocation4 + $0xf6] sm:$0xff] %vm151, %v4765
        %4847 = vst.msk [vmem:[#allocation4 + $0xfe] sm:$0xff] %vm151, %v4766
        %4848 = vst.msk [vmem:[#allocation4 + $0x106] sm:$0x3] %vm4807, %v4767
        %4849 = vst.msk [vmem:[#allocation4 + $0x106] sm:$0xfc] %vm2742, %v4768
        %4850 = vst.msk [vmem:[#allocation4 + $0x10e] sm:$0xff] %vm151, %v4769
        %4851 = vst.msk [vmem:[#allocation4 + $0x116] sm:$0xff] %vm151, %v4770
        %4852 = vst.msk [vmem:[#allocation4 + $0x11e] sm:$0x3] %vm4807, %v4771
        %4853 = vst.msk [vmem:[#allocation4 + $0x11e] sm:$0xfc] %vm2742, %v4772
        %4854 = vst.msk [vmem:[#allocation4 + $0x126] sm:$0xff] %vm151, %v4773
        %4855 = vst.msk [vmem:[#allocation4 + $0x12e] sm:$0xff] %vm151, %v4774
        %4856 = vst.msk [vmem:[#allocation4 + $0x136] sm:$0x3] %vm4807, %v4775
        %4857 = vst.msk [vmem:[#allocation4 + $0x136] sm:$0xfc] %vm2742, %v4776
        %4858 = vst.msk [vmem:[#allocation4 + $0x13e] sm:$0xff] %vm151, %v4777
        %4859 = vst.msk [vmem:[#allocation4 + $0x146] sm:$0xff] %vm151, %v4778
        %4860 = vst.msk [vmem:[#allocation4 + $0x14e] sm:$0x3] %vm4807, %v4779
        %4861 = vst.msk [vmem:[#allocation4 + $0x14e] sm:$0xfc] %vm2742, %v4780
        %4862 = vst.msk [vmem:[#allocation4 + $0x156] sm:$0xff] %vm151, %v4781
        %4863 = vst.msk [vmem:[#allocation4 + $0x15e] sm:$0xff] %vm151, %v4782
        %4864 = vst.msk [vmem:[#allocation4 + $0x166] sm:$0x3] %vm4807, %v4783
        %4865 = vst.msk [vmem:[#allocation4 + $0x166] sm:$0xfc] %vm2742, %v4784
        %4866 = vst.msk [vmem:[#allocation4 + $0x16e] sm:$0xff] %vm151, %v4785
        %4867 = vst.msk [vmem:[#allocation4 + $0x176] sm:$0xff] %vm151, %v4786
        %4868 = vst.msk [vmem:[#allocation4 + $0x17e] sm:$0x3] %vm4807, %v4787
        %4869 = vst.msk [vmem:[#allocation4 + $0x17e] sm:$0xfc] %vm2742, %v4788
        %4870 = vst.msk [vmem:[#allocation4 + $0x186] sm:$0xff] %vm151, %v4789
        %4871 = vst.msk [vmem:[#allocation4 + $0x18e] sm:$0xff] %vm151, %v4790
        %4872 = vst.msk [vmem:[#allocation4 + $0x196] sm:$0x3] %vm4807, %v4791
        %4873 = vst.msk [vmem:[#allocation4 + $0x196] sm:$0xfc] %vm2742, %v4792
        %4874 = vst.msk [vmem:[#allocation4 + $0x19e] sm:$0xff] %vm151, %v4793
        %4875 = vst.msk [vmem:[#allocation4 + $0x1a6] sm:$0xff] %vm151, %v4794
        %4876 = vst.msk [vmem:[#allocation4 + $0x1ae] sm:$0x3] %vm4807, %v4795
        %4877 = vst.msk [vmem:[#allocation4 + $0x1ae] sm:$0xfc] %vm2742, %v4796
        %4878 = vst.msk [vmem:[#allocation4 + $0x1b6] sm:$0xff] %vm151, %v4797
        %4879 = vst.msk [vmem:[#allocation4 + $0x1be] sm:$0xff] %vm151, %v4798
        %4880 = vst.msk [vmem:[#allocation4 + $0x1c6] sm:$0x3] %vm4807, %v4799
        %4881 = vst.msk [vmem:[#allocation4 + $0x1c6] sm:$0xfc] %vm2742, %v4800
        %4882 = vst.msk [vmem:[#allocation4 + $0x1ce] sm:$0xff] %vm151, %v4801
        %4883 = vst.msk [vmem:[#allocation4 + $0x1d6] sm:$0xff] %vm151, %v4802
        %4884 = vst.msk [vmem:[#allocation4 + $0x1de] sm:$0x3] %vm4807, %v4803
        %s4885 = scalar_lea.vmem [#allocation4], 48
        %v4886 = vld [vmem:[%s4885] sm:$0xff]
        %v4887 = vld [vmem:[%s4885 + $0x8] sm:$0xff]
        %v4888 = vld [vmem:[%s4885 + $0x10] sm:$0xff]
        %v4889 = vld [vmem:[%s4885 + $0x18] sm:$0xff]
        %v4890 = vld [vmem:[%s4885 + $0x20] sm:$0xff]
        %v4891 = vld [vmem:[%s4885 + $0x28] sm:$0xff]
        %v4892 = vld [vmem:[%s4885 + $0x30] sm:$0xff]
        %v4893 = vld [vmem:[%s4885 + $0x38] sm:$0xff]
        %v4894 = vld [vmem:[%s4885 + $0x40] sm:$0xff]
        %v4895 = vld [vmem:[%s4885 + $0x48] sm:$0xff]
        %v4896 = vld [vmem:[%s4885 + $0x50] sm:$0xff]
        %v4897 = vld [vmem:[%s4885 + $0x58] sm:$0xff]
        %v4898 = vld [vmem:[%s4885 + $0x60] sm:$0xff]
        %v4899 = vld [vmem:[%s4885 + $0x68] sm:$0xff]
        %v4900 = vld [vmem:[%s4885 + $0x70] sm:$0xff]
        %v4901 = vld [vmem:[%s4885 + $0x78] sm:$0xff]
        %v4902 = vld [vmem:[%s4885 + $0x80] sm:$0xff]
        %v4903 = vld [vmem:[%s4885 + $0x88] sm:$0xff]
        %v4904 = vld [vmem:[%s4885 + $0x90] sm:$0xff]
        %v4905 = vld [vmem:[%s4885 + $0x98] sm:$0xff]
        %v4906 = vld [vmem:[%s4885 + $0xa0] sm:$0xff]
        %v4907 = vld [vmem:[%s4885 + $0xa8] sm:$0xff]
        %v4908 = vld [vmem:[%s4885 + $0xb0] sm:$0xff]
        %v4909 = vld [vmem:[%s4885 + $0xb8] sm:$0xff]
        %v4910 = vld [vmem:[%s4885 + $0xc0] sm:$0xff]
        %v4911 = vld [vmem:[%s4885 + $0xc8] sm:$0xff]
        %v4912 = vld [vmem:[%s4885 + $0xd0] sm:$0xff]
        %v4913 = vld [vmem:[%s4885 + $0xd8] sm:$0xff]
        %v4914 = vld [vmem:[%s4885 + $0xe0] sm:$0xff]
        %v4915 = vld [vmem:[%s4885 + $0xe8] sm:$0xff]
        %v4916 = vld [vmem:[%s4885 + $0xf0] sm:$0xff]
        %v4917 = vld [vmem:[%s4885 + $0xf8] sm:$0xff]
        %v4918 = vld [vmem:[%s4885 + $0x100] sm:$0xff]
        %v4919 = vld [vmem:[%s4885 + $0x108] sm:$0xff]
        %v4920 = vld [vmem:[%s4885 + $0x110] sm:$0xff]
        %v4921 = vld [vmem:[%s4885 + $0x118] sm:$0xff]
        %v4922 = vld [vmem:[%s4885 + $0x120] sm:$0xff]
        %v4923 = vld [vmem:[%s4885 + $0x128] sm:$0xff]
        %v4924 = vld [vmem:[%s4885 + $0x130] sm:$0xff]
        %v4925 = vld [vmem:[%s4885 + $0x138] sm:$0xff]
        %v4926 = vld [vmem:[%s4885 + $0x140] sm:$0xff]
        %v4927 = vld [vmem:[%s4885 + $0x148] sm:$0xff]
        %v4928 = vld [vmem:[%s4885 + $0x150] sm:$0xff]
        %v4929 = vld [vmem:[%s4885 + $0x158] sm:$0xff]
        %v4930 = vld [vmem:[%s4885 + $0x160] sm:$0xff]
        %v4931 = vld [vmem:[%s4885 + $0x168] sm:$0xff]
        %v4932 = vld [vmem:[%s4885 + $0x170] sm:$0xff]
        %v4933 = vld [vmem:[%s4885 + $0x178] sm:$0xff]
        %s4934 = scalar_lea.vmem [#allocation4], 24
        %v4935 = vld [vmem:[%s4934] sm:$0xff]
        %v4936 = vld [vmem:[%s4934 + $0x8] sm:$0xff]
        %v4937 = vld [vmem:[%s4934 + $0x10] sm:$0xff]
        %v4938 = vld [vmem:[%s4934 + $0x18] sm:$0xff]
        %v4939 = vld [vmem:[%s4934 + $0x20] sm:$0xff]
        %v4940 = vld [vmem:[%s4934 + $0x28] sm:$0xff]
        %v4941 = vld [vmem:[%s4934 + $0x30] sm:$0xff]
        %v4942 = vld [vmem:[%s4934 + $0x38] sm:$0xff]
        %v4943 = vld [vmem:[%s4934 + $0x40] sm:$0xff]
        %v4944 = vld [vmem:[%s4934 + $0x48] sm:$0xff]
        %v4945 = vld [vmem:[%s4934 + $0x50] sm:$0xff]
        %v4946 = vld [vmem:[%s4934 + $0x58] sm:$0xff]
        %v4947 = vld [vmem:[%s4934 + $0x60] sm:$0xff]
        %v4948 = vld [vmem:[%s4934 + $0x68] sm:$0xff]
        %v4949 = vld [vmem:[%s4934 + $0x70] sm:$0xff]
        %v4950 = vld [vmem:[%s4934 + $0x78] sm:$0xff]
        %v4951 = vld [vmem:[%s4934 + $0x80] sm:$0xff]
        %v4952 = vld [vmem:[%s4934 + $0x88] sm:$0xff]
        %v4953 = vld [vmem:[%s4934 + $0x90] sm:$0xff]
        %v4954 = vld [vmem:[%s4934 + $0x98] sm:$0xff]
        %v4955 = vld [vmem:[%s4934 + $0xa0] sm:$0xff]
        %v4956 = vld [vmem:[%s4934 + $0xa8] sm:$0xff]
        %v4957 = vld [vmem:[%s4934 + $0xb0] sm:$0xff]
        %v4958 = vld [vmem:[%s4934 + $0xb8] sm:$0xff]
        %v4959 = vld [vmem:[%s4934 + $0xc0] sm:$0xff]
        %v4960 = vld [vmem:[%s4934 + $0xc8] sm:$0xff]
        %v4961 = vld [vmem:[%s4934 + $0xd0] sm:$0xff]
        %v4962 = vld [vmem:[%s4934 + $0xd8] sm:$0xff]
        %v4963 = vld [vmem:[%s4934 + $0xe0] sm:$0xff]
        %v4964 = vld [vmem:[%s4934 + $0xe8] sm:$0xff]
        %v4965 = vld [vmem:[%s4934 + $0xf0] sm:$0xff]
        %v4966 = vld [vmem:[%s4934 + $0xf8] sm:$0xff]
        %v4967 = vld [vmem:[%s4934 + $0x100] sm:$0xff]
        %v4968 = vld [vmem:[%s4934 + $0x108] sm:$0xff]
        %v4969 = vld [vmem:[%s4934 + $0x110] sm:$0xff]
        %v4970 = vld [vmem:[%s4934 + $0x118] sm:$0xff]
        %v4971 = vld [vmem:[%s4934 + $0x120] sm:$0xff]
        %v4972 = vld [vmem:[%s4934 + $0x128] sm:$0xff]
        %v4973 = vld [vmem:[%s4934 + $0x130] sm:$0xff]
        %v4974 = vld [vmem:[%s4934 + $0x138] sm:$0xff]
        %v4975 = vld [vmem:[%s4934 + $0x140] sm:$0xff]
        %v4976 = vld [vmem:[%s4934 + $0x148] sm:$0xff]
        %v4977 = vld [vmem:[%s4934 + $0x150] sm:$0xff]
        %v4978 = vld [vmem:[%s4934 + $0x158] sm:$0xff]
        %v4979 = vld [vmem:[%s4934 + $0x160] sm:$0xff]
        %v4980 = vld [vmem:[%s4934 + $0x168] sm:$0xff]
        %v4981 = vld [vmem:[%s4934 + $0x170] sm:$0xff]
        %v4982 = vld [vmem:[%s4934 + $0x178] sm:$0xff]
        %v4983 = vmax.f32 %v4886, %v4935
        %v4984 = vmax.f32 %v4887, %v4936
        %v4985 = vmax.f32 %v4888, %v4937
        %v4986 = vmax.f32 %v4889, %v4938
        %v4987 = vmax.f32 %v4890, %v4939
        %v4988 = vmax.f32 %v4891, %v4940
        %v4989 = vmax.f32 %v4892, %v4941
        %v4990 = vmax.f32 %v4893, %v4942
        %v4991 = vmax.f32 %v4894, %v4943
        %v4992 = vmax.f32 %v4895, %v4944
        %v4993 = vmax.f32 %v4896, %v4945
        %v4994 = vmax.f32 %v4897, %v4946
        %v4995 = vmax.f32 %v4898, %v4947
        %v4996 = vmax.f32 %v4899, %v4948
        %v4997 = vmax.f32 %v4900, %v4949
        %v4998 = vmax.f32 %v4901, %v4950
        %v4999 = vmax.f32 %v4902, %v4951
        %v5000 = vmax.f32 %v4903, %v4952
        %v5001 = vmax.f32 %v4904, %v4953
        %v5002 = vmax.f32 %v4905, %v4954
        %v5003 = vmax.f32 %v4906, %v4955
        %v5004 = vmax.f32 %v4907, %v4956
        %v5005 = vmax.f32 %v4908, %v4957
        %v5006 = vmax.f32 %v4909, %v4958
        %v5007 = vmax.f32 %v4910, %v4959
        %v5008 = vmax.f32 %v4911, %v4960
        %v5009 = vmax.f32 %v4912, %v4961
        %v5010 = vmax.f32 %v4913, %v4962
        %v5011 = vmax.f32 %v4914, %v4963
        %v5012 = vmax.f32 %v4915, %v4964
        %v5013 = vmax.f32 %v4916, %v4965
        %v5014 = vmax.f32 %v4917, %v4966
        %v5015 = vmax.f32 %v4918, %v4967
        %v5016 = vmax.f32 %v4919, %v4968
        %v5017 = vmax.f32 %v4920, %v4969
        %v5018 = vmax.f32 %v4921, %v4970
        %v5019 = vmax.f32 %v4922, %v4971
        %v5020 = vmax.f32 %v4923, %v4972
        %v5021 = vmax.f32 %v4924, %v4973
        %v5022 = vmax.f32 %v4925, %v4974
        %v5023 = vmax.f32 %v4926, %v4975
        %v5024 = vmax.f32 %v4927, %v4976
        %v5025 = vmax.f32 %v4928, %v4977
        %v5026 = vmax.f32 %v4929, %v4978
        %v5027 = vmax.f32 %v4930, %v4979
        %v5028 = vmax.f32 %v4931, %v4980
        %v5029 = vmax.f32 %v4932, %v4981
        %v5030 = vmax.f32 %v4933, %v4982
        %s5031 = scalar_lea.vmem [#allocation4], 72
        %v5032 = vld [vmem:[%s5031] sm:$0xff]
        %v5033 = vld [vmem:[%s5031 + $0x8] sm:$0xff]
        %v5034 = vld [vmem:[%s5031 + $0x10] sm:$0xff]
        %v5035 = vld [vmem:[%s5031 + $0x18] sm:$0xff]
        %v5036 = vld [vmem:[%s5031 + $0x20] sm:$0xff]
        %v5037 = vld [vmem:[%s5031 + $0x28] sm:$0xff]
        %v5038 = vld [vmem:[%s5031 + $0x30] sm:$0xff]
        %v5039 = vld [vmem:[%s5031 + $0x38] sm:$0xff]
        %v5040 = vld [vmem:[%s5031 + $0x40] sm:$0xff]
        %v5041 = vld [vmem:[%s5031 + $0x48] sm:$0xff]
        %v5042 = vld [vmem:[%s5031 + $0x50] sm:$0xff]
        %v5043 = vld [vmem:[%s5031 + $0x58] sm:$0xff]
        %v5044 = vld [vmem:[%s5031 + $0x60] sm:$0xff]
        %v5045 = vld [vmem:[%s5031 + $0x68] sm:$0xff]
        %v5046 = vld [vmem:[%s5031 + $0x70] sm:$0xff]
        %v5047 = vld [vmem:[%s5031 + $0x78] sm:$0xff]
        %v5048 = vld [vmem:[%s5031 + $0x80] sm:$0xff]
        %v5049 = vld [vmem:[%s5031 + $0x88] sm:$0xff]
        %v5050 = vld [vmem:[%s5031 + $0x90] sm:$0xff]
        %v5051 = vld [vmem:[%s5031 + $0x98] sm:$0xff]
        %v5052 = vld [vmem:[%s5031 + $0xa0] sm:$0xff]
        %v5053 = vld [vmem:[%s5031 + $0xa8] sm:$0xff]
        %v5054 = vld [vmem:[%s5031 + $0xb0] sm:$0xff]
        %v5055 = vld [vmem:[%s5031 + $0xb8] sm:$0xff]
        %v5056 = vld [vmem:[%s5031 + $0xc0] sm:$0xff]
        %v5057 = vld [vmem:[%s5031 + $0xc8] sm:$0xff]
        %v5058 = vld [vmem:[%s5031 + $0xd0] sm:$0xff]
        %v5059 = vld [vmem:[%s5031 + $0xd8] sm:$0xff]
        %v5060 = vld [vmem:[%s5031 + $0xe0] sm:$0xff]
        %v5061 = vld [vmem:[%s5031 + $0xe8] sm:$0xff]
        %v5062 = vld [vmem:[%s5031 + $0xf0] sm:$0xff]
        %v5063 = vld [vmem:[%s5031 + $0xf8] sm:$0xff]
        %v5064 = vld [vmem:[%s5031 + $0x100] sm:$0xff]
        %v5065 = vld [vmem:[%s5031 + $0x108] sm:$0xff]
        %v5066 = vld [vmem:[%s5031 + $0x110] sm:$0xff]
        %v5067 = vld [vmem:[%s5031 + $0x118] sm:$0xff]
        %v5068 = vld [vmem:[%s5031 + $0x120] sm:$0xff]
        %v5069 = vld [vmem:[%s5031 + $0x128] sm:$0xff]
        %v5070 = vld [vmem:[%s5031 + $0x130] sm:$0xff]
        %v5071 = vld [vmem:[%s5031 + $0x138] sm:$0xff]
        %v5072 = vld [vmem:[%s5031 + $0x140] sm:$0xff]
        %v5073 = vld [vmem:[%s5031 + $0x148] sm:$0xff]
        %v5074 = vld [vmem:[%s5031 + $0x150] sm:$0xff]
        %v5075 = vld [vmem:[%s5031 + $0x158] sm:$0xff]
        %v5076 = vld [vmem:[%s5031 + $0x160] sm:$0xff]
        %v5077 = vld [vmem:[%s5031 + $0x168] sm:$0xff]
        %v5078 = vld [vmem:[%s5031 + $0x170] sm:$0xff]
        %v5079 = vld [vmem:[%s5031 + $0x178] sm:$0xff]
        %v5080 = vmax.f32 %v4983, %v5032
        %v5081 = vmax.f32 %v4984, %v5033
        %v5082 = vmax.f32 %v4985, %v5034
        %v5083 = vmax.f32 %v4986, %v5035
        %v5084 = vmax.f32 %v4987, %v5036
        %v5085 = vmax.f32 %v4988, %v5037
        %v5086 = vmax.f32 %v4989, %v5038
        %v5087 = vmax.f32 %v4990, %v5039
        %v5088 = vmax.f32 %v4991, %v5040
        %v5089 = vmax.f32 %v4992, %v5041
        %v5090 = vmax.f32 %v4993, %v5042
        %v5091 = vmax.f32 %v4994, %v5043
        %v5092 = vmax.f32 %v4995, %v5044
        %v5093 = vmax.f32 %v4996, %v5045
        %v5094 = vmax.f32 %v4997, %v5046
        %v5095 = vmax.f32 %v4998, %v5047
        %v5096 = vmax.f32 %v4999, %v5048
        %v5097 = vmax.f32 %v5000, %v5049
        %v5098 = vmax.f32 %v5001, %v5050
        %v5099 = vmax.f32 %v5002, %v5051
        %v5100 = vmax.f32 %v5003, %v5052
        %v5101 = vmax.f32 %v5004, %v5053
        %v5102 = vmax.f32 %v5005, %v5054
        %v5103 = vmax.f32 %v5006, %v5055
        %v5104 = vmax.f32 %v5007, %v5056
        %v5105 = vmax.f32 %v5008, %v5057
        %v5106 = vmax.f32 %v5009, %v5058
        %v5107 = vmax.f32 %v5010, %v5059
        %v5108 = vmax.f32 %v5011, %v5060
        %v5109 = vmax.f32 %v5012, %v5061
        %v5110 = vmax.f32 %v5013, %v5062
        %v5111 = vmax.f32 %v5014, %v5063
        %v5112 = vmax.f32 %v5015, %v5064
        %v5113 = vmax.f32 %v5016, %v5065
        %v5114 = vmax.f32 %v5017, %v5066
        %v5115 = vmax.f32 %v5018, %v5067
        %v5116 = vmax.f32 %v5019, %v5068
        %v5117 = vmax.f32 %v5020, %v5069
        %v5118 = vmax.f32 %v5021, %v5070
        %v5119 = vmax.f32 %v5022, %v5071
        %v5120 = vmax.f32 %v5023, %v5072
        %v5121 = vmax.f32 %v5024, %v5073
        %v5122 = vmax.f32 %v5025, %v5074
        %v5123 = vmax.f32 %v5026, %v5075
        %v5124 = vmax.f32 %v5027, %v5076
        %v5125 = vmax.f32 %v5028, %v5077
        %v5126 = vmax.f32 %v5029, %v5078
        %v5127 = vmax.f32 %v5030, %v5079
        %v5128 = vld [vmem:[#allocation4] sm:$0xff]
        %v5129 = vld [vmem:[#allocation4 + $0x8] sm:$0xff]
        %v5130 = vld [vmem:[#allocation4 + $0x10] sm:$0xff]
        %v5131 = vld [vmem:[#allocation4 + $0x18] sm:$0xff]
        %v5132 = vld [vmem:[#allocation4 + $0x20] sm:$0xff]
        %v5133 = vld [vmem:[#allocation4 + $0x28] sm:$0xff]
        %v5134 = vld [vmem:[#allocation4 + $0x30] sm:$0xff]
        %v5135 = vld [vmem:[#allocation4 + $0x38] sm:$0xff]
        %v5136 = vld [vmem:[#allocation4 + $0x40] sm:$0xff]
        %v5137 = vld [vmem:[#allocation4 + $0x48] sm:$0xff]
        %v5138 = vld [vmem:[#allocation4 + $0x50] sm:$0xff]
        %v5139 = vld [vmem:[#allocation4 + $0x58] sm:$0xff]
        %v5140 = vld [vmem:[#allocation4 + $0x60] sm:$0xff]
        %v5141 = vld [vmem:[#allocation4 + $0x68] sm:$0xff]
        %v5142 = vld [vmem:[#allocation4 + $0x70] sm:$0xff]
        %v5143 = vld [vmem:[#allocation4 + $0x78] sm:$0xff]
        %v5144 = vld [vmem:[#allocation4 + $0x80] sm:$0xff]
        %v5145 = vld [vmem:[#allocation4 + $0x88] sm:$0xff]
        %v5146 = vld [vmem:[#allocation4 + $0x90] sm:$0xff]
        %v5147 = vld [vmem:[#allocation4 + $0x98] sm:$0xff]
        %v5148 = vld [vmem:[#allocation4 + $0xa0] sm:$0xff]
        %v5149 = vld [vmem:[#allocation4 + $0xa8] sm:$0xff]
        %v5150 = vld [vmem:[#allocation4 + $0xb0] sm:$0xff]
        %v5151 = vld [vmem:[#allocation4 + $0xb8] sm:$0xff]
        %v5152 = vld [vmem:[#allocation4 + $0xc0] sm:$0xff]
        %v5153 = vld [vmem:[#allocation4 + $0xc8] sm:$0xff]
        %v5154 = vld [vmem:[#allocation4 + $0xd0] sm:$0xff]
        %v5155 = vld [vmem:[#allocation4 + $0xd8] sm:$0xff]
        %v5156 = vld [vmem:[#allocation4 + $0xe0] sm:$0xff]
        %v5157 = vld [vmem:[#allocation4 + $0xe8] sm:$0xff]
        %v5158 = vld [vmem:[#allocation4 + $0xf0] sm:$0xff]
        %v5159 = vld [vmem:[#allocation4 + $0xf8] sm:$0xff]
        %v5160 = vld [vmem:[#allocation4 + $0x100] sm:$0xff]
        %v5161 = vld [vmem:[#allocation4 + $0x108] sm:$0xff]
        %v5162 = vld [vmem:[#allocation4 + $0x110] sm:$0xff]
        %v5163 = vld [vmem:[#allocation4 + $0x118] sm:$0xff]
        %v5164 = vld [vmem:[#allocation4 + $0x120] sm:$0xff]
        %v5165 = vld [vmem:[#allocation4 + $0x128] sm:$0xff]
        %v5166 = vld [vmem:[#allocation4 + $0x130] sm:$0xff]
        %v5167 = vld [vmem:[#allocation4 + $0x138] sm:$0xff]
        %v5168 = vld [vmem:[#allocation4 + $0x140] sm:$0xff]
        %v5169 = vld [vmem:[#allocation4 + $0x148] sm:$0xff]
        %v5170 = vld [vmem:[#allocation4 + $0x150] sm:$0xff]
        %v5171 = vld [vmem:[#allocation4 + $0x158] sm:$0xff]
        %v5172 = vld [vmem:[#allocation4 + $0x160] sm:$0xff]
        %v5173 = vld [vmem:[#allocation4 + $0x168] sm:$0xff]
        %v5174 = vld [vmem:[#allocation4 + $0x170] sm:$0xff]
        %v5175 = vld [vmem:[#allocation4 + $0x178] sm:$0xff]
        %v5176 = vmax.f32 %v5080, %v5128
        %v5177 = vmax.f32 %v5081, %v5129
        %v5178 = vmax.f32 %v5082, %v5130
        %v5179 = vmax.f32 %v5083, %v5131
        %v5180 = vmax.f32 %v5084, %v5132
        %v5181 = vmax.f32 %v5085, %v5133
        %v5182 = vmax.f32 %v5086, %v5134
        %v5183 = vmax.f32 %v5087, %v5135
        %v5184 = vmax.f32 %v5088, %v5136
        %v5185 = vmax.f32 %v5089, %v5137
        %v5186 = vmax.f32 %v5090, %v5138
        %v5187 = vmax.f32 %v5091, %v5139
        %v5188 = vmax.f32 %v5092, %v5140
        %v5189 = vmax.f32 %v5093, %v5141
        %v5190 = vmax.f32 %v5094, %v5142
        %v5191 = vmax.f32 %v5095, %v5143
        %v5192 = vmax.f32 %v5096, %v5144
        %v5193 = vmax.f32 %v5097, %v5145
        %v5194 = vmax.f32 %v5098, %v5146
        %v5195 = vmax.f32 %v5099, %v5147
        %v5196 = vmax.f32 %v5100, %v5148
        %v5197 = vmax.f32 %v5101, %v5149
        %v5198 = vmax.f32 %v5102, %v5150
        %v5199 = vmax.f32 %v5103, %v5151
        %v5200 = vmax.f32 %v5104, %v5152
        %v5201 = vmax.f32 %v5105, %v5153
        %v5202 = vmax.f32 %v5106, %v5154
        %v5203 = vmax.f32 %v5107, %v5155
        %v5204 = vmax.f32 %v5108, %v5156
        %v5205 = vmax.f32 %v5109, %v5157
        %v5206 = vmax.f32 %v5110, %v5158
        %v5207 = vmax.f32 %v5111, %v5159
        %v5208 = vmax.f32 %v5112, %v5160
        %v5209 = vmax.f32 %v5113, %v5161
        %v5210 = vmax.f32 %v5114, %v5162
        %v5211 = vmax.f32 %v5115, %v5163
        %v5212 = vmax.f32 %v5116, %v5164
        %v5213 = vmax.f32 %v5117, %v5165
        %v5214 = vmax.f32 %v5118, %v5166
        %v5215 = vmax.f32 %v5119, %v5167
        %v5216 = vmax.f32 %v5120, %v5168
        %v5217 = vmax.f32 %v5121, %v5169
        %v5218 = vmax.f32 %v5122, %v5170
        %v5219 = vmax.f32 %v5123, %v5171
        %v5220 = vmax.f32 %v5124, %v5172
        %v5221 = vmax.f32 %v5125, %v5173
        %v5222 = vmax.f32 %v5126, %v5174
        %v5223 = vmax.f32 %v5127, %v5175
        %s5224 = scalar_lea.vmem [#allocation4], 96
        %v5225 = vld [vmem:[%s5224] sm:$0xff]
        %v5226 = vld [vmem:[%s5224 + $0x8] sm:$0xff]
        %v5227 = vld [vmem:[%s5224 + $0x10] sm:$0xff]
        %v5228 = vld [vmem:[%s5224 + $0x18] sm:$0xff]
        %v5229 = vld [vmem:[%s5224 + $0x20] sm:$0xff]
        %v5230 = vld [vmem:[%s5224 + $0x28] sm:$0xff]
        %v5231 = vld [vmem:[%s5224 + $0x30] sm:$0xff]
        %v5232 = vld [vmem:[%s5224 + $0x38] sm:$0xff]
        %v5233 = vld [vmem:[%s5224 + $0x40] sm:$0xff]
        %v5234 = vld [vmem:[%s5224 + $0x48] sm:$0xff]
        %v5235 = vld [vmem:[%s5224 + $0x50] sm:$0xff]
        %v5236 = vld [vmem:[%s5224 + $0x58] sm:$0xff]
        %v5237 = vld [vmem:[%s5224 + $0x60] sm:$0xff]
        %v5238 = vld [vmem:[%s5224 + $0x68] sm:$0xff]
        %v5239 = vld [vmem:[%s5224 + $0x70] sm:$0xff]
        %v5240 = vld [vmem:[%s5224 + $0x78] sm:$0xff]
        %v5241 = vld [vmem:[%s5224 + $0x80] sm:$0xff]
        %v5242 = vld [vmem:[%s5224 + $0x88] sm:$0xff]
        %v5243 = vld [vmem:[%s5224 + $0x90] sm:$0xff]
        %v5244 = vld [vmem:[%s5224 + $0x98] sm:$0xff]
        %v5245 = vld [vmem:[%s5224 + $0xa0] sm:$0xff]
        %v5246 = vld [vmem:[%s5224 + $0xa8] sm:$0xff]
        %v5247 = vld [vmem:[%s5224 + $0xb0] sm:$0xff]
        %v5248 = vld [vmem:[%s5224 + $0xb8] sm:$0xff]
        %v5249 = vld [vmem:[%s5224 + $0xc0] sm:$0xff]
        %v5250 = vld [vmem:[%s5224 + $0xc8] sm:$0xff]
        %v5251 = vld [vmem:[%s5224 + $0xd0] sm:$0xff]
        %v5252 = vld [vmem:[%s5224 + $0xd8] sm:$0xff]
        %v5253 = vld [vmem:[%s5224 + $0xe0] sm:$0xff]
        %v5254 = vld [vmem:[%s5224 + $0xe8] sm:$0xff]
        %v5255 = vld [vmem:[%s5224 + $0xf0] sm:$0xff]
        %v5256 = vld [vmem:[%s5224 + $0xf8] sm:$0xff]
        %v5257 = vld [vmem:[%s5224 + $0x100] sm:$0xff]
        %v5258 = vld [vmem:[%s5224 + $0x108] sm:$0xff]
        %v5259 = vld [vmem:[%s5224 + $0x110] sm:$0xff]
        %v5260 = vld [vmem:[%s5224 + $0x118] sm:$0xff]
        %v5261 = vld [vmem:[%s5224 + $0x120] sm:$0xff]
        %v5262 = vld [vmem:[%s5224 + $0x128] sm:$0xff]
        %v5263 = vld [vmem:[%s5224 + $0x130] sm:$0xff]
        %v5264 = vld [vmem:[%s5224 + $0x138] sm:$0xff]
        %v5265 = vld [vmem:[%s5224 + $0x140] sm:$0xff]
        %v5266 = vld [vmem:[%s5224 + $0x148] sm:$0xff]
        %v5267 = vld [vmem:[%s5224 + $0x150] sm:$0xff]
        %v5268 = vld [vmem:[%s5224 + $0x158] sm:$0xff]
        %v5269 = vld [vmem:[%s5224 + $0x160] sm:$0xff]
        %v5270 = vld [vmem:[%s5224 + $0x168] sm:$0xff]
        %v5271 = vld [vmem:[%s5224 + $0x170] sm:$0xff]
        %v5272 = vld [vmem:[%s5224 + $0x178] sm:$0xff]
        %v5273 = vmax.f32 %v5176, %v5225
        %v5274 = vmax.f32 %v5177, %v5226
        %v5275 = vmax.f32 %v5178, %v5227
        %v5276 = vmax.f32 %v5179, %v5228
        %v5277 = vmax.f32 %v5180, %v5229
        %v5278 = vmax.f32 %v5181, %v5230
        %v5279 = vmax.f32 %v5182, %v5231
        %v5280 = vmax.f32 %v5183, %v5232
        %v5281 = vmax.f32 %v5184, %v5233
        %v5282 = vmax.f32 %v5185, %v5234
        %v5283 = vmax.f32 %v5186, %v5235
        %v5284 = vmax.f32 %v5187, %v5236
        %v5285 = vmax.f32 %v5188, %v5237
        %v5286 = vmax.f32 %v5189, %v5238
        %v5287 = vmax.f32 %v5190, %v5239
        %v5288 = vmax.f32 %v5191, %v5240
        %v5289 = vmax.f32 %v5192, %v5241
        %v5290 = vmax.f32 %v5193, %v5242
        %v5291 = vmax.f32 %v5194, %v5243
        %v5292 = vmax.f32 %v5195, %v5244
        %v5293 = vmax.f32 %v5196, %v5245
        %v5294 = vmax.f32 %v5197, %v5246
        %v5295 = vmax.f32 %v5198, %v5247
        %v5296 = vmax.f32 %v5199, %v5248
        %v5297 = vmax.f32 %v5200, %v5249
        %v5298 = vmax.f32 %v5201, %v5250
        %v5299 = vmax.f32 %v5202, %v5251
        %v5300 = vmax.f32 %v5203, %v5252
        %v5301 = vmax.f32 %v5204, %v5253
        %v5302 = vmax.f32 %v5205, %v5254
        %v5303 = vmax.f32 %v5206, %v5255
        %v5304 = vmax.f32 %v5207, %v5256
        %v5305 = vmax.f32 %v5208, %v5257
        %v5306 = vmax.f32 %v5209, %v5258
        %v5307 = vmax.f32 %v5210, %v5259
        %v5308 = vmax.f32 %v5211, %v5260
        %v5309 = vmax.f32 %v5212, %v5261
        %v5310 = vmax.f32 %v5213, %v5262
        %v5311 = vmax.f32 %v5214, %v5263
        %v5312 = vmax.f32 %v5215, %v5264
        %v5313 = vmax.f32 %v5216, %v5265
        %v5314 = vmax.f32 %v5217, %v5266
        %v5315 = vmax.f32 %v5218, %v5267
        %v5316 = vmax.f32 %v5219, %v5268
        %v5317 = vmax.f32 %v5220, %v5269
        %v5318 = vmax.f32 %v5221, %v5270
        %v5319 = vmax.f32 %v5222, %v5271
        %v5320 = vmax.f32 %v5223, %v5272
        %v5369 = vrot.slane %v5273, 7
        %v5370 = vrot.slane %v5274, 7
        %v5371 = vsel %vm1298, %v5369, %v5370
        %v5372 = vrot.slane %v5275, 7
        %v5373 = vsel %vm1298, %v5370, %v5372
        %v5374 = vrot.slane %v5276, 7
        %v5375 = vrot.slane %v5277, 7
        %v5376 = vsel %vm1298, %v5374, %v5375
        %v5377 = vrot.slane %v5278, 7
        %v5378 = vsel %vm1298, %v5375, %v5377
        %v5379 = vrot.slane %v5279, 7
        %v5380 = vrot.slane %v5280, 7
        %v5381 = vsel %vm1298, %v5379, %v5380
        %v5382 = vrot.slane %v5281, 7
        %v5383 = vsel %vm1298, %v5380, %v5382
        %v5384 = vrot.slane %v5282, 7
        %v5385 = vrot.slane %v5283, 7
        %v5386 = vsel %vm1298, %v5384, %v5385
        %v5387 = vrot.slane %v5284, 7
        %v5388 = vsel %vm1298, %v5385, %v5387
        %v5389 = vrot.slane %v5285, 7
        %v5390 = vrot.slane %v5286, 7
        %v5391 = vsel %vm1298, %v5389, %v5390
        %v5392 = vrot.slane %v5287, 7
        %v5393 = vsel %vm1298, %v5390, %v5392
        %v5394 = vrot.slane %v5288, 7
        %v5395 = vrot.slane %v5289, 7
        %v5396 = vsel %vm1298, %v5394, %v5395
        %v5397 = vrot.slane %v5290, 7
        %v5398 = vsel %vm1298, %v5395, %v5397
        %v5399 = vrot.slane %v5291, 7
        %v5400 = vrot.slane %v5292, 7
        %v5401 = vsel %vm1298, %v5399, %v5400
        %v5402 = vrot.slane %v5293, 7
        %v5403 = vsel %vm1298, %v5400, %v5402
        %v5404 = vrot.slane %v5294, 7
        %v5405 = vrot.slane %v5295, 7
        %v5406 = vsel %vm1298, %v5404, %v5405
        %v5407 = vrot.slane %v5296, 7
        %v5408 = vsel %vm1298, %v5405, %v5407
        %v5409 = vrot.slane %v5297, 7
        %v5410 = vrot.slane %v5298, 7
        %v5411 = vsel %vm1298, %v5409, %v5410
        %v5412 = vrot.slane %v5299, 7
        %v5413 = vsel %vm1298, %v5410, %v5412
        %v5414 = vrot.slane %v5300, 7
        %v5415 = vrot.slane %v5301, 7
        %v5416 = vsel %vm1298, %v5414, %v5415
        %v5417 = vrot.slane %v5302, 7
        %v5418 = vsel %vm1298, %v5415, %v5417
        %v5419 = vrot.slane %v5303, 7
        %v5420 = vrot.slane %v5304, 7
        %v5421 = vsel %vm1298, %v5419, %v5420
        %v5422 = vrot.slane %v5305, 7
        %v5423 = vsel %vm1298, %v5420, %v5422
        %v5424 = vrot.slane %v5306, 7
        %v5425 = vrot.slane %v5307, 7
        %v5426 = vsel %vm1298, %v5424, %v5425
        %v5427 = vrot.slane %v5308, 7
        %v5428 = vsel %vm1298, %v5425, %v5427
        %v5429 = vrot.slane %v5309, 7
        %v5430 = vrot.slane %v5310, 7
        %v5431 = vsel %vm1298, %v5429, %v5430
        %v5432 = vrot.slane %v5311, 7
        %v5433 = vsel %vm1298, %v5430, %v5432
        %v5434 = vrot.slane %v5312, 7
        %v5435 = vrot.slane %v5313, 7
        %v5436 = vsel %vm1298, %v5434, %v5435
        %v5437 = vrot.slane %v5314, 7
        %v5438 = vsel %vm1298, %v5435, %v5437
        %v5439 = vrot.slane %v5315, 7
        %v5440 = vrot.slane %v5316, 7
        %v5441 = vsel %vm1298, %v5439, %v5440
        %v5442 = vrot.slane %v5317, 7
        %v5443 = vsel %vm1298, %v5440, %v5442
        %v5444 = vrot.slane %v5318, 7
        %v5445 = vrot.slane %v5319, 7
        %v5446 = vsel %vm1298, %v5444, %v5445
        %v5447 = vrot.slane %v5320, 7
        %v5448 = vsel %vm1298, %v5445, %v5447
        %v5497 = vmax.f32 %v5273, %v5369
        %v5498 = vmax.f32 %v5274, %v5371
        %v5499 = vmax.f32 %v5275, %v5373
        %v5500 = vmax.f32 %v5276, %v5374
        %v5501 = vmax.f32 %v5277, %v5376
        %v5502 = vmax.f32 %v5278, %v5378
        %v5503 = vmax.f32 %v5279, %v5379
        %v5504 = vmax.f32 %v5280, %v5381
        %v5505 = vmax.f32 %v5281, %v5383
        %v5506 = vmax.f32 %v5282, %v5384
        %v5507 = vmax.f32 %v5283, %v5386
        %v5508 = vmax.f32 %v5284, %v5388
        %v5509 = vmax.f32 %v5285, %v5389
        %v5510 = vmax.f32 %v5286, %v5391
        %v5511 = vmax.f32 %v5287, %v5393
        %v5512 = vmax.f32 %v5288, %v5394
        %v5513 = vmax.f32 %v5289, %v5396
        %v5514 = vmax.f32 %v5290, %v5398
        %v5515 = vmax.f32 %v5291, %v5399
        %v5516 = vmax.f32 %v5292, %v5401
        %v5517 = vmax.f32 %v5293, %v5403
        %v5518 = vmax.f32 %v5294, %v5404
        %v5519 = vmax.f32 %v5295, %v5406
        %v5520 = vmax.f32 %v5296, %v5408
        %v5521 = vmax.f32 %v5297, %v5409
        %v5522 = vmax.f32 %v5298, %v5411
        %v5523 = vmax.f32 %v5299, %v5413
        %v5524 = vmax.f32 %v5300, %v5414
        %v5525 = vmax.f32 %v5301, %v5416
        %v5526 = vmax.f32 %v5302, %v5418
        %v5527 = vmax.f32 %v5303, %v5419
        %v5528 = vmax.f32 %v5304, %v5421
        %v5529 = vmax.f32 %v5305, %v5423
        %v5530 = vmax.f32 %v5306, %v5424
        %v5531 = vmax.f32 %v5307, %v5426
        %v5532 = vmax.f32 %v5308, %v5428
        %v5533 = vmax.f32 %v5309, %v5429
        %v5534 = vmax.f32 %v5310, %v5431
        %v5535 = vmax.f32 %v5311, %v5433
        %v5536 = vmax.f32 %v5312, %v5434
        %v5537 = vmax.f32 %v5313, %v5436
        %v5538 = vmax.f32 %v5314, %v5438
        %v5539 = vmax.f32 %v5315, %v5439
        %v5540 = vmax.f32 %v5316, %v5441
        %v5541 = vmax.f32 %v5317, %v5443
        %v5542 = vmax.f32 %v5318, %v5444
        %v5543 = vmax.f32 %v5319, %v5446
        %v5544 = vmax.f32 %v5320, %v5448
        %v5545 = vrot.slane %v5273, 1
        %v5546 = vrot.slane %v5274, 1
        %v5547 = vsel %vm1659, %v5545, %v5546
        %v5548 = vrot.slane %v5275, 1
        %v5549 = vsel %vm1659, %v5546, %v5548
        %v5550 = vrot.slane %v5276, 1
        %v5551 = vrot.slane %v5277, 1
        %v5552 = vsel %vm1659, %v5550, %v5551
        %v5553 = vrot.slane %v5278, 1
        %v5554 = vsel %vm1659, %v5551, %v5553
        %v5555 = vrot.slane %v5279, 1
        %v5556 = vrot.slane %v5280, 1
        %v5557 = vsel %vm1659, %v5555, %v5556
        %v5558 = vrot.slane %v5281, 1
        %v5559 = vsel %vm1659, %v5556, %v5558
        %v5560 = vrot.slane %v5282, 1
        %v5561 = vrot.slane %v5283, 1
        %v5562 = vsel %vm1659, %v5560, %v5561
        %v5563 = vrot.slane %v5284, 1
        %v5564 = vsel %vm1659, %v5561, %v5563
        %v5565 = vrot.slane %v5285, 1
        %v5566 = vrot.slane %v5286, 1
        %v5567 = vsel %vm1659, %v5565, %v5566
        %v5568 = vrot.slane %v5287, 1
        %v5569 = vsel %vm1659, %v5566, %v5568
        %v5570 = vrot.slane %v5288, 1
        %v5571 = vrot.slane %v5289, 1
        %v5572 = vsel %vm1659, %v5570, %v5571
        %v5573 = vrot.slane %v5290, 1
        %v5574 = vsel %vm1659, %v5571, %v5573
        %v5575 = vrot.slane %v5291, 1
        %v5576 = vrot.slane %v5292, 1
        %v5577 = vsel %vm1659, %v5575, %v5576
        %v5578 = vrot.slane %v5293, 1
        %v5579 = vsel %vm1659, %v5576, %v5578
        %v5580 = vrot.slane %v5294, 1
        %v5581 = vrot.slane %v5295, 1
        %v5582 = vsel %vm1659, %v5580, %v5581
        %v5583 = vrot.slane %v5296, 1
        %v5584 = vsel %vm1659, %v5581, %v5583
        %v5585 = vrot.slane %v5297, 1
        %v5586 = vrot.slane %v5298, 1
        %v5587 = vsel %vm1659, %v5585, %v5586
        %v5588 = vrot.slane %v5299, 1
        %v5589 = vsel %vm1659, %v5586, %v5588
        %v5590 = vrot.slane %v5300, 1
        %v5591 = vrot.slane %v5301, 1
        %v5592 = vsel %vm1659, %v5590, %v5591
        %v5593 = vrot.slane %v5302, 1
        %v5594 = vsel %vm1659, %v5591, %v5593
        %v5595 = vrot.slane %v5303, 1
        %v5596 = vrot.slane %v5304, 1
        %v5597 = vsel %vm1659, %v5595, %v5596
        %v5598 = vrot.slane %v5305, 1
        %v5599 = vsel %vm1659, %v5596, %v5598
        %v5600 = vrot.slane %v5306, 1
        %v5601 = vrot.slane %v5307, 1
        %v5602 = vsel %vm1659, %v5600, %v5601
        %v5603 = vrot.slane %v5308, 1
        %v5604 = vsel %vm1659, %v5601, %v5603
        %v5605 = vrot.slane %v5309, 1
        %v5606 = vrot.slane %v5310, 1
        %v5607 = vsel %vm1659, %v5605, %v5606
        %v5608 = vrot.slane %v5311, 1
        %v5609 = vsel %vm1659, %v5606, %v5608
        %v5610 = vrot.slane %v5312, 1
        %v5611 = vrot.slane %v5313, 1
        %v5612 = vsel %vm1659, %v5610, %v5611
        %v5613 = vrot.slane %v5314, 1
        %v5614 = vsel %vm1659, %v5611, %v5613
        %v5615 = vrot.slane %v5315, 1
        %v5616 = vrot.slane %v5316, 1
        %v5617 = vsel %vm1659, %v5615, %v5616
        %v5618 = vrot.slane %v5317, 1
        %v5619 = vsel %vm1659, %v5616, %v5618
        %v5620 = vrot.slane %v5318, 1
        %v5621 = vrot.slane %v5319, 1
        %v5622 = vsel %vm1659, %v5620, %v5621
        %v5623 = vrot.slane %v5320, 1
        %v5624 = vsel %vm1659, %v5621, %v5623
        %v5673 = vmax.f32 %v5497, %v5547
        %v5674 = vmax.f32 %v5498, %v5549
        %v5675 = vmax.f32 %v5499, %v5548
        %v5676 = vmax.f32 %v5500, %v5552
        %v5677 = vmax.f32 %v5501, %v5554
        %v5678 = vmax.f32 %v5502, %v5553
        %v5679 = vmax.f32 %v5503, %v5557
        %v5680 = vmax.f32 %v5504, %v5559
        %v5681 = vmax.f32 %v5505, %v5558
        %v5682 = vmax.f32 %v5506, %v5562
        %v5683 = vmax.f32 %v5507, %v5564
        %v5684 = vmax.f32 %v5508, %v5563
        %v5685 = vmax.f32 %v5509, %v5567
        %v5686 = vmax.f32 %v5510, %v5569
        %v5687 = vmax.f32 %v5511, %v5568
        %v5688 = vmax.f32 %v5512, %v5572
        %v5689 = vmax.f32 %v5513, %v5574
        %v5690 = vmax.f32 %v5514, %v5573
        %v5691 = vmax.f32 %v5515, %v5577
        %v5692 = vmax.f32 %v5516, %v5579
        %v5693 = vmax.f32 %v5517, %v5578
        %v5694 = vmax.f32 %v5518, %v5582
        %v5695 = vmax.f32 %v5519, %v5584
        %v5696 = vmax.f32 %v5520, %v5583
        %v5697 = vmax.f32 %v5521, %v5587
        %v5698 = vmax.f32 %v5522, %v5589
        %v5699 = vmax.f32 %v5523, %v5588
        %v5700 = vmax.f32 %v5524, %v5592
        %v5701 = vmax.f32 %v5525, %v5594
        %v5702 = vmax.f32 %v5526, %v5593
        %v5703 = vmax.f32 %v5527, %v5597
        %v5704 = vmax.f32 %v5528, %v5599
        %v5705 = vmax.f32 %v5529, %v5598
        %v5706 = vmax.f32 %v5530, %v5602
        %v5707 = vmax.f32 %v5531, %v5604
        %v5708 = vmax.f32 %v5532, %v5603
        %v5709 = vmax.f32 %v5533, %v5607
        %v5710 = vmax.f32 %v5534, %v5609
        %v5711 = vmax.f32 %v5535, %v5608
        %v5712 = vmax.f32 %v5536, %v5612
        %v5713 = vmax.f32 %v5537, %v5614
        %v5714 = vmax.f32 %v5538, %v5613
        %v5715 = vmax.f32 %v5539, %v5617
        %v5716 = vmax.f32 %v5540, %v5619
        %v5717 = vmax.f32 %v5541, %v5618
        %v5718 = vmax.f32 %v5542, %v5622
        %v5719 = vmax.f32 %v5543, %v5624
        %v5720 = vmax.f32 %v5544, %v5623
        %v5721 = vrot.slane %v5273, 6
        %v5722 = vrot.slane %v5274, 6
        %v5723 = vsel %vm2020, %v5721, %v5722
        %v5724 = vrot.slane %v5275, 6
        %v5725 = vsel %vm2020, %v5722, %v5724
        %v5726 = vrot.slane %v5276, 6
        %v5727 = vrot.slane %v5277, 6
        %v5728 = vsel %vm2020, %v5726, %v5727
        %v5729 = vrot.slane %v5278, 6
        %v5730 = vsel %vm2020, %v5727, %v5729
        %v5731 = vrot.slane %v5279, 6
        %v5732 = vrot.slane %v5280, 6
        %v5733 = vsel %vm2020, %v5731, %v5732
        %v5734 = vrot.slane %v5281, 6
        %v5735 = vsel %vm2020, %v5732, %v5734
        %v5736 = vrot.slane %v5282, 6
        %v5737 = vrot.slane %v5283, 6
        %v5738 = vsel %vm2020, %v5736, %v5737
        %v5739 = vrot.slane %v5284, 6
        %v5740 = vsel %vm2020, %v5737, %v5739
        %v5741 = vrot.slane %v5285, 6
        %v5742 = vrot.slane %v5286, 6
        %v5743 = vsel %vm2020, %v5741, %v5742
        %v5744 = vrot.slane %v5287, 6
        %v5745 = vsel %vm2020, %v5742, %v5744
        %v5746 = vrot.slane %v5288, 6
        %v5747 = vrot.slane %v5289, 6
        %v5748 = vsel %vm2020, %v5746, %v5747
        %v5749 = vrot.slane %v5290, 6
        %v5750 = vsel %vm2020, %v5747, %v5749
        %v5751 = vrot.slane %v5291, 6
        %v5752 = vrot.slane %v5292, 6
        %v5753 = vsel %vm2020, %v5751, %v5752
        %v5754 = vrot.slane %v5293, 6
        %v5755 = vsel %vm2020, %v5752, %v5754
        %v5756 = vrot.slane %v5294, 6
        %v5757 = vrot.slane %v5295, 6
        %v5758 = vsel %vm2020, %v5756, %v5757
        %v5759 = vrot.slane %v5296, 6
        %v5760 = vsel %vm2020, %v5757, %v5759
        %v5761 = vrot.slane %v5297, 6
        %v5762 = vrot.slane %v5298, 6
        %v5763 = vsel %vm2020, %v5761, %v5762
        %v5764 = vrot.slane %v5299, 6
        %v5765 = vsel %vm2020, %v5762, %v5764
        %v5766 = vrot.slane %v5300, 6
        %v5767 = vrot.slane %v5301, 6
        %v5768 = vsel %vm2020, %v5766, %v5767
        %v5769 = vrot.slane %v5302, 6
        %v5770 = vsel %vm2020, %v5767, %v5769
        %v5771 = vrot.slane %v5303, 6
        %v5772 = vrot.slane %v5304, 6
        %v5773 = vsel %vm2020, %v5771, %v5772
        %v5774 = vrot.slane %v5305, 6
        %v5775 = vsel %vm2020, %v5772, %v5774
        %v5776 = vrot.slane %v5306, 6
        %v5777 = vrot.slane %v5307, 6
        %v5778 = vsel %vm2020, %v5776, %v5777
        %v5779 = vrot.slane %v5308, 6
        %v5780 = vsel %vm2020, %v5777, %v5779
        %v5781 = vrot.slane %v5309, 6
        %v5782 = vrot.slane %v5310, 6
        %v5783 = vsel %vm2020, %v5781, %v5782
        %v5784 = vrot.slane %v5311, 6
        %v5785 = vsel %vm2020, %v5782, %v5784
        %v5786 = vrot.slane %v5312, 6
        %v5787 = vrot.slane %v5313, 6
        %v5788 = vsel %vm2020, %v5786, %v5787
        %v5789 = vrot.slane %v5314, 6
        %v5790 = vsel %vm2020, %v5787, %v5789
        %v5791 = vrot.slane %v5315, 6
        %v5792 = vrot.slane %v5316, 6
        %v5793 = vsel %vm2020, %v5791, %v5792
        %v5794 = vrot.slane %v5317, 6
        %v5795 = vsel %vm2020, %v5792, %v5794
        %v5796 = vrot.slane %v5318, 6
        %v5797 = vrot.slane %v5319, 6
        %v5798 = vsel %vm2020, %v5796, %v5797
        %v5799 = vrot.slane %v5320, 6
        %v5800 = vsel %vm2020, %v5797, %v5799
        %v5849 = vmax.f32 %v5673, %v5721
        %v5850 = vmax.f32 %v5674, %v5723
        %v5851 = vmax.f32 %v5675, %v5725
        %v5852 = vmax.f32 %v5676, %v5726
        %v5853 = vmax.f32 %v5677, %v5728
        %v5854 = vmax.f32 %v5678, %v5730
        %v5855 = vmax.f32 %v5679, %v5731
        %v5856 = vmax.f32 %v5680, %v5733
        %v5857 = vmax.f32 %v5681, %v5735
        %v5858 = vmax.f32 %v5682, %v5736
        %v5859 = vmax.f32 %v5683, %v5738
        %v5860 = vmax.f32 %v5684, %v5740
        %v5861 = vmax.f32 %v5685, %v5741
        %v5862 = vmax.f32 %v5686, %v5743
        %v5863 = vmax.f32 %v5687, %v5745
        %v5864 = vmax.f32 %v5688, %v5746
        %v5865 = vmax.f32 %v5689, %v5748
        %v5866 = vmax.f32 %v5690, %v5750
        %v5867 = vmax.f32 %v5691, %v5751
        %v5868 = vmax.f32 %v5692, %v5753
        %v5869 = vmax.f32 %v5693, %v5755
        %v5870 = vmax.f32 %v5694, %v5756
        %v5871 = vmax.f32 %v5695, %v5758
        %v5872 = vmax.f32 %v5696, %v5760
        %v5873 = vmax.f32 %v5697, %v5761
        %v5874 = vmax.f32 %v5698, %v5763
        %v5875 = vmax.f32 %v5699, %v5765
        %v5876 = vmax.f32 %v5700, %v5766
        %v5877 = vmax.f32 %v5701, %v5768
        %v5878 = vmax.f32 %v5702, %v5770
        %v5879 = vmax.f32 %v5703, %v5771
        %v5880 = vmax.f32 %v5704, %v5773
        %v5881 = vmax.f32 %v5705, %v5775
        %v5882 = vmax.f32 %v5706, %v5776
        %v5883 = vmax.f32 %v5707, %v5778
        %v5884 = vmax.f32 %v5708, %v5780
        %v5885 = vmax.f32 %v5709, %v5781
        %v5886 = vmax.f32 %v5710, %v5783
        %v5887 = vmax.f32 %v5711, %v5785
        %v5888 = vmax.f32 %v5712, %v5786
        %v5889 = vmax.f32 %v5713, %v5788
        %v5890 = vmax.f32 %v5714, %v5790
        %v5891 = vmax.f32 %v5715, %v5791
        %v5892 = vmax.f32 %v5716, %v5793
        %v5893 = vmax.f32 %v5717, %v5795
        %v5894 = vmax.f32 %v5718, %v5796
        %v5895 = vmax.f32 %v5719, %v5798
        %v5896 = vmax.f32 %v5720, %v5800
        %v5897 = vrot.slane %v5273, 2
        %v5898 = vrot.slane %v5274, 2
        %v5899 = vsel %vm2381, %v5897, %v5898
        %v5900 = vrot.slane %v5275, 2
        %v5901 = vsel %vm2381, %v5898, %v5900
        %v5902 = vrot.slane %v5276, 2
        %v5903 = vrot.slane %v5277, 2
        %v5904 = vsel %vm2381, %v5902, %v5903
        %v5905 = vrot.slane %v5278, 2
        %v5906 = vsel %vm2381, %v5903, %v5905
        %v5907 = vrot.slane %v5279, 2
        %v5908 = vrot.slane %v5280, 2
        %v5909 = vsel %vm2381, %v5907, %v5908
        %v5910 = vrot.slane %v5281, 2
        %v5911 = vsel %vm2381, %v5908, %v5910
        %v5912 = vrot.slane %v5282, 2
        %v5913 = vrot.slane %v5283, 2
        %v5914 = vsel %vm2381, %v5912, %v5913
        %v5915 = vrot.slane %v5284, 2
        %v5916 = vsel %vm2381, %v5913, %v5915
        %v5917 = vrot.slane %v5285, 2
        %v5918 = vrot.slane %v5286, 2
        %v5919 = vsel %vm2381, %v5917, %v5918
        %v5920 = vrot.slane %v5287, 2
        %v5921 = vsel %vm2381, %v5918, %v5920
        %v5922 = vrot.slane %v5288, 2
        %v5923 = vrot.slane %v5289, 2
        %v5924 = vsel %vm2381, %v5922, %v5923
        %v5925 = vrot.slane %v5290, 2
        %v5926 = vsel %vm2381, %v5923, %v5925
        %v5927 = vrot.slane %v5291, 2
        %v5928 = vrot.slane %v5292, 2
        %v5929 = vsel %vm2381, %v5927, %v5928
        %v5930 = vrot.slane %v5293, 2
        %v5931 = vsel %vm2381, %v5928, %v5930
        %v5932 = vrot.slane %v5294, 2
        %v5933 = vrot.slane %v5295, 2
        %v5934 = vsel %vm2381, %v5932, %v5933
        %v5935 = vrot.slane %v5296, 2
        %v5936 = vsel %vm2381, %v5933, %v5935
        %v5937 = vrot.slane %v5297, 2
        %v5938 = vrot.slane %v5298, 2
        %v5939 = vsel %vm2381, %v5937, %v5938
        %v5940 = vrot.slane %v5299, 2
        %v5941 = vsel %vm2381, %v5938, %v5940
        %v5942 = vrot.slane %v5300, 2
        %v5943 = vrot.slane %v5301, 2
        %v5944 = vsel %vm2381, %v5942, %v5943
        %v5945 = vrot.slane %v5302, 2
        %v5946 = vsel %vm2381, %v5943, %v5945
        %v5947 = vrot.slane %v5303, 2
        %v5948 = vrot.slane %v5304, 2
        %v5949 = vsel %vm2381, %v5947, %v5948
        %v5950 = vrot.slane %v5305, 2
        %v5951 = vsel %vm2381, %v5948, %v5950
        %v5952 = vrot.slane %v5306, 2
        %v5953 = vrot.slane %v5307, 2
        %v5954 = vsel %vm2381, %v5952, %v5953
        %v5955 = vrot.slane %v5308, 2
        %v5956 = vsel %vm2381, %v5953, %v5955
        %v5957 = vrot.slane %v5309, 2
        %v5958 = vrot.slane %v5310, 2
        %v5959 = vsel %vm2381, %v5957, %v5958
        %v5960 = vrot.slane %v5311, 2
        %v5961 = vsel %vm2381, %v5958, %v5960
        %v5962 = vrot.slane %v5312, 2
        %v5963 = vrot.slane %v5313, 2
        %v5964 = vsel %vm2381, %v5962, %v5963
        %v5965 = vrot.slane %v5314, 2
        %v5966 = vsel %vm2381, %v5963, %v5965
        %v5967 = vrot.slane %v5315, 2
        %v5968 = vrot.slane %v5316, 2
        %v5969 = vsel %vm2381, %v5967, %v5968
        %v5970 = vrot.slane %v5317, 2
        %v5971 = vsel %vm2381, %v5968, %v5970
        %v5972 = vrot.slane %v5318, 2
        %v5973 = vrot.slane %v5319, 2
        %v5974 = vsel %vm2381, %v5972, %v5973
        %v5975 = vrot.slane %v5320, 2
        %v5976 = vsel %vm2381, %v5973, %v5975
        %v6025 = vmax.f32 %v5849, %v5899
        %v6026 = vmax.f32 %v5850, %v5901
        %v6027 = vmax.f32 %v5851, %v5900
        %v6028 = vmax.f32 %v5852, %v5904
        %v6029 = vmax.f32 %v5853, %v5906
        %v6030 = vmax.f32 %v5854, %v5905
        %v6031 = vmax.f32 %v5855, %v5909
        %v6032 = vmax.f32 %v5856, %v5911
        %v6033 = vmax.f32 %v5857, %v5910
        %v6034 = vmax.f32 %v5858, %v5914
        %v6035 = vmax.f32 %v5859, %v5916
        %v6036 = vmax.f32 %v5860, %v5915
        %v6037 = vmax.f32 %v5861, %v5919
        %v6038 = vmax.f32 %v5862, %v5921
        %v6039 = vmax.f32 %v5863, %v5920
        %v6040 = vmax.f32 %v5864, %v5924
        %v6041 = vmax.f32 %v5865, %v5926
        %v6042 = vmax.f32 %v5866, %v5925
        %v6043 = vmax.f32 %v5867, %v5929
        %v6044 = vmax.f32 %v5868, %v5931
        %v6045 = vmax.f32 %v5869, %v5930
        %v6046 = vmax.f32 %v5870, %v5934
        %v6047 = vmax.f32 %v5871, %v5936
        %v6048 = vmax.f32 %v5872, %v5935
        %v6049 = vmax.f32 %v5873, %v5939
        %v6050 = vmax.f32 %v5874, %v5941
        %v6051 = vmax.f32 %v5875, %v5940
        %v6052 = vmax.f32 %v5876, %v5944
        %v6053 = vmax.f32 %v5877, %v5946
        %v6054 = vmax.f32 %v5878, %v5945
        %v6055 = vmax.f32 %v5879, %v5949
        %v6056 = vmax.f32 %v5880, %v5951
        %v6057 = vmax.f32 %v5881, %v5950
        %v6058 = vmax.f32 %v5882, %v5954
        %v6059 = vmax.f32 %v5883, %v5956
        %v6060 = vmax.f32 %v5884, %v5955
        %v6061 = vmax.f32 %v5885, %v5959
        %v6062 = vmax.f32 %v5886, %v5961
        %v6063 = vmax.f32 %v5887, %v5960
        %v6064 = vmax.f32 %v5888, %v5964
        %v6065 = vmax.f32 %v5889, %v5966
        %v6066 = vmax.f32 %v5890, %v5965
        %v6067 = vmax.f32 %v5891, %v5969
        %v6068 = vmax.f32 %v5892, %v5971
        %v6069 = vmax.f32 %v5893, %v5970
        %v6070 = vmax.f32 %v5894, %v5974
        %v6071 = vmax.f32 %v5895, %v5976
        %v6072 = vmax.f32 %v5896, %v5975
        %v6073 = vld [vmem:[%s3403 + $0x6] sm:$0xff]
        %v6074 = vld [vmem:[%s3403 + $0xe] sm:$0xff]
        %v6075 = vld [vmem:[%s3403 + $0x26] sm:$0xff]
        %v6076 = vld [vmem:[%s3403 + $0x2e] sm:$0xff]
        %v6077 = vld [vmem:[%s3403 + $0x46] sm:$0xff]
        %v6078 = vld [vmem:[%s3403 + $0x4e] sm:$0xff]
        %v6079 = vld [vmem:[%s3403 + $0x66] sm:$0xff]
        %v6080 = vld [vmem:[%s3403 + $0x6e] sm:$0xff]
        %v6081 = vld [vmem:[%s3403 + $0x86] sm:$0xff]
        %v6082 = vld [vmem:[%s3403 + $0x8e] sm:$0xff]
        %v6083 = vld [vmem:[%s3403 + $0xa6] sm:$0xff]
        %v6084 = vld [vmem:[%s3403 + $0xae] sm:$0xff]
        %v6085 = vld [vmem:[%s3403 + $0xc6] sm:$0xff]
        %v6086 = vld [vmem:[%s3403 + $0xce] sm:$0xff]
        %v6087 = vld [vmem:[%s3403 + $0xe6] sm:$0xff]
        %v6088 = vld [vmem:[%s3403 + $0xee] sm:$0xff]
        %v6089 = vld [vmem:[%s3403 + $0x106] sm:$0xff]
        %v6090 = vld [vmem:[%s3403 + $0x10e] sm:$0xff]
        %v6091 = vld [vmem:[%s3403 + $0x126] sm:$0xff]
        %v6092 = vld [vmem:[%s3403 + $0x12e] sm:$0xff]
        %v6093 = vld [vmem:[%s3403 + $0x146] sm:$0xff]
        %v6094 = vld [vmem:[%s3403 + $0x14e] sm:$0xff]
        %v6095 = vld [vmem:[%s3403 + $0x166] sm:$0xff]
        %v6096 = vld [vmem:[%s3403 + $0x16e] sm:$0xff]
        %v6097 = vld [vmem:[%s3403 + $0x186] sm:$0xff]
        %v6098 = vld [vmem:[%s3403 + $0x18e] sm:$0xff]
        %v6099 = vld [vmem:[%s3403 + $0x1a6] sm:$0xff]
        %v6100 = vld [vmem:[%s3403 + $0x1ae] sm:$0xff]
        %v6101 = vld [vmem:[%s3403 + $0x1c6] sm:$0xff]
        %v6102 = vld [vmem:[%s3403 + $0x1ce] sm:$0xff]
        %v6103 = vld [vmem:[%s3403 + $0x1e6] sm:$0xff]
        %v6104 = vld [vmem:[%s3403 + $0x1ee] sm:$0xff]
        %6105 = vxpose.xlu0.b32.start [1/16] %v6073, 128
        %6106 = vxpose.xlu0.b32.cont [2/16] %v6074, 128
        %6107 = vxpose.xlu0.b32.cont [3/16] %v6075, 128
        %6108 = vxpose.xlu0.b32.cont [4/16] %v6076, 128
        %6109 = vxpose.xlu0.b32.cont [5/16] %v6077, 128
        %6110 = vxpose.xlu0.b32.cont [6/16] %v6078, 128
        %6111 = vxpose.xlu0.b32.cont [7/16] %v6079, 128
        %6112 = vxpose.xlu0.b32.cont [8/16] %v6080, 128
        %6113 = vxpose.xlu0.b32.cont [9/16] %v6081, 128
        %6114 = vxpose.xlu0.b32.cont [10/16] %v6082, 128
        %6115 = vxpose.xlu0.b32.cont [11/16] %v6083, 128
        %6116 = vxpose.xlu0.b32.cont [12/16] %v6084, 128
        %6117 = vxpose.xlu0.b32.cont [13/16] %v6085, 128
        %6118 = vxpose.xlu0.b32.cont [14/16] %v6086, 128
        %6119 = vxpose.xlu0.b32.cont [15/16] %v6087, 128
        %6120 = vxpose.xlu0.b32.end [16/16] %v6088, 128
        %v6121 = vpop.trf.xlu0
        %v6122 = vpop.trf.xlu0
        %v6123 = vpop.trf.xlu0
        %v6124 = vpop.trf.xlu0
        %v6125 = vpop.trf.xlu0
        %v6126 = vpop.trf.xlu0
        %v6127 = vpop.trf.xlu0
        %v6128 = vpop.trf.xlu0
        %v6129 = vpop.trf.xlu0
        %v6130 = vpop.trf.xlu0
        %v6131 = vpop.trf.xlu0
        %v6132 = vpop.trf.xlu0
        %v6133 = vpop.trf.xlu0
        %v6134 = vpop.trf.xlu0
        %v6135 = vpop.trf.xlu0
        %v6136 = vpop.trf.xlu0
        %6137 = vxpose.xlu0.b32.start [1/16] %v6089, 128
        %6138 = vxpose.xlu0.b32.cont [2/16] %v6090, 128
        %6139 = vxpose.xlu0.b32.cont [3/16] %v6091, 128
        %6140 = vxpose.xlu0.b32.cont [4/16] %v6092, 128
        %6141 = vxpose.xlu0.b32.cont [5/16] %v6093, 128
        %6142 = vxpose.xlu0.b32.cont [6/16] %v6094, 128
        %6143 = vxpose.xlu0.b32.cont [7/16] %v6095, 128
        %6144 = vxpose.xlu0.b32.cont [8/16] %v6096, 128
        %6145 = vxpose.xlu0.b32.cont [9/16] %v6097, 128
        %6146 = vxpose.xlu0.b32.cont [10/16] %v6098, 128
        %6147 = vxpose.xlu0.b32.cont [11/16] %v6099, 128
        %6148 = vxpose.xlu0.b32.cont [12/16] %v6100, 128
        %6149 = vxpose.xlu0.b32.cont [13/16] %v6101, 128
        %6150 = vxpose.xlu0.b32.cont [14/16] %v6102, 128
        %6151 = vxpose.xlu0.b32.cont [15/16] %v6103, 128
        %6152 = vxpose.xlu0.b32.end [16/16] %v6104, 128
        %v6153 = vpop.trf.xlu0
        %v6154 = vpop.trf.xlu0
        %v6155 = vpop.trf.xlu0
        %v6156 = vpop.trf.xlu0
        %v6157 = vpop.trf.xlu0
        %v6158 = vpop.trf.xlu0
        %v6159 = vpop.trf.xlu0
        %v6160 = vpop.trf.xlu0
        %v6161 = vpop.trf.xlu0
        %v6162 = vpop.trf.xlu0
        %v6163 = vpop.trf.xlu0
        %v6164 = vpop.trf.xlu0
        %v6165 = vpop.trf.xlu0
        %v6166 = vpop.trf.xlu0
        %v6167 = vpop.trf.xlu0
        %v6168 = vpop.trf.xlu0
        %v6171 = vcombine.low %v6121, %v6153
        %6173 = vst [vmem:[%s150] sm:$0xff] %v6171
        %v6174 = vld [vmem:[%s4885 + $0x4] sm:$0xff]
        %v6175 = vld [vmem:[%s4885 + $0xc] sm:$0xff]
        %v6176 = vld [vmem:[%s4885 + $0x1c] sm:$0xff]
        %v6177 = vld [vmem:[%s4885 + $0x24] sm:$0xff]
        %v6178 = vld [vmem:[%s4885 + $0x34] sm:$0xff]
        %v6179 = vld [vmem:[%s4885 + $0x3c] sm:$0xff]
        %v6180 = vld [vmem:[%s4885 + $0x4c] sm:$0xff]
        %v6181 = vld [vmem:[%s4885 + $0x54] sm:$0xff]
        %v6182 = vld [vmem:[%s4885 + $0x64] sm:$0xff]
        %v6183 = vld [vmem:[%s4885 + $0x6c] sm:$0xff]
        %v6184 = vld [vmem:[%s4885 + $0x7c] sm:$0xff]
        %v6185 = vld [vmem:[%s4885 + $0x84] sm:$0xff]
        %v6186 = vld [vmem:[%s4885 + $0x94] sm:$0xff]
        %v6187 = vld [vmem:[%s4885 + $0x9c] sm:$0xff]
        %v6188 = vld [vmem:[%s4885 + $0xac] sm:$0xff]
        %v6189 = vld [vmem:[%s4885 + $0xb4] sm:$0xff]
        %v6190 = vld [vmem:[%s4885 + $0xc4] sm:$0xff]
        %v6191 = vld [vmem:[%s4885 + $0xcc] sm:$0xff]
        %v6192 = vld [vmem:[%s4885 + $0xdc] sm:$0xff]
        %v6193 = vld [vmem:[%s4885 + $0xe4] sm:$0xff]
        %v6194 = vld [vmem:[%s4885 + $0xf4] sm:$0xff]
        %v6195 = vld [vmem:[%s4885 + $0xfc] sm:$0xff]
        %v6196 = vld [vmem:[%s4885 + $0x10c] sm:$0xff]
        %v6197 = vld [vmem:[%s4885 + $0x114] sm:$0xff]
        %v6198 = vld [vmem:[%s4885 + $0x124] sm:$0xff]
        %v6199 = vld [vmem:[%s4885 + $0x12c] sm:$0xff]
        %v6200 = vld [vmem:[%s4885 + $0x13c] sm:$0xff]
        %v6201 = vld [vmem:[%s4885 + $0x144] sm:$0xff]
        %v6202 = vld [vmem:[%s4885 + $0x154] sm:$0xff]
        %v6203 = vld [vmem:[%s4885 + $0x15c] sm:$0xff]
        %v6204 = vld [vmem:[%s4885 + $0x16c] sm:$0xff]
        %v6205 = vld [vmem:[%s4885 + $0x174] sm:$0xff]
        %6206 = vxpose.xlu0.b32.start [1/16] %v6174, 128
        %6207 = vxpose.xlu0.b32.cont [2/16] %v6175, 128
        %6208 = vxpose.xlu0.b32.cont [3/16] %v6176, 128
        %6209 = vxpose.xlu0.b32.cont [4/16] %v6177, 128
        %6210 = vxpose.xlu0.b32.cont [5/16] %v6178, 128
        %6211 = vxpose.xlu0.b32.cont [6/16] %v6179, 128
        %6212 = vxpose.xlu0.b32.cont [7/16] %v6180, 128
        %6213 = vxpose.xlu0.b32.cont [8/16] %v6181, 128
        %6214 = vxpose.xlu0.b32.cont [9/16] %v6182, 128
        %6215 = vxpose.xlu0.b32.cont [10/16] %v6183, 128
        %6216 = vxpose.xlu0.b32.cont [11/16] %v6184, 128
        %6217 = vxpose.xlu0.b32.cont [12/16] %v6185, 128
        %6218 = vxpose.xlu0.b32.cont [13/16] %v6186, 128
        %6219 = vxpose.xlu0.b32.cont [14/16] %v6187, 128
        %6220 = vxpose.xlu0.b32.cont [15/16] %v6188, 128
        %6221 = vxpose.xlu0.b32.end [16/16] %v6189, 128
        %v6222 = vpop.trf.xlu0
        %v6223 = vpop.trf.xlu0
        %v6224 = vpop.trf.xlu0
        %v6225 = vpop.trf.xlu0
        %v6226 = vpop.trf.xlu0
        %v6227 = vpop.trf.xlu0
        %v6228 = vpop.trf.xlu0
        %v6229 = vpop.trf.xlu0
        %v6230 = vpop.trf.xlu0
        %v6231 = vpop.trf.xlu0
        %v6232 = vpop.trf.xlu0
        %v6233 = vpop.trf.xlu0
        %v6234 = vpop.trf.xlu0
        %v6235 = vpop.trf.xlu0
        %v6236 = vpop.trf.xlu0
        %v6237 = vpop.trf.xlu0
        %6238 = vxpose.xlu0.b32.start [1/16] %v6190, 128
        %6239 = vxpose.xlu0.b32.cont [2/16] %v6191, 128
        %6240 = vxpose.xlu0.b32.cont [3/16] %v6192, 128
        %6241 = vxpose.xlu0.b32.cont [4/16] %v6193, 128
        %6242 = vxpose.xlu0.b32.cont [5/16] %v6194, 128
        %6243 = vxpose.xlu0.b32.cont [6/16] %v6195, 128
        %6244 = vxpose.xlu0.b32.cont [7/16] %v6196, 128
        %6245 = vxpose.xlu0.b32.cont [8/16] %v6197, 128
        %6246 = vxpose.xlu0.b32.cont [9/16] %v6198, 128
        %6247 = vxpose.xlu0.b32.cont [10/16] %v6199, 128
        %6248 = vxpose.xlu0.b32.cont [11/16] %v6200, 128
        %6249 = vxpose.xlu0.b32.cont [12/16] %v6201, 128
        %6250 = vxpose.xlu0.b32.cont [13/16] %v6202, 128
        %6251 = vxpose.xlu0.b32.cont [14/16] %v6203, 128
        %6252 = vxpose.xlu0.b32.cont [15/16] %v6204, 128
        %6253 = vxpose.xlu0.b32.end [16/16] %v6205, 128
        %v6254 = vpop.trf.xlu0
        %v6255 = vpop.trf.xlu0
        %v6256 = vpop.trf.xlu0
        %v6257 = vpop.trf.xlu0
        %v6258 = vpop.trf.xlu0
        %v6259 = vpop.trf.xlu0
        %v6260 = vpop.trf.xlu0
        %v6261 = vpop.trf.xlu0
        %v6262 = vpop.trf.xlu0
        %v6263 = vpop.trf.xlu0
        %v6264 = vpop.trf.xlu0
        %v6265 = vpop.trf.xlu0
        %v6266 = vpop.trf.xlu0
        %v6267 = vpop.trf.xlu0
        %v6268 = vpop.trf.xlu0
        %v6269 = vpop.trf.xlu0
        %v6272 = vcombine.low %v6222, %v6254
        %s6274 = scalar_lea.vmem %s150, 8 [#allocation8]
        %6275 = vst [vmem:[%s6274] sm:$0xff] %v6272
        %vm6324 = vcmask 1043456
        %v6325 = vrot.slane %v6025, 4
        %v6326 = vrot.slane %v6026, 4
        %v6327 = vsel %vm6324, %v6325, %v6326
        %v6328 = vrot.slane %v6027, 4
        %v6329 = vsel %vm6324, %v6326, %v6328
        %v6330 = vrot.slane %v6028, 4
        %v6331 = vrot.slane %v6029, 4
        %v6332 = vsel %vm6324, %v6330, %v6331
        %v6333 = vrot.slane %v6030, 4
        %v6334 = vsel %vm6324, %v6331, %v6333
        %v6335 = vrot.slane %v6031, 4
        %v6336 = vrot.slane %v6032, 4
        %v6337 = vsel %vm6324, %v6335, %v6336
        %v6338 = vrot.slane %v6033, 4
        %v6339 = vsel %vm6324, %v6336, %v6338
        %v6340 = vrot.slane %v6034, 4
        %v6341 = vrot.slane %v6035, 4
        %v6342 = vsel %vm6324, %v6340, %v6341
        %v6343 = vrot.slane %v6036, 4
        %v6344 = vsel %vm6324, %v6341, %v6343
        %v6345 = vrot.slane %v6037, 4
        %v6346 = vrot.slane %v6038, 4
        %v6347 = vsel %vm6324, %v6345, %v6346
        %v6348 = vrot.slane %v6039, 4
        %v6349 = vsel %vm6324, %v6346, %v6348
        %v6350 = vrot.slane %v6040, 4
        %v6351 = vrot.slane %v6041, 4
        %v6352 = vsel %vm6324, %v6350, %v6351
        %v6353 = vrot.slane %v6042, 4
        %v6354 = vsel %vm6324, %v6351, %v6353
        %v6355 = vrot.slane %v6043, 4
        %v6356 = vrot.slane %v6044, 4
        %v6357 = vsel %vm6324, %v6355, %v6356
        %v6358 = vrot.slane %v6045, 4
        %v6359 = vsel %vm6324, %v6356, %v6358
        %v6360 = vrot.slane %v6046, 4
        %v6361 = vrot.slane %v6047, 4
        %v6362 = vsel %vm6324, %v6360, %v6361
        %v6363 = vrot.slane %v6048, 4
        %v6364 = vsel %vm6324, %v6361, %v6363
        %v6365 = vrot.slane %v6049, 4
        %v6366 = vrot.slane %v6050, 4
        %v6367 = vsel %vm6324, %v6365, %v6366
        %v6368 = vrot.slane %v6051, 4
        %v6369 = vsel %vm6324, %v6366, %v6368
        %v6370 = vrot.slane %v6052, 4
        %v6371 = vrot.slane %v6053, 4
        %v6372 = vsel %vm6324, %v6370, %v6371
        %v6373 = vrot.slane %v6054, 4
        %v6374 = vsel %vm6324, %v6371, %v6373
        %v6375 = vrot.slane %v6055, 4
        %v6376 = vrot.slane %v6056, 4
        %v6377 = vsel %vm6324, %v6375, %v6376
        %v6378 = vrot.slane %v6057, 4
        %v6379 = vsel %vm6324, %v6376, %v6378
        %v6380 = vrot.slane %v6058, 4
        %v6381 = vrot.slane %v6059, 4
        %v6382 = vsel %vm6324, %v6380, %v6381
        %v6383 = vrot.slane %v6060, 4
        %v6384 = vsel %vm6324, %v6381, %v6383
        %v6385 = vrot.slane %v6061, 4
        %v6386 = vrot.slane %v6062, 4
        %v6387 = vsel %vm6324, %v6385, %v6386
        %v6388 = vrot.slane %v6063, 4
        %v6389 = vsel %vm6324, %v6386, %v6388
        %v6390 = vrot.slane %v6064, 4
        %v6391 = vrot.slane %v6065, 4
        %v6392 = vsel %vm6324, %v6390, %v6391
        %v6393 = vrot.slane %v6066, 4
        %v6394 = vsel %vm6324, %v6391, %v6393
        %v6395 = vrot.slane %v6067, 4
        %v6396 = vrot.slane %v6068, 4
        %v6397 = vsel %vm6324, %v6395, %v6396
        %v6398 = vrot.slane %v6069, 4
        %v6399 = vsel %vm6324, %v6396, %v6398
        %v6400 = vrot.slane %v6070, 4
        %v6401 = vrot.slane %v6071, 4
        %v6402 = vsel %vm6324, %v6400, %v6401
        %v6403 = vrot.slane %v6072, 4
        %v6404 = vsel %vm6324, %v6401, %v6403
        %6437 = vxpose.xlu0.b32.start [1/16] %v6327, 128
        %6438 = vxpose.xlu0.b32.cont [2/16] %v6329, 128
        %6439 = vxpose.xlu0.b32.cont [3/16] %v6332, 128
        %6440 = vxpose.xlu0.b32.cont [4/16] %v6334, 128
        %6441 = vxpose.xlu0.b32.cont [5/16] %v6337, 128
        %6442 = vxpose.xlu0.b32.cont [6/16] %v6339, 128
        %6443 = vxpose.xlu0.b32.cont [7/16] %v6342, 128
        %6444 = vxpose.xlu0.b32.cont [8/16] %v6344, 128
        %6445 = vxpose.xlu0.b32.cont [9/16] %v6347, 128
        %6446 = vxpose.xlu0.b32.cont [10/16] %v6349, 128
        %6447 = vxpose.xlu0.b32.cont [11/16] %v6352, 128
        %6448 = vxpose.xlu0.b32.cont [12/16] %v6354, 128
        %6449 = vxpose.xlu0.b32.cont [13/16] %v6357, 128
        %6450 = vxpose.xlu0.b32.cont [14/16] %v6359, 128
        %6451 = vxpose.xlu0.b32.cont [15/16] %v6362, 128
        %6452 = vxpose.xlu0.b32.end [16/16] %v6364, 128
        %v6453 = vpop.trf.xlu0
        %v6454 = vpop.trf.xlu0
        %v6455 = vpop.trf.xlu0
        %v6456 = vpop.trf.xlu0
        %v6457 = vpop.trf.xlu0
        %v6458 = vpop.trf.xlu0
        %v6459 = vpop.trf.xlu0
        %v6460 = vpop.trf.xlu0
        %v6461 = vpop.trf.xlu0
        %v6462 = vpop.trf.xlu0
        %v6463 = vpop.trf.xlu0
        %v6464 = vpop.trf.xlu0
        %v6465 = vpop.trf.xlu0
        %v6466 = vpop.trf.xlu0
        %v6467 = vpop.trf.xlu0
        %v6468 = vpop.trf.xlu0
        %6469 = vxpose.xlu0.b32.start [1/16] %v6367, 128
        %6470 = vxpose.xlu0.b32.cont [2/16] %v6369, 128
        %6471 = vxpose.xlu0.b32.cont [3/16] %v6372, 128
        %6472 = vxpose.xlu0.b32.cont [4/16] %v6374, 128
        %6473 = vxpose.xlu0.b32.cont [5/16] %v6377, 128
        %6474 = vxpose.xlu0.b32.cont [6/16] %v6379, 128
        %6475 = vxpose.xlu0.b32.cont [7/16] %v6382, 128
        %6476 = vxpose.xlu0.b32.cont [8/16] %v6384, 128
        %6477 = vxpose.xlu0.b32.cont [9/16] %v6387, 128
        %6478 = vxpose.xlu0.b32.cont [10/16] %v6389, 128
        %6479 = vxpose.xlu0.b32.cont [11/16] %v6392, 128
        %6480 = vxpose.xlu0.b32.cont [12/16] %v6394, 128
        %6481 = vxpose.xlu0.b32.cont [13/16] %v6397, 128
        %6482 = vxpose.xlu0.b32.cont [14/16] %v6399, 128
        %6483 = vxpose.xlu0.b32.cont [15/16] %v6402, 128
        %6484 = vxpose.xlu0.b32.end [16/16] %v6404, 128
        %v6485 = vpop.trf.xlu0
        %v6486 = vpop.trf.xlu0
        %v6487 = vpop.trf.xlu0
        %v6488 = vpop.trf.xlu0
        %v6489 = vpop.trf.xlu0
        %v6490 = vpop.trf.xlu0
        %v6491 = vpop.trf.xlu0
        %v6492 = vpop.trf.xlu0
        %v6493 = vpop.trf.xlu0
        %v6494 = vpop.trf.xlu0
        %v6495 = vpop.trf.xlu0
        %v6496 = vpop.trf.xlu0
        %v6497 = vpop.trf.xlu0
        %v6498 = vpop.trf.xlu0
        %v6499 = vpop.trf.xlu0
        %v6500 = vpop.trf.xlu0
        %v6503 = vcombine.low %v6453, %v6485
        %s6505 = scalar_lea.vmem %s150, 16 [#allocation8]
        %6506 = vst [vmem:[%s6505] sm:$0xff] %v6503
        %v6507 = vld [vmem:[%s132] sm:$0xff]
        %s6508 = scalar_lea.vmem %s150, 24 [#allocation8]
        %6509 = vst [vmem:[%s6508] sm:$0xff] %v6507
        %s6510 = sand.u32 %s68, 1
        %s6511 = scalar_lea.sflag [#allocation7], %s6510
        %s6512 = sand.u32 %s68, 1
        %s6513 = smul.addr %s6512, 32
        %s6514 = scalar_lea.vmem [#allocation8], %s6513
        // Predicated region
        $region29: #{tpu_custom_call.1} parent=23 // pred_check
          %p6515 = pneg %p78
        $region30: #{tpu_custom_call.1} parent=23 // pred_check_branch
          %6517 = sbr.rel (%p6515) target = $region32
        $region31: #{tpu_custom_call.1} parent=23 // pred_region
          %s6519 = ssub.s32 512, 512
          %6520 = vsyncadd %s6511, %s6519
          %s6521 = smul.addr %s23, 2
          %s6522 = smul.addr %s22, 8
          %s6523 = sadd.s32 %s6521, %s6522
          %s6524 = smul.addr %s6523, 64
          %s6525 = scalar_lea.hbm %s1, %s6524
          %s6526 = sshll.u32 %s6514, 4
          %s6527 = int_to_ptr.vmem [resolvable:$true] %s6526
          %6532 = dma.vmem_to_hbm [thread:$0]  %s6527, 512, %s6525, %s6511, 128, 128, 8
        $region32: #{tpu_custom_call.1} parent=23 // pred_fallthru
          _
      $region24: #{tpu_custom_call.1} parent=5 // pred_fallthru
        _
      %p6533 = scmp.le.s32.totalorder 2, %s13
      // Predicated region
      $region33: #{tpu_custom_call.1} parent=5 // pred_check
        %p6534 = pneg %p6533
      $region34: #{tpu_custom_call.1} parent=5 // pred_check_branch
        %6536 = sbr.rel (%p6534) target = $region36
      $region35: #{tpu_custom_call.1} parent=5 // pred_region
        %s6537 = ssub.s32 %s13, 2
        // Predicated region
        $region37: #{tpu_custom_call.1} parent=35 // pred_check
          %p6538 = pneg %p84
        $region38: #{tpu_custom_call.1} parent=35 // pred_check_branch
          %6540 = sbr.rel (%p6538) target = $region40
        $region39: #{tpu_custom_call.1} parent=35 // pred_region
          %s6541 = sand.u32 %s69, 1
          %s6542 = scalar_lea.sflag [#allocation7], %s6541
          %s6543 = sand.u32 %s69, 1
          %s6544 = smul.addr %s6543, 32
          %s6545 = scalar_lea.vmem [#allocation8], %s6544
          %6546 = dma.done %s6542, 512
        $region40: #{tpu_custom_call.1} parent=35 // pred_fallthru
          _
      $region36: #{tpu_custom_call.1} parent=5 // pred_fallthru
        _
    $region6: #{tpu_custom_call.1} parent=1 // loop_footer
      %s17 = sadd.s32 1, %s13
    $region7: #{tpu_custom_call.1} parent=1 // loop_footer_branch
      %12 = sbr.rel target = $region3
    $region8: #{tpu_custom_call.1} parent=1 // loop_exit
      _
    %6547 = vsyncpa [#allocation6], 1
    %s6548 = scalar_lea.sflag [#allocation6], 1
    %6549 = vsyncpa %s6548, 1
    %6550 = vsyncpa [#allocation7], 1
    %s6551 = scalar_lea.sflag [#allocation7], 1
    %6552 = vsyncpa %s6551, 1

</llo_original>
